<compile_context>
chip_gen: v5e
topology: v5e:2x2
jax: 0.10.0
libtpu: 0.0.40
codegen_flags: <defaults>
</compile_context>

<pallas_src>
import math

import jax
import jax.numpy as jnp
from jax import lax
from jax.experimental import pallas as pl
from jax.experimental.pallas import tpu as pltpu

_LANE = 128
_SUBLANE = 8


def _ceil_to(x, m):
    return ((x + m - 1) // m) * m


def _gelu_exact(x):
    # exact GELU (erf form), matching torch.nn.GELU(approximate='none')
    return 0.5 * x * (1.0 + lax.erf(x * (1.0 / math.sqrt(2.0))))


def _make_kernel(TC, BP, HP, num_gru_layers, num_linear, mxu_dtype):
    """Kernel over a time-chunk grid; hidden state carried in VMEM scratch."""
    L = num_gru_layers
    G = HP                      # lane-aligned gate stride (multiple of 128)
    unroll = max(1, min(TC, 8))  # bounded unroll (perf review)

    def kernel(*refs):
        i = 0
        x_ref = refs[i]; i += 1            # (TC*BP, in_rec) current time chunk
        xs_ref = refs[i]; i += 1           # (BP, in_reg) last-timestep static feats
        h0_ref = refs[i]; i += 1           # (L, BP, HP) initial hidden (padded)
        layer_refs = []                    # per layer: wih (.,3G), whh (HP,3G),
        for _ in range(L):                 #            bi (1,3G), bhn (1,G)
            layer_refs.append(tuple(refs[i:i + 4])); i += 4
        lin0_Wa, lin0_Wb, lin0_b = refs[i:i + 3]; i += 3
        lin_rest = []
        for _ in range(num_linear - 1):
            lin_rest.append((refs[i], refs[i + 1])); i += 2
        out_ref = refs[i]                  # (BP, out_pad)
        hN_ref = refs[i + 1]               # (L, BP, HP)
        gi0_ref = refs[i + 2]              # VMEM scratch (TC*BP, 3G)  f32
        hcar_ref = refs[i + 3]             # VMEM scratch (L, BP, HP)  f32 (carry)

        c = pl.program_id(0)

        @pl.when(c == 0)
        def _():
            hcar_ref[...] = h0_ref[...]

        wih0_ref, whh0_ref, bi0_ref, bhn0_ref = layer_refs[0]

        # Hoisted layer-0 input projection for this chunk: one well-shaped
        # matmul off the serial critical path (bih folded via bi0).
        gi0_ref[...] = (
            jnp.dot(x_ref[...].astype(mxu_dtype), wih0_ref[...],
                    preferred_element_type=jnp.float32)
            + bi0_ref[...])

        def cell(gi, gh, bhn, h_prev):
            # gi already contains [bi_r+bh_r, bi_z+bh_z, bi_n]; bhn = bh_n.
            r = jax.nn.sigmoid(gi[:, 0:G] + gh[:, 0:G])
            z = jax.nn.sigmoid(gi[:, G:2 * G] + gh[:, G:2 * G])
            n = jnp.tanh(gi[:, 2 * G:3 * G] + r * (gh[:, 2 * G:3 * G] + bhn))
            return (1.0 - z) * n + z * h_prev

        def step(t, hs):
            row = pl.multiple_of(t * BP, _SUBLANE)
            # layer 0: only h @ Whh left on the sequential critical path
            h_prev = hs[0]
            gi = gi0_ref[pl.ds(row, BP), :]                         # (BP, 3G)
            gh = jnp.dot(h_prev.astype(mxu_dtype), whh0_ref[...],
                         preferred_element_type=jnp.float32)
            h_new = cell(gi, gh, bhn0_ref[...], h_prev)
            new_hs = [h_new]
            inp = h_new
            # layers >= 1: two K=HP dots (no per-step concat, no padded cols)
            for l in range(1, L):
                wih_ref, whh_ref, bi_ref, bhn_ref = layer_refs[l]
                h_prev = hs[l]
                gi = (jnp.dot(inp.astype(mxu_dtype), wih_ref[...],
                              preferred_element_type=jnp.float32)
                      + bi_ref[...])
                gh = jnp.dot(h_prev.astype(mxu_dtype), whh_ref[...],
                             preferred_element_type=jnp.float32)
                h_new = cell(gi, gh, bhn_ref[...], h_prev)
                new_hs.append(h_new)
                inp = h_new
            return tuple(new_hs)

        hs0 = tuple(hcar_ref[l] for l in range(L))
        hs = lax.fori_loop(0, TC, step, hs0, unroll=unroll)
        for l in range(L):
            hcar_ref[l] = hs[l]

        @pl.when(c == pl.num_programs(0) - 1)
        def _():
            hN_ref[...] = hcar_ref[...]
            # MLP head (lane-dense padded widths). GELU after EVERY layer,
            # matching the PyTorch zip(linear_layers, activations + [None]).
            out = (jnp.dot(xs_ref[...].astype(mxu_dtype), lin0_Wa[...],
                           preferred_element_type=jnp.float32)
                   + jnp.dot(hcar_ref[L - 1].astype(mxu_dtype), lin0_Wb[...],
                             preferred_element_type=jnp.float32)
                   + lin0_b[...])
            out = _gelu_exact(out)
            for W, b in lin_rest:
                out = _gelu_exact(
                    jnp.dot(out.astype(mxu_dtype), W[...],
                            preferred_element_type=jnp.float32) + b[...])
            out_ref[...] = out

    return kernel


def init_params(key, input_size_recurrent, input_size_regular, hidden_size,
                num_gru_layers, linear_layers):
    """Deterministic synthetic init mirroring the module's parameter shapes."""
    H = hidden_size
    params = {
        "input_size_recurrent": input_size_recurrent,
        "input_size_regular": input_size_regular,
        "hidden_size": H,
        "num_gru_layers": num_gru_layers,
        "gru_wih_T": [], "gru_whh_T": [], "gru_bih": [], "gru_bhh": [],
        "lin_rest": [],
    }

    def xavier_uniform(k, out_dim, in_dim):
        a = math.sqrt(6.0 / (in_dim + out_dim))
        return jax.random.uniform(k, (out_dim, in_dim), jnp.float32, -a, a)

    keys = jax.random.split(key, 2 * num_gru_layers + 2 * len(linear_layers))
    ki = 0
    for l in range(num_gru_layers):
        in_l = input_size_recurrent if l == 0 else H
        w_ih = xavier_uniform(keys[ki], 3 * H, in_l); ki += 1      # (3H, in_l)
        w_hh = xavier_uniform(keys[ki], 3 * H, H); ki += 1         # (3H, H)
        params["gru_wih_T"].append(jnp.transpose(w_ih))            # (in_l, 3H)
        params["gru_whh_T"].append(jnp.transpose(w_hh))            # (H, 3H)
        params["gru_bih"].append(jnp.zeros((1, 3 * H), jnp.float32))
        params["gru_bhh"].append(jnp.zeros((1, 3 * H), jnp.float32))

    current_in = input_size_regular + H
    for i, neurons in enumerate(linear_layers):
        bound = 1.0 / math.sqrt(current_in)
        W = jax.random.uniform(keys[ki], (neurons, current_in), jnp.float32,
                               -bound, bound); ki += 1
        b = jax.random.uniform(keys[ki], (1, neurons), jnp.float32,
                               -bound, bound); ki += 1
        W_T = jnp.transpose(W)                                     # (in, out)
        if i == 0:
            params["lin0_Wa"] = W_T[:input_size_regular]           # static half
            params["lin0_Wb"] = W_T[input_size_regular:]           # gru half
            params["lin0_b"] = b
        else:
            params["lin_rest"].append((W_T, b))
        current_in = neurons
    return params


def _pack_kernel_params(params, mxu_dtype):
    """Pad weights into lane-aligned layouts; weights in mxu_dtype, biases f32."""
    H = params["hidden_size"]
    L = params["num_gru_layers"]
    in_rec = params["input_size_recurrent"]
    in_reg = params["input_size_regular"]
    HP = _ceil_to(H, _LANE)
    G = HP

    def put(dst, src, r0, c0):
        return dst.at[r0:r0 + src.shape[0], c0:c0 + src.shape[1]].set(src)

    packed = {"HP": HP, "layers": []}

    for l in range(L):
        wih_T = params["gru_wih_T"][l]             # (in_l, 3H)
        whh_T = params["gru_whh_T"][l]             # (H, 3H)
        bih = params["gru_bih"][l]
        bhh = params["gru_bhh"][l]
        rows_i = in_rec if l == 0 else HP
        wih = jnp.zeros((rows_i, 3 * G), jnp.float32)
        whh = jnp.zeros((HP, 3 * G), jnp.float32)
        for g in range(3):
            wih = put(wih, wih_T[:, g * H:(g + 1) * H], 0, g * G)
            whh = put(whh, whh_T[:, g * H:(g + 1) * H], 0, g * G)
        # bi = [bih_r + bhh_r, bih_z + bhh_z, bih_n] ; bhn = bhh_n
        bi = jnp.zeros((1, 3 * G), jnp.float32)
        bi = put(bi, bih[:, 0:H] + bhh[:, 0:H], 0, 0)
        bi = put(bi, bih[:, H:2 * H] + bhh[:, H:2 * H], 0, G)
        bi = put(bi, bih[:, 2 * H:3 * H], 0, 2 * G)
        bhn = put(jnp.zeros((1, G), jnp.float32), bhh[:, 2 * H:3 * H], 0, 0)
        packed["layers"].append(
            (wih.astype(mxu_dtype), whh.astype(mxu_dtype), bi, bhn))

    # MLP head: pad every width to 128-lane multiples.
    n0 = params["lin0_b"].shape[-1]
    n0p = _ceil_to(n0, _LANE)
    Wa = put(jnp.zeros((max(in_reg, 1), n0p), jnp.float32), params["lin0_Wa"], 0, 0)
    Wb = put(jnp.zeros((HP, n0p), jnp.float32), params["lin0_Wb"], 0, 0)
    b0l = put(jnp.zeros((1, n0p), jnp.float32), params["lin0_b"], 0, 0)
    packed["lin0"] = (Wa.astype(mxu_dtype), Wb.astype(mxu_dtype), b0l)
    packed["lin_rest"] = []
    prev_p, out_dim = n0p, n0
    for (W_T, b) in params["lin_rest"]:
        n = b.shape[-1]
        n_p = _ceil_to(n, _LANE)
        Wp = put(jnp.zeros((prev_p, n_p), jnp.float32), W_T, 0, 0)
        bp = put(jnp.zeros((1, n_p), jnp.float32), b, 0, 0)
        packed["lin_rest"].append((Wp.astype(mxu_dtype), bp))
        prev_p, out_dim = n_p, n
    packed["out_dim"] = out_dim
    packed["out_pad"] = prev_p
    return packed


def _resident_spec(a):
    """Full-array block with a constant index map: resident in VMEM, no re-DMA."""
    nd = a.ndim
    return pl.BlockSpec(a.shape, lambda c, _nd=nd: (0,) * _nd)


def _choose_time_chunk(T, BP, HP, in_rec, target_bytes):
    """Largest divisor of T whose per-chunk VMEM (gi0 + x double-buffer) fits."""
    per_t = BP * (3 * HP * 4 + 2 * in_rec * 4)
    max_tc = max(1, target_bytes // per_t)
    tc = 1
    for d in range(1, T + 1):
        if T % d == 0 and d <= max_tc:
            tc = d
    return tc


def split_gru_forward(params, x, hidden_state=None, *, mxu_dtype=jnp.bfloat16,
                      time_chunk_vmem_bytes=8 << 20):
    """Pallas forward for the default (return_sequences=False) path."""
    in_rec = params["input_size_recurrent"]
    in_reg = params["input_size_regular"]
    H = params["hidden_size"]
    L = params["num_gru_layers"]
    B, T, _ = x.shape

    packed = _pack_kernel_params(params, mxu_dtype)
    HP = packed["HP"]
    BP = max(_SUBLANE, _ceil_to(B, _SUBLANE))
    out_dim, out_pad = packed["out_dim"], packed["out_pad"]
    num_linear = 1 + len(packed["lin_rest"])

    x = x.astype(jnp.float32)
    x_rec = jnp.transpose(x[..., :in_rec], (1, 0, 2))               # (T, B, in_rec)
    x_rec = jnp.pad(x_rec, ((0, 0), (0, BP - B), (0, 0)))           # (T, BP, in_rec)
    x2d = x_rec.reshape(T * BP, in_rec)                             # (T*BP, in_rec)
    xs_last = jnp.pad(x[:, -1, in_rec:], ((0, BP - B), (0, 0)))     # (BP, in_reg)

    if hidden_state is None:
        h0 = jnp.zeros((L, BP, HP), jnp.float32)
    else:
        h0 = jnp.pad(hidden_state.astype(jnp.float32),
                     ((0, 0), (0, BP - B), (0, HP - H)))

    TC = _choose_time_chunk(T, BP, HP, in_rec, time_chunk_vmem_bytes)
    NC = T // TC

    inputs = [x2d, xs_last, h0]
    for wih, whh, bi, bhn in packed["layers"]:
        inputs += [wih, whh, bi, bhn]
    inputs += list(packed["lin0"])
    for W, b in packed["lin_rest"]:
        inputs += [W, b]

    in_specs = [pl.BlockSpec((TC * BP, in_rec), lambda c: (c, 0))]   # streamed x
    in_specs += [_resident_spec(a) for a in inputs[1:]]
    out_specs = (pl.BlockSpec((BP, out_pad), lambda c: (0, 0)),
                 pl.BlockSpec((L, BP, HP), lambda c: (0, 0, 0)))

    # Explicit VMEM limit from resident bytes (x2 headroom for double buffers),
    # kept within the smallest physical VMEM (v7x: 64 MiB).
    weight_bytes = sum(int(a.size) * a.dtype.itemsize for a in inputs[1:])
    x_chunk_bytes = TC * BP * in_rec * 4
    out_bytes = (BP * out_pad + L * BP * HP) * 4
    scratch_bytes = (TC * BP * 3 * HP + L * BP * HP) * 4
    resident = 2 * (weight_bytes + x_chunk_bytes + out_bytes) + scratch_bytes
    vmem_limit = int(min(max(2 * resident, 32 << 20), 64 << 20))

    # Advisory cost estimate for XLA scheduling around the custom call.
    n0p = packed["lin0"][2].shape[-1]
    flops = (2 * T * BP * in_rec * 3 * HP            # hoisted layer-0 input proj
             + 2 * T * BP * HP * 3 * HP              # layer-0 recurrent dot
             + (L - 1) * 4 * T * BP * HP * 3 * HP    # layers>=1: wih + whh dots
             + 2 * BP * (in_reg + HP) * n0p)
    for W, _ in packed["lin_rest"]:
        flops += 2 * BP * int(W.shape[0]) * int(W.shape[1])
    transcendentals = (3 * T * BP * HP * L
                       + BP * (n0p + sum(int(b.shape[-1])
                                         for _, b in packed["lin_rest"])))
    bytes_accessed = (sum(int(a.size) * a.dtype.itemsize for a in inputs)
                      + out_bytes)

    out, hN = pl.pallas_call(
        _make_kernel(TC, BP, HP, L, num_linear, mxu_dtype),
        grid=(NC,),
        out_shape=(jax.ShapeDtypeStruct((BP, out_pad), jnp.float32),
                   jax.ShapeDtypeStruct((L, BP, HP), jnp.float32)),
        in_specs=in_specs,
        out_specs=out_specs,
        scratch_shapes=[pltpu.VMEM((TC * BP, 3 * HP), jnp.float32),
                        pltpu.VMEM((L, BP, HP), jnp.float32)],
        input_output_aliases={2: 1},        # h0 input <-> hN output buffer
        compiler_params=pltpu.CompilerParams(
            dimension_semantics=("arbitrary",),   # sequential recurrence
            vmem_limit_bytes=vmem_limit),
        cost_estimate=pl.CostEstimate(flops=int(flops),
                                      transcendentals=int(transcendentals),
                                      bytes_accessed=int(bytes_accessed)),
    )(*inputs)

    return out[:B, :out_dim][:, None, :], hN[:, :B, :H]


def reference_forward(params, x, hidden_state=None):
    """Plain-JAX reference replicating the PyTorch forward (unpadded, f32)."""
    in_rec = params["input_size_recurrent"]
    B, T, _ = x.shape
    H = params["hidden_size"]
    L = params["num_gru_layers"]
    if hidden_state is None:
        hidden_state = jnp.zeros((L, B, H), jnp.float32)
    hs = [hidden_state[l] for l in range(L)]
    x_rec = x[..., :in_rec].astype(jnp.float32)
    for t in range(T):
        inp = x_rec[:, t, :]
        for l in range(L):
            gi = inp @ params["gru_wih_T"][l] + params["gru_bih"][l]
            gh = hs[l] @ params["gru_whh_T"][l] + params["gru_bhh"][l]
            r = jax.nn.sigmoid(gi[:, :H] + gh[:, :H])
            z = jax.nn.sigmoid(gi[:, H:2 * H] + gh[:, H:2 * H])
            n = jnp.tanh(gi[:, 2 * H:] + r * gh[:, 2 * H:])
            hs[l] = (1.0 - z) * n + z * hs[l]
            inp = hs[l]
    out = (x[:, -1, in_rec:].astype(jnp.float32) @ params["lin0_Wa"]
           + hs[-1] @ params["lin0_Wb"] + params["lin0_b"])
    out = _gelu_exact(out)
    for W, b in params["lin_rest"]:
        out = _gelu_exact(out @ W + b)
    return out[:, None, :], jnp.stack(hs)


if __name__ == "__main__":
    input_size_recurrent = 16
    input_size_regular = 8
    hidden_size = 32
    num_gru_layers = 2
    linear_layers = [64, 32]
    B, T = 2, 8

    key = jax.random.PRNGKey(0)
    k_params, k_x, k_h = jax.random.split(key, 3)
    params = init_params(k_params, input_size_recurrent, input_size_regular,
                         hidden_size, num_gru_layers, linear_layers)
    x = jax.random.normal(
        k_x, (B, T, input_size_recurrent + input_size_regular), jnp.float32)
    h0 = 0.1 * jax.random.normal(
        k_h, (num_gru_layers, B, hidden_size), jnp.float32)

    out_ref, hN_ref = reference_forward(params, x, h0)

    # Exact mode (f32 MXU operands): tight tolerance vs the f32 reference.
    out32, hN32 = split_gru_forward(params, x, h0, mxu_dtype=jnp.float32)
    out32, hN32 = jax.block_until_ready((out32, hN32))
    assert out32.shape == (B, 1, linear_layers[-1])
    assert hN32.shape == (num_gru_layers, B, hidden_size)
    assert jnp.allclose(out32, out_ref, atol=2e-3, rtol=2e-3)
    assert jnp.allclose(hN32, hN_ref, atol=2e-3, rtol=2e-3)

    # Perf mode (bf16 MXU operands, f32 accumulate / elementwise): looser tol.
    out16, hN16 = split_gru_forward(params, x, h0, mxu_dtype=jnp.bfloat16)
    out16, hN16 = jax.block_until_ready((out16, hN16))
    assert out16.shape == (B, 1, linear_layers[-1])
    assert hN16.shape == (num_gru_layers, B, hidden_size)
    assert jnp.allclose(out16, out_ref, atol=5e-2, rtol=5e-2)
    assert jnp.allclose(hN16, hN_ref, atol=5e-2, rtol=5e-2)

    print("KERNEL_OK")
</pallas_src>

<mosaic_0001>
module attributes {stable_mosaic.version = 11 : i64} {
  func.func @kernel(%arg0: i32, %arg1: memref<64x16xf32, #tpu.memory_space<vmem>>, %arg2: memref<8x8xf32, #tpu.memory_space<vmem>>, %arg3: memref<2x8x128xf32, #tpu.memory_space<vmem>>, %arg4: memref<16x384xf32, #tpu.memory_space<vmem>>, %arg5: memref<128x384xf32, #tpu.memory_space<vmem>>, %arg6: memref<1x384xf32, #tpu.memory_space<vmem>>, %arg7: memref<1x128xf32, #tpu.memory_space<vmem>>, %arg8: memref<128x384xf32, #tpu.memory_space<vmem>>, %arg9: memref<128x384xf32, #tpu.memory_space<vmem>>, %arg10: memref<1x384xf32, #tpu.memory_space<vmem>>, %arg11: memref<1x128xf32, #tpu.memory_space<vmem>>, %arg12: memref<8x128xf32, #tpu.memory_space<vmem>>, %arg13: memref<128x128xf32, #tpu.memory_space<vmem>>, %arg14: memref<1x128xf32, #tpu.memory_space<vmem>>, %arg15: memref<128x128xf32, #tpu.memory_space<vmem>>, %arg16: memref<1x128xf32, #tpu.memory_space<vmem>>, %arg17: memref<8x128xf32, #tpu.memory_space<vmem>>, %arg18: memref<2x8x128xf32, #tpu.memory_space<vmem>>, %arg19: memref<64x384xf32, #tpu.memory_space<vmem>>, %arg20: memref<2x8x128xf32, #tpu.memory_space<vmem>>) attributes {dimension_semantics = [#tpu.dimension_semantics<arbitrary>], iteration_bounds = array<i64: 1>, scalar_prefetch = 0 : i64, scratch_operands = 2 : i64, tpu.core_type = #tpu.core_type<tc>, window_params = [{transform_indices = @transform_0, window_bounds = array<i64: 64, 16>}, {pipeline_mode = #tpu.pipeline_mode<synchronous>, transform_indices = @transform_1, window_bounds = array<i64: 8, 8>}, {pipeline_mode = #tpu.pipeline_mode<synchronous>, transform_indices = @transform_2, window_bounds = array<i64: 2, 8, 128>}, {pipeline_mode = #tpu.pipeline_mode<synchronous>, transform_indices = @transform_3, window_bounds = array<i64: 16, 384>}, {pipeline_mode = #tpu.pipeline_mode<synchronous>, transform_indices = @transform_4, window_bounds = array<i64: 128, 384>}, {pipeline_mode = #tpu.pipeline_mode<synchronous>, transform_indices = @transform_5, window_bounds = array<i64: 1, 384>}, {pipeline_mode = #tpu.pipeline_mode<synchronous>, transform_indices = @transform_6, window_bounds = array<i64: 1, 128>}, {pipeline_mode = #tpu.pipeline_mode<synchronous>, transform_indices = @transform_7, window_bounds = array<i64: 128, 384>}, {pipeline_mode = #tpu.pipeline_mode<synchronous>, transform_indices = @transform_8, window_bounds = array<i64: 128, 384>}, {pipeline_mode = #tpu.pipeline_mode<synchronous>, transform_indices = @transform_9, window_bounds = array<i64: 1, 384>}, {pipeline_mode = #tpu.pipeline_mode<synchronous>, transform_indices = @transform_10, window_bounds = array<i64: 1, 128>}, {pipeline_mode = #tpu.pipeline_mode<synchronous>, transform_indices = @transform_11, window_bounds = array<i64: 8, 128>}, {pipeline_mode = #tpu.pipeline_mode<synchronous>, transform_indices = @transform_12, window_bounds = array<i64: 128, 128>}, {pipeline_mode = #tpu.pipeline_mode<synchronous>, transform_indices = @transform_13, window_bounds = array<i64: 1, 128>}, {pipeline_mode = #tpu.pipeline_mode<synchronous>, transform_indices = @transform_14, window_bounds = array<i64: 128, 128>}, {pipeline_mode = #tpu.pipeline_mode<synchronous>, transform_indices = @transform_15, window_bounds = array<i64: 1, 128>}, {pipeline_mode = #tpu.pipeline_mode<synchronous>, transform_indices = @transform_16, window_bounds = array<i64: 8, 128>}, {pipeline_mode = #tpu.pipeline_mode<synchronous>, transform_indices = @transform_17, window_bounds = array<i64: 2, 8, 128>}]} {
    %c0_i32 = arith.constant 0 : i32
    %0 = arith.cmpi eq, %arg0, %c0_i32 : i32
    %1 = arith.extui %0 : i1 to i32
    %c0_i32_0 = arith.constant 0 : i32
    %2 = arith.cmpi ne, %1, %c0_i32_0 : i32
    scf.if %2 {
      %c0_206 = arith.constant 0 : index
      %c0_207 = arith.constant 0 : index
      %c0_208 = arith.constant 0 : index
      %591 = vector.load %arg3[%c0_206, %c0_207, %c0_208] : memref<2x8x128xf32, #tpu.memory_space<vmem>>, vector<2x8x128xf32>
      %c0_209 = arith.constant 0 : index
      %c0_210 = arith.constant 0 : index
      %c0_211 = arith.constant 0 : index
      %592 = vector.load %arg20[%c0_209, %c0_210, %c0_211] : memref<2x8x128xf32, #tpu.memory_space<vmem>>, vector<2x8x128xf32>
      tpu.vector_store %arg20[%c0_209, %c0_210, %c0_211], %591 {strides = array<i32>} : memref<2x8x128xf32, #tpu.memory_space<vmem>>, vector<2x8x128xf32>,
    } else {
    }
    %c0 = arith.constant 0 : index
    %c0_1 = arith.constant 0 : index
    %3 = vector.load %arg1[%c0, %c0_1] : memref<64x16xf32, #tpu.memory_space<vmem>>, vector<64x16xf32>
    %c0_2 = arith.constant 0 : index
    %c0_3 = arith.constant 0 : index
    %4 = vector.load %arg4[%c0_2, %c0_3] : memref<16x384xf32, #tpu.memory_space<vmem>>, vector<16x384xf32>
    %cst = arith.constant dense<0.000000e+00> : vector<64x384xf32>
    %5 = tpu.matmul %3, %4, %cst {dimension_numbers = #tpu.dot_dimension_numbers<[1], [0], [0], [1], [0, 0, 1, 1], [], []>} : vector<64x16xf32>, vector<16x384xf32>, vector<64x384xf32> -> vector<64x384xf32>
    %c0_4 = arith.constant 0 : index
    %c0_5 = arith.constant 0 : index
    %6 = vector.load %arg6[%c0_4, %c0_5] : memref<1x384xf32, #tpu.memory_space<vmem>>, vector<1x384xf32>
    %7 = vector.broadcast %6 : vector<1x384xf32> to vector<64x384xf32>
    %8 = arith.addf %5, %7 : vector<64x384xf32>
    %c0_6 = arith.constant 0 : index
    %c0_7 = arith.constant 0 : index
    %9 = vector.load %arg19[%c0_6, %c0_7] : memref<64x384xf32, #tpu.memory_space<vmem>>, vector<64x384xf32>
    tpu.vector_store %arg19[%c0_6, %c0_7], %8 {strides = array<i32>} : memref<64x384xf32, #tpu.memory_space<vmem>>, vector<64x384xf32>,
    %c0_8 = arith.constant 0 : index
    %c0_9 = arith.constant 0 : index
    %c0_10 = arith.constant 0 : index
    %10 = vector.load %arg20[%c0_8, %c0_9, %c0_10] : memref<2x8x128xf32, #tpu.memory_space<vmem>>, vector<1x8x128xf32>
    %11 = vector.shape_cast %10 : vector<1x8x128xf32> to vector<8x128xf32>
    %c1 = arith.constant 1 : index
    %c0_11 = arith.constant 0 : index
    %c0_12 = arith.constant 0 : index
    %12 = vector.load %arg20[%c1, %c0_11, %c0_12] : memref<2x8x128xf32, #tpu.memory_space<vmem>>, vector<1x8x128xf32>
    %13 = vector.shape_cast %12 : vector<1x8x128xf32> to vector<8x128xf32>
    %c0_i32_13 = arith.constant 0 : i32
    %c8_i32 = arith.constant 8 : i32
    %14 = arith.muli %c0_i32_13, %c8_i32 : i32
    %15 = tpu.assume_multiple %14, 8 : i32
    %16 = arith.index_cast %15 : i32 to index
    %c0_14 = arith.constant 0 : index
    %17 = vector.load %arg19[%16, %c0_14] : memref<64x384xf32, #tpu.memory_space<vmem>>, vector<8x384xf32>
    %c0_15 = arith.constant 0 : index
    %c0_16 = arith.constant 0 : index
    %18 = vector.load %arg5[%c0_15, %c0_16] : memref<128x384xf32, #tpu.memory_space<vmem>>, vector<128x384xf32>
    %cst_17 = arith.constant dense<0.000000e+00> : vector<8x384xf32>
    %19 = tpu.matmul %11, %18, %cst_17 {dimension_numbers = #tpu.dot_dimension_numbers<[1], [0], [0], [1], [0, 0, 1, 1], [], []>} : vector<8x128xf32>, vector<128x384xf32>, vector<8x384xf32> -> vector<8x384xf32>
    %c0_18 = arith.constant 0 : index
    %c0_19 = arith.constant 0 : index
    %20 = vector.load %arg7[%c0_18, %c0_19] : memref<1x128xf32, #tpu.memory_space<vmem>>, vector<1x128xf32>
    %21 = vector.extract_strided_slice %17 {offsets = [0, 0], sizes = [8, 128], strides = [1, 1]} : vector<8x384xf32> to vector<8x128xf32>
    %22 = vector.extract_strided_slice %19 {offsets = [0, 0], sizes = [8, 128], strides = [1, 1]} : vector<8x384xf32> to vector<8x128xf32>
    %23 = arith.addf %21, %22 : vector<8x128xf32>
    %24 = arith.negf %23 : vector<8x128xf32>
    %25 = math.exp %24 : vector<8x128xf32>
    %cst_20 = arith.constant 1.000000e+00 : f32
    %26 = vector.broadcast %cst_20 : f32 to vector<8x128xf32>
    %27 = arith.addf %26, %25 : vector<8x128xf32>
    %28 = arith.divf %26, %27 : vector<8x128xf32>
    %29 = vector.extract_strided_slice %17 {offsets = [0, 128], sizes = [8, 128], strides = [1, 1]} : vector<8x384xf32> to vector<8x128xf32>
    %30 = vector.extract_strided_slice %19 {offsets = [0, 128], sizes = [8, 128], strides = [1, 1]} : vector<8x384xf32> to vector<8x128xf32>
    %31 = arith.addf %29, %30 : vector<8x128xf32>
    %32 = arith.negf %31 : vector<8x128xf32>
    %33 = math.exp %32 : vector<8x128xf32>
    %cst_21 = arith.constant 1.000000e+00 : f32
    %34 = vector.broadcast %cst_21 : f32 to vector<8x128xf32>
    %35 = arith.addf %34, %33 : vector<8x128xf32>
    %36 = arith.divf %34, %35 : vector<8x128xf32>
    %37 = vector.extract_strided_slice %17 {offsets = [0, 256], sizes = [8, 128], strides = [1, 1]} : vector<8x384xf32> to vector<8x128xf32>
    %38 = vector.extract_strided_slice %19 {offsets = [0, 256], sizes = [8, 128], strides = [1, 1]} : vector<8x384xf32> to vector<8x128xf32>
    %39 = vector.broadcast %20 : vector<1x128xf32> to vector<8x128xf32>
    %40 = arith.addf %38, %39 : vector<8x128xf32>
    %41 = arith.mulf %28, %40 : vector<8x128xf32>
    %42 = arith.addf %37, %41 : vector<8x128xf32>
    %43 = math.tanh %42 : vector<8x128xf32>
    %cst_22 = arith.constant 1.000000e+00 : f32
    %44 = vector.broadcast %cst_22 : f32 to vector<8x128xf32>
    %45 = arith.subf %44, %36 : vector<8x128xf32>
    %46 = arith.mulf %45, %43 : vector<8x128xf32>
    %47 = arith.mulf %36, %11 : vector<8x128xf32>
    %48 = arith.addf %46, %47 : vector<8x128xf32>
    %c0_23 = arith.constant 0 : index
    %c0_24 = arith.constant 0 : index
    %49 = vector.load %arg8[%c0_23, %c0_24] : memref<128x384xf32, #tpu.memory_space<vmem>>, vector<128x384xf32>
    %cst_25 = arith.constant dense<0.000000e+00> : vector<8x384xf32>
    %50 = tpu.matmul %48, %49, %cst_25 {dimension_numbers = #tpu.dot_dimension_numbers<[1], [0], [0], [1], [0, 0, 1, 1], [], []>} : vector<8x128xf32>, vector<128x384xf32>, vector<8x384xf32> -> vector<8x384xf32>
    %c0_26 = arith.constant 0 : index
    %c0_27 = arith.constant 0 : index
    %51 = vector.load %arg10[%c0_26, %c0_27] : memref<1x384xf32, #tpu.memory_space<vmem>>, vector<1x384xf32>
    %52 = vector.broadcast %51 : vector<1x384xf32> to vector<8x384xf32>
    %53 = arith.addf %50, %52 : vector<8x384xf32>
    %c0_28 = arith.constant 0 : index
    %c0_29 = arith.constant 0 : index
    %54 = vector.load %arg9[%c0_28, %c0_29] : memref<128x384xf32, #tpu.memory_space<vmem>>, vector<128x384xf32>
    %cst_30 = arith.constant dense<0.000000e+00> : vector<8x384xf32>
    %55 = tpu.matmul %13, %54, %cst_30 {dimension_numbers = #tpu.dot_dimension_numbers<[1], [0], [0], [1], [0, 0, 1, 1], [], []>} : vector<8x128xf32>, vector<128x384xf32>, vector<8x384xf32> -> vector<8x384xf32>
    %c0_31 = arith.constant 0 : index
    %c0_32 = arith.constant 0 : index
    %56 = vector.load %arg11[%c0_31, %c0_32] : memref<1x128xf32, #tpu.memory_space<vmem>>, vector<1x128xf32>
    %57 = vector.extract_strided_slice %53 {offsets = [0, 0], sizes = [8, 128], strides = [1, 1]} : vector<8x384xf32> to vector<8x128xf32>
    %58 = vector.extract_strided_slice %55 {offsets = [0, 0], sizes = [8, 128], strides = [1, 1]} : vector<8x384xf32> to vector<8x128xf32>
    %59 = arith.addf %57, %58 : vector<8x128xf32>
    %60 = arith.negf %59 : vector<8x128xf32>
    %61 = math.exp %60 : vector<8x128xf32>
    %cst_33 = arith.constant 1.000000e+00 : f32
    %62 = vector.broadcast %cst_33 : f32 to vector<8x128xf32>
    %63 = arith.addf %62, %61 : vector<8x128xf32>
    %64 = arith.divf %62, %63 : vector<8x128xf32>
    %65 = vector.extract_strided_slice %53 {offsets = [0, 128], sizes = [8, 128], strides = [1, 1]} : vector<8x384xf32> to vector<8x128xf32>
    %66 = vector.extract_strided_slice %55 {offsets = [0, 128], sizes = [8, 128], strides = [1, 1]} : vector<8x384xf32> to vector<8x128xf32>
    %67 = arith.addf %65, %66 : vector<8x128xf32>
    %68 = arith.negf %67 : vector<8x128xf32>
    %69 = math.exp %68 : vector<8x128xf32>
    %cst_34 = arith.constant 1.000000e+00 : f32
    %70 = vector.broadcast %cst_34 : f32 to vector<8x128xf32>
    %71 = arith.addf %70, %69 : vector<8x128xf32>
    %72 = arith.divf %70, %71 : vector<8x128xf32>
    %73 = vector.extract_strided_slice %53 {offsets = [0, 256], sizes = [8, 128], strides = [1, 1]} : vector<8x384xf32> to vector<8x128xf32>
    %74 = vector.extract_strided_slice %55 {offsets = [0, 256], sizes = [8, 128], strides = [1, 1]} : vector<8x384xf32> to vector<8x128xf32>
    %75 = vector.broadcast %56 : vector<1x128xf32> to vector<8x128xf32>
    %76 = arith.addf %74, %75 : vector<8x128xf32>
    %77 = arith.mulf %64, %76 : vector<8x128xf32>
    %78 = arith.addf %73, %77 : vector<8x128xf32>
    %79 = math.tanh %78 : vector<8x128xf32>
    %cst_35 = arith.constant 1.000000e+00 : f32
    %80 = vector.broadcast %cst_35 : f32 to vector<8x128xf32>
    %81 = arith.subf %80, %72 : vector<8x128xf32>
    %82 = arith.mulf %81, %79 : vector<8x128xf32>
    %83 = arith.mulf %72, %13 : vector<8x128xf32>
    %84 = arith.addf %82, %83 : vector<8x128xf32>
    %c1_i32 = arith.constant 1 : i32
    %c8_i32_36 = arith.constant 8 : i32
    %85 = arith.muli %c1_i32, %c8_i32_36 : i32
    %86 = tpu.assume_multiple %85, 8 : i32
    %87 = arith.index_cast %86 : i32 to index
    %c0_37 = arith.constant 0 : index
    %88 = vector.load %arg19[%87, %c0_37] : memref<64x384xf32, #tpu.memory_space<vmem>>, vector<8x384xf32>
    %c0_38 = arith.constant 0 : index
    %c0_39 = arith.constant 0 : index
    %89 = vector.load %arg5[%c0_38, %c0_39] : memref<128x384xf32, #tpu.memory_space<vmem>>, vector<128x384xf32>
    %cst_40 = arith.constant dense<0.000000e+00> : vector<8x384xf32>
    %90 = tpu.matmul %48, %89, %cst_40 {dimension_numbers = #tpu.dot_dimension_numbers<[1], [0], [0], [1], [0, 0, 1, 1], [], []>} : vector<8x128xf32>, vector<128x384xf32>, vector<8x384xf32> -> vector<8x384xf32>
    %c0_41 = arith.constant 0 : index
    %c0_42 = arith.constant 0 : index
    %91 = vector.load %arg7[%c0_41, %c0_42] : memref<1x128xf32, #tpu.memory_space<vmem>>, vector<1x128xf32>
    %92 = vector.extract_strided_slice %88 {offsets = [0, 0], sizes = [8, 128], strides = [1, 1]} : vector<8x384xf32> to vector<8x128xf32>
    %93 = vector.extract_strided_slice %90 {offsets = [0, 0], sizes = [8, 128], strides = [1, 1]} : vector<8x384xf32> to vector<8x128xf32>
    %94 = arith.addf %92, %93 : vector<8x128xf32>
    %95 = arith.negf %94 : vector<8x128xf32>
    %96 = math.exp %95 : vector<8x128xf32>
    %cst_43 = arith.constant 1.000000e+00 : f32
    %97 = vector.broadcast %cst_43 : f32 to vector<8x128xf32>
    %98 = arith.addf %97, %96 : vector<8x128xf32>
    %99 = arith.divf %97, %98 : vector<8x128xf32>
    %100 = vector.extract_strided_slice %88 {offsets = [0, 128], sizes = [8, 128], strides = [1, 1]} : vector<8x384xf32> to vector<8x128xf32>
    %101 = vector.extract_strided_slice %90 {offsets = [0, 128], sizes = [8, 128], strides = [1, 1]} : vector<8x384xf32> to vector<8x128xf32>
    %102 = arith.addf %100, %101 : vector<8x128xf32>
    %103 = arith.negf %102 : vector<8x128xf32>
    %104 = math.exp %103 : vector<8x128xf32>
    %cst_44 = arith.constant 1.000000e+00 : f32
    %105 = vector.broadcast %cst_44 : f32 to vector<8x128xf32>
    %106 = arith.addf %105, %104 : vector<8x128xf32>
    %107 = arith.divf %105, %106 : vector<8x128xf32>
    %108 = vector.extract_strided_slice %88 {offsets = [0, 256], sizes = [8, 128], strides = [1, 1]} : vector<8x384xf32> to vector<8x128xf32>
    %109 = vector.extract_strided_slice %90 {offsets = [0, 256], sizes = [8, 128], strides = [1, 1]} : vector<8x384xf32> to vector<8x128xf32>
    %110 = vector.broadcast %91 : vector<1x128xf32> to vector<8x128xf32>
    %111 = arith.addf %109, %110 : vector<8x128xf32>
    %112 = arith.mulf %99, %111 : vector<8x128xf32>
    %113 = arith.addf %108, %112 : vector<8x128xf32>
    %114 = math.tanh %113 : vector<8x128xf32>
    %cst_45 = arith.constant 1.000000e+00 : f32
    %115 = vector.broadcast %cst_45 : f32 to vector<8x128xf32>
    %116 = arith.subf %115, %107 : vector<8x128xf32>
    %117 = arith.mulf %116, %114 : vector<8x128xf32>
    %118 = arith.mulf %107, %48 : vector<8x128xf32>
    %119 = arith.addf %117, %118 : vector<8x128xf32>
    %c0_46 = arith.constant 0 : index
    %c0_47 = arith.constant 0 : index
    %120 = vector.load %arg8[%c0_46, %c0_47] : memref<128x384xf32, #tpu.memory_space<vmem>>, vector<128x384xf32>
    %cst_48 = arith.constant dense<0.000000e+00> : vector<8x384xf32>
    %121 = tpu.matmul %119, %120, %cst_48 {dimension_numbers = #tpu.dot_dimension_numbers<[1], [0], [0], [1], [0, 0, 1, 1], [], []>} : vector<8x128xf32>, vector<128x384xf32>, vector<8x384xf32> -> vector<8x384xf32>
    %c0_49 = arith.constant 0 : index
    %c0_50 = arith.constant 0 : index
    %122 = vector.load %arg10[%c0_49, %c0_50] : memref<1x384xf32, #tpu.memory_space<vmem>>, vector<1x384xf32>
    %123 = vector.broadcast %122 : vector<1x384xf32> to vector<8x384xf32>
    %124 = arith.addf %121, %123 : vector<8x384xf32>
    %c0_51 = arith.constant 0 : index
    %c0_52 = arith.constant 0 : index
    %125 = vector.load %arg9[%c0_51, %c0_52] : memref<128x384xf32, #tpu.memory_space<vmem>>, vector<128x384xf32>
    %cst_53 = arith.constant dense<0.000000e+00> : vector<8x384xf32>
    %126 = tpu.matmul %84, %125, %cst_53 {dimension_numbers = #tpu.dot_dimension_numbers<[1], [0], [0], [1], [0, 0, 1, 1], [], []>} : vector<8x128xf32>, vector<128x384xf32>, vector<8x384xf32> -> vector<8x384xf32>
    %c0_54 = arith.constant 0 : index
    %c0_55 = arith.constant 0 : index
    %127 = vector.load %arg11[%c0_54, %c0_55] : memref<1x128xf32, #tpu.memory_space<vmem>>, vector<1x128xf32>
    %128 = vector.extract_strided_slice %124 {offsets = [0, 0], sizes = [8, 128], strides = [1, 1]} : vector<8x384xf32> to vector<8x128xf32>
    %129 = vector.extract_strided_slice %126 {offsets = [0, 0], sizes = [8, 128], strides = [1, 1]} : vector<8x384xf32> to vector<8x128xf32>
    %130 = arith.addf %128, %129 : vector<8x128xf32>
    %131 = arith.negf %130 : vector<8x128xf32>
    %132 = math.exp %131 : vector<8x128xf32>
    %cst_56 = arith.constant 1.000000e+00 : f32
    %133 = vector.broadcast %cst_56 : f32 to vector<8x128xf32>
    %134 = arith.addf %133, %132 : vector<8x128xf32>
    %135 = arith.divf %133, %134 : vector<8x128xf32>
    %136 = vector.extract_strided_slice %124 {offsets = [0, 128], sizes = [8, 128], strides = [1, 1]} : vector<8x384xf32> to vector<8x128xf32>
    %137 = vector.extract_strided_slice %126 {offsets = [0, 128], sizes = [8, 128], strides = [1, 1]} : vector<8x384xf32> to vector<8x128xf32>
    %138 = arith.addf %136, %137 : vector<8x128xf32>
    %139 = arith.negf %138 : vector<8x128xf32>
    %140 = math.exp %139 : vector<8x128xf32>
    %cst_57 = arith.constant 1.000000e+00 : f32
    %141 = vector.broadcast %cst_57 : f32 to vector<8x128xf32>
    %142 = arith.addf %141, %140 : vector<8x128xf32>
    %143 = arith.divf %141, %142 : vector<8x128xf32>
    %144 = vector.extract_strided_slice %124 {offsets = [0, 256], sizes = [8, 128], strides = [1, 1]} : vector<8x384xf32> to vector<8x128xf32>
    %145 = vector.extract_strided_slice %126 {offsets = [0, 256], sizes = [8, 128], strides = [1, 1]} : vector<8x384xf32> to vector<8x128xf32>
    %146 = vector.broadcast %127 : vector<1x128xf32> to vector<8x128xf32>
    %147 = arith.addf %145, %146 : vector<8x128xf32>
    %148 = arith.mulf %135, %147 : vector<8x128xf32>
    %149 = arith.addf %144, %148 : vector<8x128xf32>
    %150 = math.tanh %149 : vector<8x128xf32>
    %cst_58 = arith.constant 1.000000e+00 : f32
    %151 = vector.broadcast %cst_58 : f32 to vector<8x128xf32>
    %152 = arith.subf %151, %143 : vector<8x128xf32>
    %153 = arith.mulf %152, %150 : vector<8x128xf32>
    %154 = arith.mulf %143, %84 : vector<8x128xf32>
    %155 = arith.addf %153, %154 : vector<8x128xf32>
    %c2_i32 = arith.constant 2 : i32
    %c8_i32_59 = arith.constant 8 : i32
    %156 = arith.muli %c2_i32, %c8_i32_59 : i32
    %157 = tpu.assume_multiple %156, 8 : i32
    %158 = arith.index_cast %157 : i32 to index
    %c0_60 = arith.constant 0 : index
    %159 = vector.load %arg19[%158, %c0_60] : memref<64x384xf32, #tpu.memory_space<vmem>>, vector<8x384xf32>
    %c0_61 = arith.constant 0 : index
    %c0_62 = arith.constant 0 : index
    %160 = vector.load %arg5[%c0_61, %c0_62] : memref<128x384xf32, #tpu.memory_space<vmem>>, vector<128x384xf32>
    %cst_63 = arith.constant dense<0.000000e+00> : vector<8x384xf32>
    %161 = tpu.matmul %119, %160, %cst_63 {dimension_numbers = #tpu.dot_dimension_numbers<[1], [0], [0], [1], [0, 0, 1, 1], [], []>} : vector<8x128xf32>, vector<128x384xf32>, vector<8x384xf32> -> vector<8x384xf32>
    %c0_64 = arith.constant 0 : index
    %c0_65 = arith.constant 0 : index
    %162 = vector.load %arg7[%c0_64, %c0_65] : memref<1x128xf32, #tpu.memory_space<vmem>>, vector<1x128xf32>
    %163 = vector.extract_strided_slice %159 {offsets = [0, 0], sizes = [8, 128], strides = [1, 1]} : vector<8x384xf32> to vector<8x128xf32>
    %164 = vector.extract_strided_slice %161 {offsets = [0, 0], sizes = [8, 128], strides = [1, 1]} : vector<8x384xf32> to vector<8x128xf32>
    %165 = arith.addf %163, %164 : vector<8x128xf32>
    %166 = arith.negf %165 : vector<8x128xf32>
    %167 = math.exp %166 : vector<8x128xf32>
    %cst_66 = arith.constant 1.000000e+00 : f32
    %168 = vector.broadcast %cst_66 : f32 to vector<8x128xf32>
    %169 = arith.addf %168, %167 : vector<8x128xf32>
    %170 = arith.divf %168, %169 : vector<8x128xf32>
    %171 = vector.extract_strided_slice %159 {offsets = [0, 128], sizes = [8, 128], strides = [1, 1]} : vector<8x384xf32> to vector<8x128xf32>
    %172 = vector.extract_strided_slice %161 {offsets = [0, 128], sizes = [8, 128], strides = [1, 1]} : vector<8x384xf32> to vector<8x128xf32>
    %173 = arith.addf %171, %172 : vector<8x128xf32>
    %174 = arith.negf %173 : vector<8x128xf32>
    %175 = math.exp %174 : vector<8x128xf32>
    %cst_67 = arith.constant 1.000000e+00 : f32
    %176 = vector.broadcast %cst_67 : f32 to vector<8x128xf32>
    %177 = arith.addf %176, %175 : vector<8x128xf32>
    %178 = arith.divf %176, %177 : vector<8x128xf32>
    %179 = vector.extract_strided_slice %159 {offsets = [0, 256], sizes = [8, 128], strides = [1, 1]} : vector<8x384xf32> to vector<8x128xf32>
    %180 = vector.extract_strided_slice %161 {offsets = [0, 256], sizes = [8, 128], strides = [1, 1]} : vector<8x384xf32> to vector<8x128xf32>
    %181 = vector.broadcast %162 : vector<1x128xf32> to vector<8x128xf32>
    %182 = arith.addf %180, %181 : vector<8x128xf32>
    %183 = arith.mulf %170, %182 : vector<8x128xf32>
    %184 = arith.addf %179, %183 : vector<8x128xf32>
    %185 = math.tanh %184 : vector<8x128xf32>
    %cst_68 = arith.constant 1.000000e+00 : f32
    %186 = vector.broadcast %cst_68 : f32 to vector<8x128xf32>
    %187 = arith.subf %186, %178 : vector<8x128xf32>
    %188 = arith.mulf %187, %185 : vector<8x128xf32>
    %189 = arith.mulf %178, %119 : vector<8x128xf32>
    %190 = arith.addf %188, %189 : vector<8x128xf32>
    %c0_69 = arith.constant 0 : index
    %c0_70 = arith.constant 0 : index
    %191 = vector.load %arg8[%c0_69, %c0_70] : memref<128x384xf32, #tpu.memory_space<vmem>>, vector<128x384xf32>
    %cst_71 = arith.constant dense<0.000000e+00> : vector<8x384xf32>
    %192 = tpu.matmul %190, %191, %cst_71 {dimension_numbers = #tpu.dot_dimension_numbers<[1], [0], [0], [1], [0, 0, 1, 1], [], []>} : vector<8x128xf32>, vector<128x384xf32>, vector<8x384xf32> -> vector<8x384xf32>
    %c0_72 = arith.constant 0 : index
    %c0_73 = arith.constant 0 : index
    %193 = vector.load %arg10[%c0_72, %c0_73] : memref<1x384xf32, #tpu.memory_space<vmem>>, vector<1x384xf32>
    %194 = vector.broadcast %193 : vector<1x384xf32> to vector<8x384xf32>
    %195 = arith.addf %192, %194 : vector<8x384xf32>
    %c0_74 = arith.constant 0 : index
    %c0_75 = arith.constant 0 : index
    %196 = vector.load %arg9[%c0_74, %c0_75] : memref<128x384xf32, #tpu.memory_space<vmem>>, vector<128x384xf32>
    %cst_76 = arith.constant dense<0.000000e+00> : vector<8x384xf32>
    %197 = tpu.matmul %155, %196, %cst_76 {dimension_numbers = #tpu.dot_dimension_numbers<[1], [0], [0], [1], [0, 0, 1, 1], [], []>} : vector<8x128xf32>, vector<128x384xf32>, vector<8x384xf32> -> vector<8x384xf32>
    %c0_77 = arith.constant 0 : index
    %c0_78 = arith.constant 0 : index
    %198 = vector.load %arg11[%c0_77, %c0_78] : memref<1x128xf32, #tpu.memory_space<vmem>>, vector<1x128xf32>
    %199 = vector.extract_strided_slice %195 {offsets = [0, 0], sizes = [8, 128], strides = [1, 1]} : vector<8x384xf32> to vector<8x128xf32>
    %200 = vector.extract_strided_slice %197 {offsets = [0, 0], sizes = [8, 128], strides = [1, 1]} : vector<8x384xf32> to vector<8x128xf32>
    %201 = arith.addf %199, %200 : vector<8x128xf32>
    %202 = arith.negf %201 : vector<8x128xf32>
    %203 = math.exp %202 : vector<8x128xf32>
    %cst_79 = arith.constant 1.000000e+00 : f32
    %204 = vector.broadcast %cst_79 : f32 to vector<8x128xf32>
    %205 = arith.addf %204, %203 : vector<8x128xf32>
    %206 = arith.divf %204, %205 : vector<8x128xf32>
    %207 = vector.extract_strided_slice %195 {offsets = [0, 128], sizes = [8, 128], strides = [1, 1]} : vector<8x384xf32> to vector<8x128xf32>
    %208 = vector.extract_strided_slice %197 {offsets = [0, 128], sizes = [8, 128], strides = [1, 1]} : vector<8x384xf32> to vector<8x128xf32>
    %209 = arith.addf %207, %208 : vector<8x128xf32>
    %210 = arith.negf %209 : vector<8x128xf32>
    %211 = math.exp %210 : vector<8x128xf32>
    %cst_80 = arith.constant 1.000000e+00 : f32
    %212 = vector.broadcast %cst_80 : f32 to vector<8x128xf32>
    %213 = arith.addf %212, %211 : vector<8x128xf32>
    %214 = arith.divf %212, %213 : vector<8x128xf32>
    %215 = vector.extract_strided_slice %195 {offsets = [0, 256], sizes = [8, 128], strides = [1, 1]} : vector<8x384xf32> to vector<8x128xf32>
    %216 = vector.extract_strided_slice %197 {offsets = [0, 256], sizes = [8, 128], strides = [1, 1]} : vector<8x384xf32> to vector<8x128xf32>
    %217 = vector.broadcast %198 : vector<1x128xf32> to vector<8x128xf32>
    %218 = arith.addf %216, %217 : vector<8x128xf32>
    %219 = arith.mulf %206, %218 : vector<8x128xf32>
    %220 = arith.addf %215, %219 : vector<8x128xf32>
    %221 = math.tanh %220 : vector<8x128xf32>
    %cst_81 = arith.constant 1.000000e+00 : f32
    %222 = vector.broadcast %cst_81 : f32 to vector<8x128xf32>
    %223 = arith.subf %222, %214 : vector<8x128xf32>
    %224 = arith.mulf %223, %221 : vector<8x128xf32>
    %225 = arith.mulf %214, %155 : vector<8x128xf32>
    %226 = arith.addf %224, %225 : vector<8x128xf32>
    %c3_i32 = arith.constant 3 : i32
    %c8_i32_82 = arith.constant 8 : i32
    %227 = arith.muli %c3_i32, %c8_i32_82 : i32
    %228 = tpu.assume_multiple %227, 8 : i32
    %229 = arith.index_cast %228 : i32 to index
    %c0_83 = arith.constant 0 : index
    %230 = vector.load %arg19[%229, %c0_83] : memref<64x384xf32, #tpu.memory_space<vmem>>, vector<8x384xf32>
    %c0_84 = arith.constant 0 : index
    %c0_85 = arith.constant 0 : index
    %231 = vector.load %arg5[%c0_84, %c0_85] : memref<128x384xf32, #tpu.memory_space<vmem>>, vector<128x384xf32>
    %cst_86 = arith.constant dense<0.000000e+00> : vector<8x384xf32>
    %232 = tpu.matmul %190, %231, %cst_86 {dimension_numbers = #tpu.dot_dimension_numbers<[1], [0], [0], [1], [0, 0, 1, 1], [], []>} : vector<8x128xf32>, vector<128x384xf32>, vector<8x384xf32> -> vector<8x384xf32>
    %c0_87 = arith.constant 0 : index
    %c0_88 = arith.constant 0 : index
    %233 = vector.load %arg7[%c0_87, %c0_88] : memref<1x128xf32, #tpu.memory_space<vmem>>, vector<1x128xf32>
    %234 = vector.extract_strided_slice %230 {offsets = [0, 0], sizes = [8, 128], strides = [1, 1]} : vector<8x384xf32> to vector<8x128xf32>
    %235 = vector.extract_strided_slice %232 {offsets = [0, 0], sizes = [8, 128], strides = [1, 1]} : vector<8x384xf32> to vector<8x128xf32>
    %236 = arith.addf %234, %235 : vector<8x128xf32>
    %237 = arith.negf %236 : vector<8x128xf32>
    %238 = math.exp %237 : vector<8x128xf32>
    %cst_89 = arith.constant 1.000000e+00 : f32
    %239 = vector.broadcast %cst_89 : f32 to vector<8x128xf32>
    %240 = arith.addf %239, %238 : vector<8x128xf32>
    %241 = arith.divf %239, %240 : vector<8x128xf32>
    %242 = vector.extract_strided_slice %230 {offsets = [0, 128], sizes = [8, 128], strides = [1, 1]} : vector<8x384xf32> to vector<8x128xf32>
    %243 = vector.extract_strided_slice %232 {offsets = [0, 128], sizes = [8, 128], strides = [1, 1]} : vector<8x384xf32> to vector<8x128xf32>
    %244 = arith.addf %242, %243 : vector<8x128xf32>
    %245 = arith.negf %244 : vector<8x128xf32>
    %246 = math.exp %245 : vector<8x128xf32>
    %cst_90 = arith.constant 1.000000e+00 : f32
    %247 = vector.broadcast %cst_90 : f32 to vector<8x128xf32>
    %248 = arith.addf %247, %246 : vector<8x128xf32>
    %249 = arith.divf %247, %248 : vector<8x128xf32>
    %250 = vector.extract_strided_slice %230 {offsets = [0, 256], sizes = [8, 128], strides = [1, 1]} : vector<8x384xf32> to vector<8x128xf32>
    %251 = vector.extract_strided_slice %232 {offsets = [0, 256], sizes = [8, 128], strides = [1, 1]} : vector<8x384xf32> to vector<8x128xf32>
    %252 = vector.broadcast %233 : vector<1x128xf32> to vector<8x128xf32>
    %253 = arith.addf %251, %252 : vector<8x128xf32>
    %254 = arith.mulf %241, %253 : vector<8x128xf32>
    %255 = arith.addf %250, %254 : vector<8x128xf32>
    %256 = math.tanh %255 : vector<8x128xf32>
    %cst_91 = arith.constant 1.000000e+00 : f32
    %257 = vector.broadcast %cst_91 : f32 to vector<8x128xf32>
    %258 = arith.subf %257, %249 : vector<8x128xf32>
    %259 = arith.mulf %258, %256 : vector<8x128xf32>
    %260 = arith.mulf %249, %190 : vector<8x128xf32>
    %261 = arith.addf %259, %260 : vector<8x128xf32>
    %c0_92 = arith.constant 0 : index
    %c0_93 = arith.constant 0 : index
    %262 = vector.load %arg8[%c0_92, %c0_93] : memref<128x384xf32, #tpu.memory_space<vmem>>, vector<128x384xf32>
    %cst_94 = arith.constant dense<0.000000e+00> : vector<8x384xf32>
    %263 = tpu.matmul %261, %262, %cst_94 {dimension_numbers = #tpu.dot_dimension_numbers<[1], [0], [0], [1], [0, 0, 1, 1], [], []>} : vector<8x128xf32>, vector<128x384xf32>, vector<8x384xf32> -> vector<8x384xf32>
    %c0_95 = arith.constant 0 : index
    %c0_96 = arith.constant 0 : index
    %264 = vector.load %arg10[%c0_95, %c0_96] : memref<1x384xf32, #tpu.memory_space<vmem>>, vector<1x384xf32>
    %265 = vector.broadcast %264 : vector<1x384xf32> to vector<8x384xf32>
    %266 = arith.addf %263, %265 : vector<8x384xf32>
    %c0_97 = arith.constant 0 : index
    %c0_98 = arith.constant 0 : index
    %267 = vector.load %arg9[%c0_97, %c0_98] : memref<128x384xf32, #tpu.memory_space<vmem>>, vector<128x384xf32>
    %cst_99 = arith.constant dense<0.000000e+00> : vector<8x384xf32>
    %268 = tpu.matmul %226, %267, %cst_99 {dimension_numbers = #tpu.dot_dimension_numbers<[1], [0], [0], [1], [0, 0, 1, 1], [], []>} : vector<8x128xf32>, vector<128x384xf32>, vector<8x384xf32> -> vector<8x384xf32>
    %c0_100 = arith.constant 0 : index
    %c0_101 = arith.constant 0 : index
    %269 = vector.load %arg11[%c0_100, %c0_101] : memref<1x128xf32, #tpu.memory_space<vmem>>, vector<1x128xf32>
    %270 = vector.extract_strided_slice %266 {offsets = [0, 0], sizes = [8, 128], strides = [1, 1]} : vector<8x384xf32> to vector<8x128xf32>
    %271 = vector.extract_strided_slice %268 {offsets = [0, 0], sizes = [8, 128], strides = [1, 1]} : vector<8x384xf32> to vector<8x128xf32>
    %272 = arith.addf %270, %271 : vector<8x128xf32>
    %273 = arith.negf %272 : vector<8x128xf32>
    %274 = math.exp %273 : vector<8x128xf32>
    %cst_102 = arith.constant 1.000000e+00 : f32
    %275 = vector.broadcast %cst_102 : f32 to vector<8x128xf32>
    %276 = arith.addf %275, %274 : vector<8x128xf32>
    %277 = arith.divf %275, %276 : vector<8x128xf32>
    %278 = vector.extract_strided_slice %266 {offsets = [0, 128], sizes = [8, 128], strides = [1, 1]} : vector<8x384xf32> to vector<8x128xf32>
    %279 = vector.extract_strided_slice %268 {offsets = [0, 128], sizes = [8, 128], strides = [1, 1]} : vector<8x384xf32> to vector<8x128xf32>
    %280 = arith.addf %278, %279 : vector<8x128xf32>
    %281 = arith.negf %280 : vector<8x128xf32>
    %282 = math.exp %281 : vector<8x128xf32>
    %cst_103 = arith.constant 1.000000e+00 : f32
    %283 = vector.broadcast %cst_103 : f32 to vector<8x128xf32>
    %284 = arith.addf %283, %282 : vector<8x128xf32>
    %285 = arith.divf %283, %284 : vector<8x128xf32>
    %286 = vector.extract_strided_slice %266 {offsets = [0, 256], sizes = [8, 128], strides = [1, 1]} : vector<8x384xf32> to vector<8x128xf32>
    %287 = vector.extract_strided_slice %268 {offsets = [0, 256], sizes = [8, 128], strides = [1, 1]} : vector<8x384xf32> to vector<8x128xf32>
    %288 = vector.broadcast %269 : vector<1x128xf32> to vector<8x128xf32>
    %289 = arith.addf %287, %288 : vector<8x128xf32>
    %290 = arith.mulf %277, %289 : vector<8x128xf32>
    %291 = arith.addf %286, %290 : vector<8x128xf32>
    %292 = math.tanh %291 : vector<8x128xf32>
    %cst_104 = arith.constant 1.000000e+00 : f32
    %293 = vector.broadcast %cst_104 : f32 to vector<8x128xf32>
    %294 = arith.subf %293, %285 : vector<8x128xf32>
    %295 = arith.mulf %294, %292 : vector<8x128xf32>
    %296 = arith.mulf %285, %226 : vector<8x128xf32>
    %297 = arith.addf %295, %296 : vector<8x128xf32>
    %c4_i32 = arith.constant 4 : i32
    %c8_i32_105 = arith.constant 8 : i32
    %298 = arith.muli %c4_i32, %c8_i32_105 : i32
    %299 = tpu.assume_multiple %298, 8 : i32
    %300 = arith.index_cast %299 : i32 to index
    %c0_106 = arith.constant 0 : index
    %301 = vector.load %arg19[%300, %c0_106] : memref<64x384xf32, #tpu.memory_space<vmem>>, vector<8x384xf32>
    %c0_107 = arith.constant 0 : index
    %c0_108 = arith.constant 0 : index
    %302 = vector.load %arg5[%c0_107, %c0_108] : memref<128x384xf32, #tpu.memory_space<vmem>>, vector<128x384xf32>
    %cst_109 = arith.constant dense<0.000000e+00> : vector<8x384xf32>
    %303 = tpu.matmul %261, %302, %cst_109 {dimension_numbers = #tpu.dot_dimension_numbers<[1], [0], [0], [1], [0, 0, 1, 1], [], []>} : vector<8x128xf32>, vector<128x384xf32>, vector<8x384xf32> -> vector<8x384xf32>
    %c0_110 = arith.constant 0 : index
    %c0_111 = arith.constant 0 : index
    %304 = vector.load %arg7[%c0_110, %c0_111] : memref<1x128xf32, #tpu.memory_space<vmem>>, vector<1x128xf32>
    %305 = vector.extract_strided_slice %301 {offsets = [0, 0], sizes = [8, 128], strides = [1, 1]} : vector<8x384xf32> to vector<8x128xf32>
    %306 = vector.extract_strided_slice %303 {offsets = [0, 0], sizes = [8, 128], strides = [1, 1]} : vector<8x384xf32> to vector<8x128xf32>
    %307 = arith.addf %305, %306 : vector<8x128xf32>
    %308 = arith.negf %307 : vector<8x128xf32>
    %309 = math.exp %308 : vector<8x128xf32>
    %cst_112 = arith.constant 1.000000e+00 : f32
    %310 = vector.broadcast %cst_112 : f32 to vector<8x128xf32>
    %311 = arith.addf %310, %309 : vector<8x128xf32>
    %312 = arith.divf %310, %311 : vector<8x128xf32>
    %313 = vector.extract_strided_slice %301 {offsets = [0, 128], sizes = [8, 128], strides = [1, 1]} : vector<8x384xf32> to vector<8x128xf32>
    %314 = vector.extract_strided_slice %303 {offsets = [0, 128], sizes = [8, 128], strides = [1, 1]} : vector<8x384xf32> to vector<8x128xf32>
    %315 = arith.addf %313, %314 : vector<8x128xf32>
    %316 = arith.negf %315 : vector<8x128xf32>
    %317 = math.exp %316 : vector<8x128xf32>
    %cst_113 = arith.constant 1.000000e+00 : f32
    %318 = vector.broadcast %cst_113 : f32 to vector<8x128xf32>
    %319 = arith.addf %318, %317 : vector<8x128xf32>
    %320 = arith.divf %318, %319 : vector<8x128xf32>
    %321 = vector.extract_strided_slice %301 {offsets = [0, 256], sizes = [8, 128], strides = [1, 1]} : vector<8x384xf32> to vector<8x128xf32>
    %322 = vector.extract_strided_slice %303 {offsets = [0, 256], sizes = [8, 128], strides = [1, 1]} : vector<8x384xf32> to vector<8x128xf32>
    %323 = vector.broadcast %304 : vector<1x128xf32> to vector<8x128xf32>
    %324 = arith.addf %322, %323 : vector<8x128xf32>
    %325 = arith.mulf %312, %324 : vector<8x128xf32>
    %326 = arith.addf %321, %325 : vector<8x128xf32>
    %327 = math.tanh %326 : vector<8x128xf32>
    %cst_114 = arith.constant 1.000000e+00 : f32
    %328 = vector.broadcast %cst_114 : f32 to vector<8x128xf32>
    %329 = arith.subf %328, %320 : vector<8x128xf32>
    %330 = arith.mulf %329, %327 : vector<8x128xf32>
    %331 = arith.mulf %320, %261 : vector<8x128xf32>
    %332 = arith.addf %330, %331 : vector<8x128xf32>
    %c0_115 = arith.constant 0 : index
    %c0_116 = arith.constant 0 : index
    %333 = vector.load %arg8[%c0_115, %c0_116] : memref<128x384xf32, #tpu.memory_space<vmem>>, vector<128x384xf32>
    %cst_117 = arith.constant dense<0.000000e+00> : vector<8x384xf32>
    %334 = tpu.matmul %332, %333, %cst_117 {dimension_numbers = #tpu.dot_dimension_numbers<[1], [0], [0], [1], [0, 0, 1, 1], [], []>} : vector<8x128xf32>, vector<128x384xf32>, vector<8x384xf32> -> vector<8x384xf32>
    %c0_118 = arith.constant 0 : index
    %c0_119 = arith.constant 0 : index
    %335 = vector.load %arg10[%c0_118, %c0_119] : memref<1x384xf32, #tpu.memory_space<vmem>>, vector<1x384xf32>
    %336 = vector.broadcast %335 : vector<1x384xf32> to vector<8x384xf32>
    %337 = arith.addf %334, %336 : vector<8x384xf32>
    %c0_120 = arith.constant 0 : index
    %c0_121 = arith.constant 0 : index
    %338 = vector.load %arg9[%c0_120, %c0_121] : memref<128x384xf32, #tpu.memory_space<vmem>>, vector<128x384xf32>
    %cst_122 = arith.constant dense<0.000000e+00> : vector<8x384xf32>
    %339 = tpu.matmul %297, %338, %cst_122 {dimension_numbers = #tpu.dot_dimension_numbers<[1], [0], [0], [1], [0, 0, 1, 1], [], []>} : vector<8x128xf32>, vector<128x384xf32>, vector<8x384xf32> -> vector<8x384xf32>
    %c0_123 = arith.constant 0 : index
    %c0_124 = arith.constant 0 : index
    %340 = vector.load %arg11[%c0_123, %c0_124] : memref<1x128xf32, #tpu.memory_space<vmem>>, vector<1x128xf32>
    %341 = vector.extract_strided_slice %337 {offsets = [0, 0], sizes = [8, 128], strides = [1, 1]} : vector<8x384xf32> to vector<8x128xf32>
    %342 = vector.extract_strided_slice %339 {offsets = [0, 0], sizes = [8, 128], strides = [1, 1]} : vector<8x384xf32> to vector<8x128xf32>
    %343 = arith.addf %341, %342 : vector<8x128xf32>
    %344 = arith.negf %343 : vector<8x128xf32>
    %345 = math.exp %344 : vector<8x128xf32>
    %cst_125 = arith.constant 1.000000e+00 : f32
    %346 = vector.broadcast %cst_125 : f32 to vector<8x128xf32>
    %347 = arith.addf %346, %345 : vector<8x128xf32>
    %348 = arith.divf %346, %347 : vector<8x128xf32>
    %349 = vector.extract_strided_slice %337 {offsets = [0, 128], sizes = [8, 128], strides = [1, 1]} : vector<8x384xf32> to vector<8x128xf32>
    %350 = vector.extract_strided_slice %339 {offsets = [0, 128], sizes = [8, 128], strides = [1, 1]} : vector<8x384xf32> to vector<8x128xf32>
    %351 = arith.addf %349, %350 : vector<8x128xf32>
    %352 = arith.negf %351 : vector<8x128xf32>
    %353 = math.exp %352 : vector<8x128xf32>
    %cst_126 = arith.constant 1.000000e+00 : f32
    %354 = vector.broadcast %cst_126 : f32 to vector<8x128xf32>
    %355 = arith.addf %354, %353 : vector<8x128xf32>
    %356 = arith.divf %354, %355 : vector<8x128xf32>
    %357 = vector.extract_strided_slice %337 {offsets = [0, 256], sizes = [8, 128], strides = [1, 1]} : vector<8x384xf32> to vector<8x128xf32>
    %358 = vector.extract_strided_slice %339 {offsets = [0, 256], sizes = [8, 128], strides = [1, 1]} : vector<8x384xf32> to vector<8x128xf32>
    %359 = vector.broadcast %340 : vector<1x128xf32> to vector<8x128xf32>
    %360 = arith.addf %358, %359 : vector<8x128xf32>
    %361 = arith.mulf %348, %360 : vector<8x128xf32>
    %362 = arith.addf %357, %361 : vector<8x128xf32>
    %363 = math.tanh %362 : vector<8x128xf32>
    %cst_127 = arith.constant 1.000000e+00 : f32
    %364 = vector.broadcast %cst_127 : f32 to vector<8x128xf32>
    %365 = arith.subf %364, %356 : vector<8x128xf32>
    %366 = arith.mulf %365, %363 : vector<8x128xf32>
    %367 = arith.mulf %356, %297 : vector<8x128xf32>
    %368 = arith.addf %366, %367 : vector<8x128xf32>
    %c5_i32 = arith.constant 5 : i32
    %c8_i32_128 = arith.constant 8 : i32
    %369 = arith.muli %c5_i32, %c8_i32_128 : i32
    %370 = tpu.assume_multiple %369, 8 : i32
    %371 = arith.index_cast %370 : i32 to index
    %c0_129 = arith.constant 0 : index
    %372 = vector.load %arg19[%371, %c0_129] : memref<64x384xf32, #tpu.memory_space<vmem>>, vector<8x384xf32>
    %c0_130 = arith.constant 0 : index
    %c0_131 = arith.constant 0 : index
    %373 = vector.load %arg5[%c0_130, %c0_131] : memref<128x384xf32, #tpu.memory_space<vmem>>, vector<128x384xf32>
    %cst_132 = arith.constant dense<0.000000e+00> : vector<8x384xf32>
    %374 = tpu.matmul %332, %373, %cst_132 {dimension_numbers = #tpu.dot_dimension_numbers<[1], [0], [0], [1], [0, 0, 1, 1], [], []>} : vector<8x128xf32>, vector<128x384xf32>, vector<8x384xf32> -> vector<8x384xf32>
    %c0_133 = arith.constant 0 : index
    %c0_134 = arith.constant 0 : index
    %375 = vector.load %arg7[%c0_133, %c0_134] : memref<1x128xf32, #tpu.memory_space<vmem>>, vector<1x128xf32>
    %376 = vector.extract_strided_slice %372 {offsets = [0, 0], sizes = [8, 128], strides = [1, 1]} : vector<8x384xf32> to vector<8x128xf32>
    %377 = vector.extract_strided_slice %374 {offsets = [0, 0], sizes = [8, 128], strides = [1, 1]} : vector<8x384xf32> to vector<8x128xf32>
    %378 = arith.addf %376, %377 : vector<8x128xf32>
    %379 = arith.negf %378 : vector<8x128xf32>
    %380 = math.exp %379 : vector<8x128xf32>
    %cst_135 = arith.constant 1.000000e+00 : f32
    %381 = vector.broadcast %cst_135 : f32 to vector<8x128xf32>
    %382 = arith.addf %381, %380 : vector<8x128xf32>
    %383 = arith.divf %381, %382 : vector<8x128xf32>
    %384 = vector.extract_strided_slice %372 {offsets = [0, 128], sizes = [8, 128], strides = [1, 1]} : vector<8x384xf32> to vector<8x128xf32>
    %385 = vector.extract_strided_slice %374 {offsets = [0, 128], sizes = [8, 128], strides = [1, 1]} : vector<8x384xf32> to vector<8x128xf32>
    %386 = arith.addf %384, %385 : vector<8x128xf32>
    %387 = arith.negf %386 : vector<8x128xf32>
    %388 = math.exp %387 : vector<8x128xf32>
    %cst_136 = arith.constant 1.000000e+00 : f32
    %389 = vector.broadcast %cst_136 : f32 to vector<8x128xf32>
    %390 = arith.addf %389, %388 : vector<8x128xf32>
    %391 = arith.divf %389, %390 : vector<8x128xf32>
    %392 = vector.extract_strided_slice %372 {offsets = [0, 256], sizes = [8, 128], strides = [1, 1]} : vector<8x384xf32> to vector<8x128xf32>
    %393 = vector.extract_strided_slice %374 {offsets = [0, 256], sizes = [8, 128], strides = [1, 1]} : vector<8x384xf32> to vector<8x128xf32>
    %394 = vector.broadcast %375 : vector<1x128xf32> to vector<8x128xf32>
    %395 = arith.addf %393, %394 : vector<8x128xf32>
    %396 = arith.mulf %383, %395 : vector<8x128xf32>
    %397 = arith.addf %392, %396 : vector<8x128xf32>
    %398 = math.tanh %397 : vector<8x128xf32>
    %cst_137 = arith.constant 1.000000e+00 : f32
    %399 = vector.broadcast %cst_137 : f32 to vector<8x128xf32>
    %400 = arith.subf %399, %391 : vector<8x128xf32>
    %401 = arith.mulf %400, %398 : vector<8x128xf32>
    %402 = arith.mulf %391, %332 : vector<8x128xf32>
    %403 = arith.addf %401, %402 : vector<8x128xf32>
    %c0_138 = arith.constant 0 : index
    %c0_139 = arith.constant 0 : index
    %404 = vector.load %arg8[%c0_138, %c0_139] : memref<128x384xf32, #tpu.memory_space<vmem>>, vector<128x384xf32>
    %cst_140 = arith.constant dense<0.000000e+00> : vector<8x384xf32>
    %405 = tpu.matmul %403, %404, %cst_140 {dimension_numbers = #tpu.dot_dimension_numbers<[1], [0], [0], [1], [0, 0, 1, 1], [], []>} : vector<8x128xf32>, vector<128x384xf32>, vector<8x384xf32> -> vector<8x384xf32>
    %c0_141 = arith.constant 0 : index
    %c0_142 = arith.constant 0 : index
    %406 = vector.load %arg10[%c0_141, %c0_142] : memref<1x384xf32, #tpu.memory_space<vmem>>, vector<1x384xf32>
    %407 = vector.broadcast %406 : vector<1x384xf32> to vector<8x384xf32>
    %408 = arith.addf %405, %407 : vector<8x384xf32>
    %c0_143 = arith.constant 0 : index
    %c0_144 = arith.constant 0 : index
    %409 = vector.load %arg9[%c0_143, %c0_144] : memref<128x384xf32, #tpu.memory_space<vmem>>, vector<128x384xf32>
    %cst_145 = arith.constant dense<0.000000e+00> : vector<8x384xf32>
    %410 = tpu.matmul %368, %409, %cst_145 {dimension_numbers = #tpu.dot_dimension_numbers<[1], [0], [0], [1], [0, 0, 1, 1], [], []>} : vector<8x128xf32>, vector<128x384xf32>, vector<8x384xf32> -> vector<8x384xf32>
    %c0_146 = arith.constant 0 : index
    %c0_147 = arith.constant 0 : index
    %411 = vector.load %arg11[%c0_146, %c0_147] : memref<1x128xf32, #tpu.memory_space<vmem>>, vector<1x128xf32>
    %412 = vector.extract_strided_slice %408 {offsets = [0, 0], sizes = [8, 128], strides = [1, 1]} : vector<8x384xf32> to vector<8x128xf32>
    %413 = vector.extract_strided_slice %410 {offsets = [0, 0], sizes = [8, 128], strides = [1, 1]} : vector<8x384xf32> to vector<8x128xf32>
    %414 = arith.addf %412, %413 : vector<8x128xf32>
    %415 = arith.negf %414 : vector<8x128xf32>
    %416 = math.exp %415 : vector<8x128xf32>
    %cst_148 = arith.constant 1.000000e+00 : f32
    %417 = vector.broadcast %cst_148 : f32 to vector<8x128xf32>
    %418 = arith.addf %417, %416 : vector<8x128xf32>
    %419 = arith.divf %417, %418 : vector<8x128xf32>
    %420 = vector.extract_strided_slice %408 {offsets = [0, 128], sizes = [8, 128], strides = [1, 1]} : vector<8x384xf32> to vector<8x128xf32>
    %421 = vector.extract_strided_slice %410 {offsets = [0, 128], sizes = [8, 128], strides = [1, 1]} : vector<8x384xf32> to vector<8x128xf32>
    %422 = arith.addf %420, %421 : vector<8x128xf32>
    %423 = arith.negf %422 : vector<8x128xf32>
    %424 = math.exp %423 : vector<8x128xf32>
    %cst_149 = arith.constant 1.000000e+00 : f32
    %425 = vector.broadcast %cst_149 : f32 to vector<8x128xf32>
    %426 = arith.addf %425, %424 : vector<8x128xf32>
    %427 = arith.divf %425, %426 : vector<8x128xf32>
    %428 = vector.extract_strided_slice %408 {offsets = [0, 256], sizes = [8, 128], strides = [1, 1]} : vector<8x384xf32> to vector<8x128xf32>
    %429 = vector.extract_strided_slice %410 {offsets = [0, 256], sizes = [8, 128], strides = [1, 1]} : vector<8x384xf32> to vector<8x128xf32>
    %430 = vector.broadcast %411 : vector<1x128xf32> to vector<8x128xf32>
    %431 = arith.addf %429, %430 : vector<8x128xf32>
    %432 = arith.mulf %419, %431 : vector<8x128xf32>
    %433 = arith.addf %428, %432 : vector<8x128xf32>
    %434 = math.tanh %433 : vector<8x128xf32>
    %cst_150 = arith.constant 1.000000e+00 : f32
    %435 = vector.broadcast %cst_150 : f32 to vector<8x128xf32>
    %436 = arith.subf %435, %427 : vector<8x128xf32>
    %437 = arith.mulf %436, %434 : vector<8x128xf32>
    %438 = arith.mulf %427, %368 : vector<8x128xf32>
    %439 = arith.addf %437, %438 : vector<8x128xf32>
    %c6_i32 = arith.constant 6 : i32
    %c8_i32_151 = arith.constant 8 : i32
    %440 = arith.muli %c6_i32, %c8_i32_151 : i32
    %441 = tpu.assume_multiple %440, 8 : i32
    %442 = arith.index_cast %441 : i32 to index
    %c0_152 = arith.constant 0 : index
    %443 = vector.load %arg19[%442, %c0_152] : memref<64x384xf32, #tpu.memory_space<vmem>>, vector<8x384xf32>
    %c0_153 = arith.constant 0 : index
    %c0_154 = arith.constant 0 : index
    %444 = vector.load %arg5[%c0_153, %c0_154] : memref<128x384xf32, #tpu.memory_space<vmem>>, vector<128x384xf32>
    %cst_155 = arith.constant dense<0.000000e+00> : vector<8x384xf32>
    %445 = tpu.matmul %403, %444, %cst_155 {dimension_numbers = #tpu.dot_dimension_numbers<[1], [0], [0], [1], [0, 0, 1, 1], [], []>} : vector<8x128xf32>, vector<128x384xf32>, vector<8x384xf32> -> vector<8x384xf32>
    %c0_156 = arith.constant 0 : index
    %c0_157 = arith.constant 0 : index
    %446 = vector.load %arg7[%c0_156, %c0_157] : memref<1x128xf32, #tpu.memory_space<vmem>>, vector<1x128xf32>
    %447 = vector.extract_strided_slice %443 {offsets = [0, 0], sizes = [8, 128], strides = [1, 1]} : vector<8x384xf32> to vector<8x128xf32>
    %448 = vector.extract_strided_slice %445 {offsets = [0, 0], sizes = [8, 128], strides = [1, 1]} : vector<8x384xf32> to vector<8x128xf32>
    %449 = arith.addf %447, %448 : vector<8x128xf32>
    %450 = arith.negf %449 : vector<8x128xf32>
    %451 = math.exp %450 : vector<8x128xf32>
    %cst_158 = arith.constant 1.000000e+00 : f32
    %452 = vector.broadcast %cst_158 : f32 to vector<8x128xf32>
    %453 = arith.addf %452, %451 : vector<8x128xf32>
    %454 = arith.divf %452, %453 : vector<8x128xf32>
    %455 = vector.extract_strided_slice %443 {offsets = [0, 128], sizes = [8, 128], strides = [1, 1]} : vector<8x384xf32> to vector<8x128xf32>
    %456 = vector.extract_strided_slice %445 {offsets = [0, 128], sizes = [8, 128], strides = [1, 1]} : vector<8x384xf32> to vector<8x128xf32>
    %457 = arith.addf %455, %456 : vector<8x128xf32>
    %458 = arith.negf %457 : vector<8x128xf32>
    %459 = math.exp %458 : vector<8x128xf32>
    %cst_159 = arith.constant 1.000000e+00 : f32
    %460 = vector.broadcast %cst_159 : f32 to vector<8x128xf32>
    %461 = arith.addf %460, %459 : vector<8x128xf32>
    %462 = arith.divf %460, %461 : vector<8x128xf32>
    %463 = vector.extract_strided_slice %443 {offsets = [0, 256], sizes = [8, 128], strides = [1, 1]} : vector<8x384xf32> to vector<8x128xf32>
    %464 = vector.extract_strided_slice %445 {offsets = [0, 256], sizes = [8, 128], strides = [1, 1]} : vector<8x384xf32> to vector<8x128xf32>
    %465 = vector.broadcast %446 : vector<1x128xf32> to vector<8x128xf32>
    %466 = arith.addf %464, %465 : vector<8x128xf32>
    %467 = arith.mulf %454, %466 : vector<8x128xf32>
    %468 = arith.addf %463, %467 : vector<8x128xf32>
    %469 = math.tanh %468 : vector<8x128xf32>
    %cst_160 = arith.constant 1.000000e+00 : f32
    %470 = vector.broadcast %cst_160 : f32 to vector<8x128xf32>
    %471 = arith.subf %470, %462 : vector<8x128xf32>
    %472 = arith.mulf %471, %469 : vector<8x128xf32>
    %473 = arith.mulf %462, %403 : vector<8x128xf32>
    %474 = arith.addf %472, %473 : vector<8x128xf32>
    %c0_161 = arith.constant 0 : index
    %c0_162 = arith.constant 0 : index
    %475 = vector.load %arg8[%c0_161, %c0_162] : memref<128x384xf32, #tpu.memory_space<vmem>>, vector<128x384xf32>
    %cst_163 = arith.constant dense<0.000000e+00> : vector<8x384xf32>
    %476 = tpu.matmul %474, %475, %cst_163 {dimension_numbers = #tpu.dot_dimension_numbers<[1], [0], [0], [1], [0, 0, 1, 1], [], []>} : vector<8x128xf32>, vector<128x384xf32>, vector<8x384xf32> -> vector<8x384xf32>
    %c0_164 = arith.constant 0 : index
    %c0_165 = arith.constant 0 : index
    %477 = vector.load %arg10[%c0_164, %c0_165] : memref<1x384xf32, #tpu.memory_space<vmem>>, vector<1x384xf32>
    %478 = vector.broadcast %477 : vector<1x384xf32> to vector<8x384xf32>
    %479 = arith.addf %476, %478 : vector<8x384xf32>
    %c0_166 = arith.constant 0 : index
    %c0_167 = arith.constant 0 : index
    %480 = vector.load %arg9[%c0_166, %c0_167] : memref<128x384xf32, #tpu.memory_space<vmem>>, vector<128x384xf32>
    %cst_168 = arith.constant dense<0.000000e+00> : vector<8x384xf32>
    %481 = tpu.matmul %439, %480, %cst_168 {dimension_numbers = #tpu.dot_dimension_numbers<[1], [0], [0], [1], [0, 0, 1, 1], [], []>} : vector<8x128xf32>, vector<128x384xf32>, vector<8x384xf32> -> vector<8x384xf32>
    %c0_169 = arith.constant 0 : index
    %c0_170 = arith.constant 0 : index
    %482 = vector.load %arg11[%c0_169, %c0_170] : memref<1x128xf32, #tpu.memory_space<vmem>>, vector<1x128xf32>
    %483 = vector.extract_strided_slice %479 {offsets = [0, 0], sizes = [8, 128], strides = [1, 1]} : vector<8x384xf32> to vector<8x128xf32>
    %484 = vector.extract_strided_slice %481 {offsets = [0, 0], sizes = [8, 128], strides = [1, 1]} : vector<8x384xf32> to vector<8x128xf32>
    %485 = arith.addf %483, %484 : vector<8x128xf32>
    %486 = arith.negf %485 : vector<8x128xf32>
    %487 = math.exp %486 : vector<8x128xf32>
    %cst_171 = arith.constant 1.000000e+00 : f32
    %488 = vector.broadcast %cst_171 : f32 to vector<8x128xf32>
    %489 = arith.addf %488, %487 : vector<8x128xf32>
    %490 = arith.divf %488, %489 : vector<8x128xf32>
    %491 = vector.extract_strided_slice %479 {offsets = [0, 128], sizes = [8, 128], strides = [1, 1]} : vector<8x384xf32> to vector<8x128xf32>
    %492 = vector.extract_strided_slice %481 {offsets = [0, 128], sizes = [8, 128], strides = [1, 1]} : vector<8x384xf32> to vector<8x128xf32>
    %493 = arith.addf %491, %492 : vector<8x128xf32>
    %494 = arith.negf %493 : vector<8x128xf32>
    %495 = math.exp %494 : vector<8x128xf32>
    %cst_172 = arith.constant 1.000000e+00 : f32
    %496 = vector.broadcast %cst_172 : f32 to vector<8x128xf32>
    %497 = arith.addf %496, %495 : vector<8x128xf32>
    %498 = arith.divf %496, %497 : vector<8x128xf32>
    %499 = vector.extract_strided_slice %479 {offsets = [0, 256], sizes = [8, 128], strides = [1, 1]} : vector<8x384xf32> to vector<8x128xf32>
    %500 = vector.extract_strided_slice %481 {offsets = [0, 256], sizes = [8, 128], strides = [1, 1]} : vector<8x384xf32> to vector<8x128xf32>
    %501 = vector.broadcast %482 : vector<1x128xf32> to vector<8x128xf32>
    %502 = arith.addf %500, %501 : vector<8x128xf32>
    %503 = arith.mulf %490, %502 : vector<8x128xf32>
    %504 = arith.addf %499, %503 : vector<8x128xf32>
    %505 = math.tanh %504 : vector<8x128xf32>
    %cst_173 = arith.constant 1.000000e+00 : f32
    %506 = vector.broadcast %cst_173 : f32 to vector<8x128xf32>
    %507 = arith.subf %506, %498 : vector<8x128xf32>
    %508 = arith.mulf %507, %505 : vector<8x128xf32>
    %509 = arith.mulf %498, %439 : vector<8x128xf32>
    %510 = arith.addf %508, %509 : vector<8x128xf32>
    %c7_i32 = arith.constant 7 : i32
    %c8_i32_174 = arith.constant 8 : i32
    %511 = arith.muli %c7_i32, %c8_i32_174 : i32
    %512 = tpu.assume_multiple %511, 8 : i32
    %513 = arith.index_cast %512 : i32 to index
    %c0_175 = arith.constant 0 : index
    %514 = vector.load %arg19[%513, %c0_175] : memref<64x384xf32, #tpu.memory_space<vmem>>, vector<8x384xf32>
    %c0_176 = arith.constant 0 : index
    %c0_177 = arith.constant 0 : index
    %515 = vector.load %arg5[%c0_176, %c0_177] : memref<128x384xf32, #tpu.memory_space<vmem>>, vector<128x384xf32>
    %cst_178 = arith.constant dense<0.000000e+00> : vector<8x384xf32>
    %516 = tpu.matmul %474, %515, %cst_178 {dimension_numbers = #tpu.dot_dimension_numbers<[1], [0], [0], [1], [0, 0, 1, 1], [], []>} : vector<8x128xf32>, vector<128x384xf32>, vector<8x384xf32> -> vector<8x384xf32>
    %c0_179 = arith.constant 0 : index
    %c0_180 = arith.constant 0 : index
    %517 = vector.load %arg7[%c0_179, %c0_180] : memref<1x128xf32, #tpu.memory_space<vmem>>, vector<1x128xf32>
    %518 = vector.extract_strided_slice %514 {offsets = [0, 0], sizes = [8, 128], strides = [1, 1]} : vector<8x384xf32> to vector<8x128xf32>
    %519 = vector.extract_strided_slice %516 {offsets = [0, 0], sizes = [8, 128], strides = [1, 1]} : vector<8x384xf32> to vector<8x128xf32>
    %520 = arith.addf %518, %519 : vector<8x128xf32>
    %521 = arith.negf %520 : vector<8x128xf32>
    %522 = math.exp %521 : vector<8x128xf32>
    %cst_181 = arith.constant 1.000000e+00 : f32
    %523 = vector.broadcast %cst_181 : f32 to vector<8x128xf32>
    %524 = arith.addf %523, %522 : vector<8x128xf32>
    %525 = arith.divf %523, %524 : vector<8x128xf32>
    %526 = vector.extract_strided_slice %514 {offsets = [0, 128], sizes = [8, 128], strides = [1, 1]} : vector<8x384xf32> to vector<8x128xf32>
    %527 = vector.extract_strided_slice %516 {offsets = [0, 128], sizes = [8, 128], strides = [1, 1]} : vector<8x384xf32> to vector<8x128xf32>
    %528 = arith.addf %526, %527 : vector<8x128xf32>
    %529 = arith.negf %528 : vector<8x128xf32>
    %530 = math.exp %529 : vector<8x128xf32>
    %cst_182 = arith.constant 1.000000e+00 : f32
    %531 = vector.broadcast %cst_182 : f32 to vector<8x128xf32>
    %532 = arith.addf %531, %530 : vector<8x128xf32>
    %533 = arith.divf %531, %532 : vector<8x128xf32>
    %534 = vector.extract_strided_slice %514 {offsets = [0, 256], sizes = [8, 128], strides = [1, 1]} : vector<8x384xf32> to vector<8x128xf32>
    %535 = vector.extract_strided_slice %516 {offsets = [0, 256], sizes = [8, 128], strides = [1, 1]} : vector<8x384xf32> to vector<8x128xf32>
    %536 = vector.broadcast %517 : vector<1x128xf32> to vector<8x128xf32>
    %537 = arith.addf %535, %536 : vector<8x128xf32>
    %538 = arith.mulf %525, %537 : vector<8x128xf32>
    %539 = arith.addf %534, %538 : vector<8x128xf32>
    %540 = math.tanh %539 : vector<8x128xf32>
    %cst_183 = arith.constant 1.000000e+00 : f32
    %541 = vector.broadcast %cst_183 : f32 to vector<8x128xf32>
    %542 = arith.subf %541, %533 : vector<8x128xf32>
    %543 = arith.mulf %542, %540 : vector<8x128xf32>
    %544 = arith.mulf %533, %474 : vector<8x128xf32>
    %545 = arith.addf %543, %544 : vector<8x128xf32>
    %c0_184 = arith.constant 0 : index
    %c0_185 = arith.constant 0 : index
    %546 = vector.load %arg8[%c0_184, %c0_185] : memref<128x384xf32, #tpu.memory_space<vmem>>, vector<128x384xf32>
    %cst_186 = arith.constant dense<0.000000e+00> : vector<8x384xf32>
    %547 = tpu.matmul %545, %546, %cst_186 {dimension_numbers = #tpu.dot_dimension_numbers<[1], [0], [0], [1], [0, 0, 1, 1], [], []>} : vector<8x128xf32>, vector<128x384xf32>, vector<8x384xf32> -> vector<8x384xf32>
    %c0_187 = arith.constant 0 : index
    %c0_188 = arith.constant 0 : index
    %548 = vector.load %arg10[%c0_187, %c0_188] : memref<1x384xf32, #tpu.memory_space<vmem>>, vector<1x384xf32>
    %549 = vector.broadcast %548 : vector<1x384xf32> to vector<8x384xf32>
    %550 = arith.addf %547, %549 : vector<8x384xf32>
    %c0_189 = arith.constant 0 : index
    %c0_190 = arith.constant 0 : index
    %551 = vector.load %arg9[%c0_189, %c0_190] : memref<128x384xf32, #tpu.memory_space<vmem>>, vector<128x384xf32>
    %cst_191 = arith.constant dense<0.000000e+00> : vector<8x384xf32>
    %552 = tpu.matmul %510, %551, %cst_191 {dimension_numbers = #tpu.dot_dimension_numbers<[1], [0], [0], [1], [0, 0, 1, 1], [], []>} : vector<8x128xf32>, vector<128x384xf32>, vector<8x384xf32> -> vector<8x384xf32>
    %c0_192 = arith.constant 0 : index
    %c0_193 = arith.constant 0 : index
    %553 = vector.load %arg11[%c0_192, %c0_193] : memref<1x128xf32, #tpu.memory_space<vmem>>, vector<1x128xf32>
    %554 = vector.extract_strided_slice %550 {offsets = [0, 0], sizes = [8, 128], strides = [1, 1]} : vector<8x384xf32> to vector<8x128xf32>
    %555 = vector.extract_strided_slice %552 {offsets = [0, 0], sizes = [8, 128], strides = [1, 1]} : vector<8x384xf32> to vector<8x128xf32>
    %556 = arith.addf %554, %555 : vector<8x128xf32>
    %557 = arith.negf %556 : vector<8x128xf32>
    %558 = math.exp %557 : vector<8x128xf32>
    %cst_194 = arith.constant 1.000000e+00 : f32
    %559 = vector.broadcast %cst_194 : f32 to vector<8x128xf32>
    %560 = arith.addf %559, %558 : vector<8x128xf32>
    %561 = arith.divf %559, %560 : vector<8x128xf32>
    %562 = vector.extract_strided_slice %550 {offsets = [0, 128], sizes = [8, 128], strides = [1, 1]} : vector<8x384xf32> to vector<8x128xf32>
    %563 = vector.extract_strided_slice %552 {offsets = [0, 128], sizes = [8, 128], strides = [1, 1]} : vector<8x384xf32> to vector<8x128xf32>
    %564 = arith.addf %562, %563 : vector<8x128xf32>
    %565 = arith.negf %564 : vector<8x128xf32>
    %566 = math.exp %565 : vector<8x128xf32>
    %cst_195 = arith.constant 1.000000e+00 : f32
    %567 = vector.broadcast %cst_195 : f32 to vector<8x128xf32>
    %568 = arith.addf %567, %566 : vector<8x128xf32>
    %569 = arith.divf %567, %568 : vector<8x128xf32>
    %570 = vector.extract_strided_slice %550 {offsets = [0, 256], sizes = [8, 128], strides = [1, 1]} : vector<8x384xf32> to vector<8x128xf32>
    %571 = vector.extract_strided_slice %552 {offsets = [0, 256], sizes = [8, 128], strides = [1, 1]} : vector<8x384xf32> to vector<8x128xf32>
    %572 = vector.broadcast %553 : vector<1x128xf32> to vector<8x128xf32>
    %573 = arith.addf %571, %572 : vector<8x128xf32>
    %574 = arith.mulf %561, %573 : vector<8x128xf32>
    %575 = arith.addf %570, %574 : vector<8x128xf32>
    %576 = math.tanh %575 : vector<8x128xf32>
    %cst_196 = arith.constant 1.000000e+00 : f32
    %577 = vector.broadcast %cst_196 : f32 to vector<8x128xf32>
    %578 = arith.subf %577, %569 : vector<8x128xf32>
    %579 = arith.mulf %578, %576 : vector<8x128xf32>
    %580 = arith.mulf %569, %510 : vector<8x128xf32>
    %581 = arith.addf %579, %580 : vector<8x128xf32>
    %c8_i32_197 = arith.constant 8 : i32
    %c0_198 = arith.constant 0 : index
    %c0_199 = arith.constant 0 : index
    %c0_200 = arith.constant 0 : index
    %582 = vector.load %arg20[%c0_198, %c0_199, %c0_200] : memref<2x8x128xf32, #tpu.memory_space<vmem>>, vector<1x8x128xf32>
    %583 = vector.shape_cast %582 : vector<1x8x128xf32> to vector<8x128xf32>
    %584 = vector.shape_cast %545 : vector<8x128xf32> to vector<1x8x128xf32>
    tpu.vector_store %arg20[%c0_198, %c0_199, %c0_200], %584 {strides = array<i32>} : memref<2x8x128xf32, #tpu.memory_space<vmem>>, vector<1x8x128xf32>,
    %c1_201 = arith.constant 1 : index
    %c0_202 = arith.constant 0 : index
    %c0_203 = arith.constant 0 : index
    %585 = vector.load %arg20[%c1_201, %c0_202, %c0_203] : memref<2x8x128xf32, #tpu.memory_space<vmem>>, vector<1x8x128xf32>
    %586 = vector.shape_cast %585 : vector<1x8x128xf32> to vector<8x128xf32>
    %587 = vector.shape_cast %581 : vector<8x128xf32> to vector<1x8x128xf32>
    tpu.vector_store %arg20[%c1_201, %c0_202, %c0_203], %587 {strides = array<i32>} : memref<2x8x128xf32, #tpu.memory_space<vmem>>, vector<1x8x128xf32>,
    %c0_i32_204 = arith.constant 0 : i32
    %588 = arith.cmpi eq, %arg0, %c0_i32_204 : i32
    %589 = arith.extui %588 : i1 to i32
    %c0_i32_205 = arith.constant 0 : i32
    %590 = arith.cmpi ne, %589, %c0_i32_205 : i32
    scf.if %590 {
      %c0_206 = arith.constant 0 : index
      %c0_207 = arith.constant 0 : index
      %c0_208 = arith.constant 0 : index
      %591 = vector.load %arg20[%c0_206, %c0_207, %c0_208] : memref<2x8x128xf32, #tpu.memory_space<vmem>>, vector<2x8x128xf32>
      %c0_209 = arith.constant 0 : index
      %c0_210 = arith.constant 0 : index
      %c0_211 = arith.constant 0 : index
      %592 = vector.load %arg18[%c0_209, %c0_210, %c0_211] : memref<2x8x128xf32, #tpu.memory_space<vmem>>, vector<2x8x128xf32>
      tpu.vector_store %arg18[%c0_209, %c0_210, %c0_211], %591 {strides = array<i32>} : memref<2x8x128xf32, #tpu.memory_space<vmem>>, vector<2x8x128xf32>,
      %c0_212 = arith.constant 0 : index
      %c0_213 = arith.constant 0 : index
      %593 = vector.load %arg2[%c0_212, %c0_213] : memref<8x8xf32, #tpu.memory_space<vmem>>, vector<8x8xf32>
      %c0_214 = arith.constant 0 : index
      %c0_215 = arith.constant 0 : index
      %594 = vector.load %arg12[%c0_214, %c0_215] : memref<8x128xf32, #tpu.memory_space<vmem>>, vector<8x128xf32>
      %cst_216 = arith.constant dense<0.000000e+00> : vector<8x128xf32>
      %595 = tpu.matmul %593, %594, %cst_216 {dimension_numbers = #tpu.dot_dimension_numbers<[1], [0], [0], [1], [0, 0, 1, 1], [], []>} : vector<8x8xf32>, vector<8x128xf32>, vector<8x128xf32> -> vector<8x128xf32>
      %c1_217 = arith.constant 1 : index
      %c0_218 = arith.constant 0 : index
      %c0_219 = arith.constant 0 : index
      %596 = vector.load %arg20[%c1_217, %c0_218, %c0_219] : memref<2x8x128xf32, #tpu.memory_space<vmem>>, vector<1x8x128xf32>
      %597 = vector.shape_cast %596 : vector<1x8x128xf32> to vector<8x128xf32>
      %c0_220 = arith.constant 0 : index
      %c0_221 = arith.constant 0 : index
      %598 = vector.load %arg13[%c0_220, %c0_221] : memref<128x128xf32, #tpu.memory_space<vmem>>, vector<128x128xf32>
      %cst_222 = arith.constant dense<0.000000e+00> : vector<8x128xf32>
      %599 = tpu.matmul %597, %598, %cst_222 {dimension_numbers = #tpu.dot_dimension_numbers<[1], [0], [0], [1], [0, 0, 1, 1], [], []>} : vector<8x128xf32>, vector<128x128xf32>, vector<8x128xf32> -> vector<8x128xf32>
      %600 = arith.addf %595, %599 : vector<8x128xf32>
      %c0_223 = arith.constant 0 : index
      %c0_224 = arith.constant 0 : index
      %601 = vector.load %arg14[%c0_223, %c0_224] : memref<1x128xf32, #tpu.memory_space<vmem>>, vector<1x128xf32>
      %602 = vector.broadcast %601 : vector<1x128xf32> to vector<8x128xf32>
      %603 = arith.addf %600, %602 : vector<8x128xf32>
      %cst_225 = arith.constant 5.000000e-01 : f32
      %604 = vector.broadcast %cst_225 : f32 to vector<8x128xf32>
      %605 = arith.mulf %604, %603 : vector<8x128xf32>
      %cst_226 = arith.constant 0.707106769 : f32
      %606 = vector.broadcast %cst_226 : f32 to vector<8x128xf32>
      %607 = arith.mulf %603, %606 : vector<8x128xf32>
      %608 = math.erf %607 : vector<8x128xf32>
      %cst_227 = arith.constant 1.000000e+00 : f32
      %609 = vector.broadcast %cst_227 : f32 to vector<8x128xf32>
      %610 = arith.addf %609, %608 : vector<8x128xf32>
      %611 = arith.mulf %605, %610 : vector<8x128xf32>
      %c0_228 = arith.constant 0 : index
      %c0_229 = arith.constant 0 : index
      %612 = vector.load %arg15[%c0_228, %c0_229] : memref<128x128xf32, #tpu.memory_space<vmem>>, vector<128x128xf32>
      %cst_230 = arith.constant dense<0.000000e+00> : vector<8x128xf32>
      %613 = tpu.matmul %611, %612, %cst_230 {dimension_numbers = #tpu.dot_dimension_numbers<[1], [0], [0], [1], [0, 0, 1, 1], [], []>} : vector<8x128xf32>, vector<128x128xf32>, vector<8x128xf32> -> vector<8x128xf32>
      %c0_231 = arith.constant 0 : index
      %c0_232 = arith.constant 0 : index
      %614 = vector.load %arg16[%c0_231, %c0_232] : memref<1x128xf32, #tpu.memory_space<vmem>>, vector<1x128xf32>
      %615 = vector.broadcast %614 : vector<1x128xf32> to vector<8x128xf32>
      %616 = arith.addf %613, %615 : vector<8x128xf32>
      %cst_233 = arith.constant 5.000000e-01 : f32
      %617 = vector.broadcast %cst_233 : f32 to vector<8x128xf32>
      %618 = arith.mulf %617, %616 : vector<8x128xf32>
      %cst_234 = arith.constant 0.707106769 : f32
      %619 = vector.broadcast %cst_234 : f32 to vector<8x128xf32>
      %620 = arith.mulf %616, %619 : vector<8x128xf32>
      %621 = math.erf %620 : vector<8x128xf32>
      %cst_235 = arith.constant 1.000000e+00 : f32
      %622 = vector.broadcast %cst_235 : f32 to vector<8x128xf32>
      %623 = arith.addf %622, %621 : vector<8x128xf32>
      %624 = arith.mulf %618, %623 : vector<8x128xf32>
      %c0_236 = arith.constant 0 : index
      %c0_237 = arith.constant 0 : index
      %625 = vector.load %arg17[%c0_236, %c0_237] : memref<8x128xf32, #tpu.memory_space<vmem>>, vector<8x128xf32>
      tpu.vector_store %arg17[%c0_236, %c0_237], %624 {strides = array<i32>} : memref<8x128xf32, #tpu.memory_space<vmem>>, vector<8x128xf32>,
    } else {
    }
    return
  }
  func.func @transform_0(%arg0: i32) -> (i32, i32) {
    %c0_i32 = arith.constant 0 : i32
    %c0_i32_0 = arith.constant 0 : i32
    return %arg0, %c0_i32 : i32, i32
  }
  func.func @transform_1(%arg0: i32) -> (i32, i32) {
    %c0_i32 = arith.constant 0 : i32
    %c0_i32_0 = arith.constant 0 : i32
    %c0_i32_1 = arith.constant 0 : i32
    return %c0_i32, %c0_i32_0 : i32, i32
  }
  func.func @transform_2(%arg0: i32) -> (i32, i32, i32) {
    %c0_i32 = arith.constant 0 : i32
    %c0_i32_0 = arith.constant 0 : i32
    %c0_i32_1 = arith.constant 0 : i32
    %c0_i32_2 = arith.constant 0 : i32
    return %c0_i32, %c0_i32_0, %c0_i32_1 : i32, i32, i32
  }
  func.func @transform_3(%arg0: i32) -> (i32, i32) {
    %c0_i32 = arith.constant 0 : i32
    %c0_i32_0 = arith.constant 0 : i32
    %c0_i32_1 = arith.constant 0 : i32
    return %c0_i32, %c0_i32_0 : i32, i32
  }
  func.func @transform_4(%arg0: i32) -> (i32, i32) {
    %c0_i32 = arith.constant 0 : i32
    %c0_i32_0 = arith.constant 0 : i32
    %c0_i32_1 = arith.constant 0 : i32
    return %c0_i32, %c0_i32_0 : i32, i32
  }
  func.func @transform_5(%arg0: i32) -> (i32, i32) {
    %c0_i32 = arith.constant 0 : i32
    %c0_i32_0 = arith.constant 0 : i32
    %c0_i32_1 = arith.constant 0 : i32
    return %c0_i32, %c0_i32_0 : i32, i32
  }
  func.func @transform_6(%arg0: i32) -> (i32, i32) {
    %c0_i32 = arith.constant 0 : i32
    %c0_i32_0 = arith.constant 0 : i32
    %c0_i32_1 = arith.constant 0 : i32
    return %c0_i32, %c0_i32_0 : i32, i32
  }
  func.func @transform_7(%arg0: i32) -> (i32, i32) {
    %c0_i32 = arith.constant 0 : i32
    %c0_i32_0 = arith.constant 0 : i32
    %c0_i32_1 = arith.constant 0 : i32
    return %c0_i32, %c0_i32_0 : i32, i32
  }
  func.func @transform_8(%arg0: i32) -> (i32, i32) {
    %c0_i32 = arith.constant 0 : i32
    %c0_i32_0 = arith.constant 0 : i32
    %c0_i32_1 = arith.constant 0 : i32
    return %c0_i32, %c0_i32_0 : i32, i32
  }
  func.func @transform_9(%arg0: i32) -> (i32, i32) {
    %c0_i32 = arith.constant 0 : i32
    %c0_i32_0 = arith.constant 0 : i32
    %c0_i32_1 = arith.constant 0 : i32
    return %c0_i32, %c0_i32_0 : i32, i32
  }
  func.func @transform_10(%arg0: i32) -> (i32, i32) {
    %c0_i32 = arith.constant 0 : i32
    %c0_i32_0 = arith.constant 0 : i32
    %c0_i32_1 = arith.constant 0 : i32
    return %c0_i32, %c0_i32_0 : i32, i32
  }
  func.func @transform_11(%arg0: i32) -> (i32, i32) {
    %c0_i32 = arith.constant 0 : i32
    %c0_i32_0 = arith.constant 0 : i32
    %c0_i32_1 = arith.constant 0 : i32
    return %c0_i32, %c0_i32_0 : i32, i32
  }
  func.func @transform_12(%arg0: i32) -> (i32, i32) {
    %c0_i32 = arith.constant 0 : i32
    %c0_i32_0 = arith.constant 0 : i32
    %c0_i32_1 = arith.constant 0 : i32
    return %c0_i32, %c0_i32_0 : i32, i32
  }
  func.func @transform_13(%arg0: i32) -> (i32, i32) {
    %c0_i32 = arith.constant 0 : i32
    %c0_i32_0 = arith.constant 0 : i32
    %c0_i32_1 = arith.constant 0 : i32
    return %c0_i32, %c0_i32_0 : i32, i32
  }
  func.func @transform_14(%arg0: i32) -> (i32, i32) {
    %c0_i32 = arith.constant 0 : i32
    %c0_i32_0 = arith.constant 0 : i32
    %c0_i32_1 = arith.constant 0 : i32
    return %c0_i32, %c0_i32_0 : i32, i32
  }
  func.func @transform_15(%arg0: i32) -> (i32, i32) {
    %c0_i32 = arith.constant 0 : i32
    %c0_i32_0 = arith.constant 0 : i32
    %c0_i32_1 = arith.constant 0 : i32
    return %c0_i32, %c0_i32_0 : i32, i32
  }
  func.func @transform_16(%arg0: i32) -> (i32, i32) {
    %c0_i32 = arith.constant 0 : i32
    %c0_i32_0 = arith.constant 0 : i32
    %c0_i32_1 = arith.constant 0 : i32
    return %c0_i32, %c0_i32_0 : i32, i32
  }
  func.func @transform_17(%arg0: i32) -> (i32, i32, i32) {
    %c0_i32 = arith.constant 0 : i32
    %c0_i32_0 = arith.constant 0 : i32
    %c0_i32_1 = arith.constant 0 : i32
    %c0_i32_2 = arith.constant 0 : i32
    return %c0_i32, %c0_i32_0, %c0_i32_1 : i32, i32, i32
  }
}

</mosaic_0001>

<llo_original>
// kernel: tpu_custom_call.1
$region0: #{tpu_custom_call.1}
  #allocation0 [shape = 'u32[]', space=smem, size = 0x4, offset = 0x4, fixed_abs, tag = 'smem constant byte address 0x4 - core index']
  #allocation1 [shape = 'u32[72,128]{1,0:T(1,128)}', space=vmem, size = 0x9000, scoped, tag = 'internal scratch']
  #allocation2 [shape = 'f32[64,384]{1,0:T(8,128)}', space=vmem, size = 0x18000, scoped, tag = 'scratch operand']
  #allocation3 [shape = 'f32[2,8,128]{2,1,0:T(8,128)}', space=vmem, size = 0x2000, scoped, tag = 'scratch operand']
  %s0 = inlined_call_operand.vmem [shape: f32[64,16], index: 0, kind: input, shape index: {}]
  %s1 = inlined_call_operand.vmem [shape: f32[8,8], index: 1, kind: input, shape index: {}]
  %s2 = inlined_call_operand.hbm [shape: f32[2,8,128], index: 2, kind: input, shape index: {}, may-alias: {2,17}]
  %s3 = inlined_call_operand.vmem [shape: f32[16,384], index: 3, kind: input, shape index: {}]
  %s4 = inlined_call_operand.hbm [shape: f32[128,384], index: 4, kind: input, shape index: {}]
  %s5 = inlined_call_operand.vmem [shape: f32[1,384], index: 5, kind: input, shape index: {}]
  %s6 = inlined_call_operand.vmem [shape: f32[1,128], index: 6, kind: input, shape index: {}]
  %s7 = inlined_call_operand.hbm [shape: f32[128,384], index: 7, kind: input, shape index: {}]
  %s8 = inlined_call_operand.hbm [shape: f32[128,384], index: 8, kind: input, shape index: {}]
  %s9 = inlined_call_operand.vmem [shape: f32[1,384], index: 9, kind: input, shape index: {}]
  %s10 = inlined_call_operand.vmem [shape: f32[1,128], index: 10, kind: input, shape index: {}]
  %s11 = inlined_call_operand.vmem [shape: f32[8,128], index: 11, kind: input, shape index: {}]
  %s12 = inlined_call_operand.hbm [shape: f32[128,128], index: 12, kind: input, shape index: {}]
  %s13 = inlined_call_operand.vmem [shape: f32[1,128], index: 13, kind: input, shape index: {}]
  %s14 = inlined_call_operand.hbm [shape: f32[128,128], index: 14, kind: input, shape index: {}]
  %s15 = inlined_call_operand.vmem [shape: f32[1,128], index: 15, kind: input, shape index: {}]
  %s16 = inlined_call_operand.hbm [shape: f32[8,128], index: 16, kind: output, shape index: {0}]
  %s17 = inlined_call_operand.hbm [shape: f32[2,8,128], index: 17, kind: output, shape index: {1}, may-alias: {2,17}]
  %18 = xla_tuple %s16, %s17
  %s19 = sld [smem:[#allocation0]]
  $region114: #{tpu_custom_call.1} parent=0
    _
  %s21 = ssub.s32 1, %s19
  %s22 = scalar_select 0, %s21, %s19
  $region1: #{tpu_custom_call.1} parent=0
    #allocation4 [shape = 'u8[8192]{0}', space=vmem, size = 0x2000, scoped, tag = 'input window, operand 2, single buffered']
    #allocation5 [shape = 's32[1]{0}', space=sflag, size = 0x4, scoped, tag = 'scoped memory for tpu_custom_call.1']
    #allocation6 [shape = 's32[1]{0}', space=sflag, size = 0x4, scoped, tag = 'scoped memory for tpu_custom_call.1']
    #allocation7 [shape = 'u8[196608]{0}', space=vmem, size = 0x30000, scoped, tag = 'input window, operand 4, single buffered']
    #allocation8 [shape = 's32[1]{0}', space=sflag, size = 0x4, scoped, tag = 'scoped memory for tpu_custom_call.1']
    #allocation9 [shape = 'u8[196608]{0}', space=vmem, size = 0x30000, scoped, tag = 'input window, operand 7, single buffered']
    #allocation10 [shape = 'u8[196608]{0}', space=vmem, size = 0x30000, scoped, tag = 'input window, operand 8, single buffered']
    #allocation11 [shape = 's32[1]{0}', space=sflag, size = 0x4, scoped, tag = 'scoped memory for tpu_custom_call.1']
    #allocation12 [shape = 'u8[65536]{0}', space=vmem, size = 0x10000, scoped, tag = 'input window, operand 12, single buffered']
    #allocation13 [shape = 'u8[65536]{0}', space=vmem, size = 0x10000, scoped, tag = 'input window, operand 14, single buffered']
    #allocation14 [shape = 's32[1]{0}', space=sflag, size = 0x4, scoped, tag = 'scoped memory for tpu_custom_call.1']
    #allocation15 [shape = 'u8[4096]{0}', space=vmem, size = 0x1000, scoped, tag = 'output window, operand 0, single buffered']
    #allocation16 [shape = 'u8[8192]{0}', space=vmem, size = 0x2000, scoped, tag = 'output window, operand 1, single buffered']
    #allocation17 [shape = 's32[1]{0}', space=sflag, size = 0x4, scoped, tag = 'scoped memory for tpu_custom_call.1']
    %23 = vsyncpa [#allocation5], 0
    %24 = vsyncpa [#allocation8], 0
    %25 = vsyncpa [#allocation11], 0
    %26 = vsyncpa [#allocation14], 0
    %27 = vsyncpa [#allocation6], 0
    %28 = vsyncpa [#allocation17], 0
    // Predicated region
    $region2: #{tpu_custom_call.1} parent=1 // pred_check
      _
    $region3: #{tpu_custom_call.1} parent=1 // pred_check_branch
      %30 = sbr.rel (0) target = $region5
    $region4: #{tpu_custom_call.1} parent=1 // pred_region
      _
    $region5: #{tpu_custom_call.1} parent=1 // pred_fallthru
      _
    // Predicated region
    $region6: #{tpu_custom_call.1} parent=1 // pred_check
      _
    $region7: #{tpu_custom_call.1} parent=1 // pred_check_branch
      %32 = sbr.rel (0) target = $region9
    $region8: #{tpu_custom_call.1} parent=1 // pred_region
      _
    $region9: #{tpu_custom_call.1} parent=1 // pred_fallthru
      _
    // Predicated region
    $region10: #{tpu_custom_call.1} parent=1 // pred_check
      _
    $region11: #{tpu_custom_call.1} parent=1 // pred_check_branch
      %34 = sbr.rel (0) target = $region13
    $region12: #{tpu_custom_call.1} parent=1 // pred_region
      %36 = vsyncadd [#allocation5], 0
      %s37 = sshll.u32 %s2, 4
      %s38 = int_to_ptr.hbm [resolvable:$true] %s37
      %s39 = sshll.u32 [#allocation4], 4
      %s40 = int_to_ptr.vmem [resolvable:$true] %s39
      %45 = dma.hbm_to_vmem [thread:$0]  %s38, 256, %s40, [#allocation5], 128, 128, 8
    $region13: #{tpu_custom_call.1} parent=1 // pred_fallthru
      _
    // Predicated region
    $region14: #{tpu_custom_call.1} parent=1 // pred_check
      _
    $region15: #{tpu_custom_call.1} parent=1 // pred_check_branch
      %47 = sbr.rel (0) target = $region17
    $region16: #{tpu_custom_call.1} parent=1 // pred_region
      _
    $region17: #{tpu_custom_call.1} parent=1 // pred_fallthru
      _
    // Predicated region
    $region18: #{tpu_custom_call.1} parent=1 // pred_check
      _
    $region19: #{tpu_custom_call.1} parent=1 // pred_check_branch
      %49 = sbr.rel (0) target = $region21
    $region20: #{tpu_custom_call.1} parent=1 // pred_region
      %51 = vsyncadd [#allocation8], 0
      %s52 = sshll.u32 %s4, 4
      %s53 = int_to_ptr.hbm [resolvable:$true] %s52
      %s54 = sshll.u32 [#allocation7], 4
      %s55 = int_to_ptr.vmem [resolvable:$true] %s54
      %60 = dma.hbm_to_vmem [thread:$0]  %s53, 6144, %s55, [#allocation8], 384, 384, 24
    $region21: #{tpu_custom_call.1} parent=1 // pred_fallthru
      _
    // Predicated region
    $region22: #{tpu_custom_call.1} parent=1 // pred_check
      _
    $region23: #{tpu_custom_call.1} parent=1 // pred_check_branch
      %62 = sbr.rel (0) target = $region25
    $region24: #{tpu_custom_call.1} parent=1 // pred_region
      _
    $region25: #{tpu_custom_call.1} parent=1 // pred_fallthru
      _
    // Predicated region
    $region26: #{tpu_custom_call.1} parent=1 // pred_check
      _
    $region27: #{tpu_custom_call.1} parent=1 // pred_check_branch
      %64 = sbr.rel (0) target = $region29
    $region28: #{tpu_custom_call.1} parent=1 // pred_region
      _
    $region29: #{tpu_custom_call.1} parent=1 // pred_fallthru
      _
    // Predicated region
    $region30: #{tpu_custom_call.1} parent=1 // pred_check
      _
    $region31: #{tpu_custom_call.1} parent=1 // pred_check_branch
      %66 = sbr.rel (0) target = $region33
    $region32: #{tpu_custom_call.1} parent=1 // pred_region
      %68 = vsyncadd [#allocation8], 0
      %s69 = sshll.u32 %s7, 4
      %s70 = int_to_ptr.hbm [resolvable:$true] %s69
      %s71 = sshll.u32 [#allocation9], 4
      %s72 = int_to_ptr.vmem [resolvable:$true] %s71
      %77 = dma.hbm_to_vmem [thread:$0]  %s70, 6144, %s72, [#allocation8], 384, 384, 24
    $region33: #{tpu_custom_call.1} parent=1 // pred_fallthru
      _
    // Predicated region
    $region34: #{tpu_custom_call.1} parent=1 // pred_check
      _
    $region35: #{tpu_custom_call.1} parent=1 // pred_check_branch
      %79 = sbr.rel (0) target = $region37
    $region36: #{tpu_custom_call.1} parent=1 // pred_region
      %81 = vsyncadd [#allocation11], 0
      %s82 = sshll.u32 %s8, 4
      %s83 = int_to_ptr.hbm [resolvable:$true] %s82
      %s84 = sshll.u32 [#allocation10], 4
      %s85 = int_to_ptr.vmem [resolvable:$true] %s84
      %90 = dma.hbm_to_vmem [thread:$0]  %s83, 6144, %s85, [#allocation11], 384, 384, 24
    $region37: #{tpu_custom_call.1} parent=1 // pred_fallthru
      _
    // Predicated region
    $region38: #{tpu_custom_call.1} parent=1 // pred_check
      _
    $region39: #{tpu_custom_call.1} parent=1 // pred_check_branch
      %92 = sbr.rel (0) target = $region41
    $region40: #{tpu_custom_call.1} parent=1 // pred_region
      _
    $region41: #{tpu_custom_call.1} parent=1 // pred_fallthru
      _
    // Predicated region
    $region42: #{tpu_custom_call.1} parent=1 // pred_check
      _
    $region43: #{tpu_custom_call.1} parent=1 // pred_check_branch
      %94 = sbr.rel (0) target = $region45
    $region44: #{tpu_custom_call.1} parent=1 // pred_region
      _
    $region45: #{tpu_custom_call.1} parent=1 // pred_fallthru
      _
    // Predicated region
    $region46: #{tpu_custom_call.1} parent=1 // pred_check
      _
    $region47: #{tpu_custom_call.1} parent=1 // pred_check_branch
      %96 = sbr.rel (0) target = $region49
    $region48: #{tpu_custom_call.1} parent=1 // pred_region
      _
    $region49: #{tpu_custom_call.1} parent=1 // pred_fallthru
      _
    // Predicated region
    $region50: #{tpu_custom_call.1} parent=1 // pred_check
      _
    $region51: #{tpu_custom_call.1} parent=1 // pred_check_branch
      %98 = sbr.rel (0) target = $region53
    $region52: #{tpu_custom_call.1} parent=1 // pred_region
      %100 = vsyncadd [#allocation11], 0
      %s101 = sshll.u32 %s12, 4
      %s102 = int_to_ptr.hbm [resolvable:$true] %s101
      %s103 = sshll.u32 [#allocation12], 4
      %s104 = int_to_ptr.vmem [resolvable:$true] %s103
      %109 = dma.hbm_to_vmem [thread:$0]  %s102, 2048, %s104, [#allocation11], 128, 128, 8
    $region53: #{tpu_custom_call.1} parent=1 // pred_fallthru
      _
    // Predicated region
    $region54: #{tpu_custom_call.1} parent=1 // pred_check
      _
    $region55: #{tpu_custom_call.1} parent=1 // pred_check_branch
      %111 = sbr.rel (0) target = $region57
    $region56: #{tpu_custom_call.1} parent=1 // pred_region
      _
    $region57: #{tpu_custom_call.1} parent=1 // pred_fallthru
      _
    // Predicated region
    $region58: #{tpu_custom_call.1} parent=1 // pred_check
      _
    $region59: #{tpu_custom_call.1} parent=1 // pred_check_branch
      %113 = sbr.rel (0) target = $region61
    $region60: #{tpu_custom_call.1} parent=1 // pred_region
      %115 = vsyncadd [#allocation14], 0
      %s116 = sshll.u32 %s14, 4
      %s117 = int_to_ptr.hbm [resolvable:$true] %s116
      %s118 = sshll.u32 [#allocation13], 4
      %s119 = int_to_ptr.vmem [resolvable:$true] %s118
      %124 = dma.hbm_to_vmem [thread:$0]  %s117, 2048, %s119, [#allocation14], 128, 128, 8
    $region61: #{tpu_custom_call.1} parent=1 // pred_fallthru
      _
    // Predicated region
    $region62: #{tpu_custom_call.1} parent=1 // pred_check
      _
    $region63: #{tpu_custom_call.1} parent=1 // pred_check_branch
      %126 = sbr.rel (0) target = $region65
    $region64: #{tpu_custom_call.1} parent=1 // pred_region
      _
    $region65: #{tpu_custom_call.1} parent=1 // pred_fallthru
      _
    // Predicated region
    $region66: #{tpu_custom_call.1} parent=1 // pred_check
      _
    $region67: #{tpu_custom_call.1} parent=1 // pred_check_branch
      %128 = sbr.rel (0) target = $region69
    $region68: #{tpu_custom_call.1} parent=1 // pred_region
      %130 = dma.done [#allocation5], 256
    $region69: #{tpu_custom_call.1} parent=1 // pred_fallthru
      _
    // Predicated region
    $region70: #{tpu_custom_call.1} parent=1 // pred_check
      _
    $region71: #{tpu_custom_call.1} parent=1 // pred_check_branch
      %132 = sbr.rel (0) target = $region73
    $region72: #{tpu_custom_call.1} parent=1 // pred_region
      %134 = dma.done [#allocation8], 6144
    $region73: #{tpu_custom_call.1} parent=1 // pred_fallthru
      _
    // Predicated region
    $region74: #{tpu_custom_call.1} parent=1 // pred_check
      _
    $region75: #{tpu_custom_call.1} parent=1 // pred_check_branch
      %136 = sbr.rel (0) target = $region77
    $region76: #{tpu_custom_call.1} parent=1 // pred_region
      %138 = dma.done [#allocation8], 6144
    $region77: #{tpu_custom_call.1} parent=1 // pred_fallthru
      _
    // Predicated region
    $region78: #{tpu_custom_call.1} parent=1 // pred_check
      _
    $region79: #{tpu_custom_call.1} parent=1 // pred_check_branch
      %140 = sbr.rel (0) target = $region81
    $region80: #{tpu_custom_call.1} parent=1 // pred_region
      %142 = dma.done [#allocation11], 6144
    $region81: #{tpu_custom_call.1} parent=1 // pred_fallthru
      _
    // Predicated region
    $region82: #{tpu_custom_call.1} parent=1 // pred_check
      _
    $region83: #{tpu_custom_call.1} parent=1 // pred_check_branch
      %144 = sbr.rel (0) target = $region85
    $region84: #{tpu_custom_call.1} parent=1 // pred_region
      %146 = dma.done [#allocation11], 2048
    $region85: #{tpu_custom_call.1} parent=1 // pred_fallthru
      _
    // Predicated region
    $region86: #{tpu_custom_call.1} parent=1 // pred_check
      _
    $region87: #{tpu_custom_call.1} parent=1 // pred_check_branch
      %148 = sbr.rel (0) target = $region89
    $region88: #{tpu_custom_call.1} parent=1 // pred_region
      %150 = dma.done [#allocation14], 2048
    $region89: #{tpu_custom_call.1} parent=1 // pred_fallthru
      _
    %p151 = scmp.eq.s32.totalorder 0, 0
    // Predicated region
    $region90: #{tpu_custom_call.1} parent=1 // pred_check
      %p152 = pneg %p151
    $region91: #{tpu_custom_call.1} parent=1 // pred_check_branch
      %154 = sbr.rel (%p152) target = $region93
    $region92: #{tpu_custom_call.1} parent=1 // pred_region
      %v155 = vld [vmem:[#allocation4] sm:$0xff]
      %v156 = vld [vmem:[#allocation4 + $0x8] sm:$0xff]
      %157 = vst [vmem:[#allocation3] sm:$0xff] %v155
      %158 = vst [vmem:[#allocation3 + $0x8] sm:$0xff] %v156
    $region93: #{tpu_custom_call.1} parent=1 // pred_fallthru
      _
    %v159 = vld [vmem:[%s0] sm:$0xff]
    %v160 = vld [vmem:[%s0 + $0x8] sm:$0xff]
    %v161 = vld [vmem:[%s0 + $0x10] sm:$0xff]
    %v162 = vld [vmem:[%s0 + $0x18] sm:$0xff]
    %v163 = vld [vmem:[%s0 + $0x20] sm:$0xff]
    %v164 = vld [vmem:[%s0 + $0x28] sm:$0xff]
    %v165 = vld [vmem:[%s0 + $0x30] sm:$0xff]
    %v166 = vld [vmem:[%s0 + $0x38] sm:$0xff]
    %v167 = vld [vmem:[%s3] sm:$0xff]
    %v168 = vld [vmem:[%s3 + $0x8] sm:$0xff]
    %v169 = vld [vmem:[%s3 + $0x10] sm:$0xff]
    %v170 = vld [vmem:[%s3 + $0x18] sm:$0xff]
    %v171 = vld [vmem:[%s3 + $0x20] sm:$0xff]
    %v172 = vld [vmem:[%s3 + $0x28] sm:$0xff]
    %v173 = vld [vmem:[%s5] sm:$0x7]
    %v175 = vperm.slane %v173, 0
    %v176 = vperm.slane %v173, 1
    %v177 = vperm.slane %v173, 2
    %vm181 = vcmask 130048
    %v183 = vsel %vm181, %v159, 0
    %v186 = vsel %vm181, %v160, 0
    %v189 = vsel %vm181, %v161, 0
    %v192 = vsel %vm181, %v162, 0
    %v195 = vsel %vm181, %v163, 0
    %v198 = vsel %vm181, %v164, 0
    %v201 = vsel %vm181, %v165, 0
    %v204 = vsel %vm181, %v166, 0
    %206 = vmatpush.msra.mxu0 0.0
    %207 = vmatpush.msra.mxu0 0.0
    %208 = vmatpush.msra.mxu0 0.0
    %209 = vmatpush.msra.mxu0 0.0
    %210 = vmatpush.msra.mxu0 0.0
    %211 = vmatpush.msra.mxu0 0.0
    %212 = vmatpush.msra.mxu0 0.0
    %213 = vmatpush.msra.mxu0 0.0
    %214 = vmatpush.msra.mxu0 0.0
    %215 = vmatpush.msra.mxu0 0.0
    %216 = vmatpush.msra.mxu0 0.0
    %217 = vmatpush.msra.mxu0 0.0
    %218 = vmatpush.msra.mxu0 0.0
    %219 = vmatpush.msra.mxu0 0.0
    %220 = vmatpush.msra.mxu0 %v170
    %221 = vmatpush.msra.mxu0 %v167
    %222 = vmatmul.f32.gmra.mxu0 %v183
    %v223 = vpop.f32.mrf.mxu0
    %v224 = vadd.f32 %v175, %v223
    %225 = vmatmul.f32.gmra.mxu0 %v186
    %v226 = vpop.f32.mrf.mxu0
    %v227 = vadd.f32 %v175, %v226
    %228 = vmatmul.f32.gmra.mxu0 %v189
    %v229 = vpop.f32.mrf.mxu0
    %v230 = vadd.f32 %v175, %v229
    %231 = vmatmul.f32.gmra.mxu0 %v192
    %v232 = vpop.f32.mrf.mxu0
    %v233 = vadd.f32 %v175, %v232
    %234 = vmatmul.f32.gmra.mxu0 %v195
    %v235 = vpop.f32.mrf.mxu0
    %v236 = vadd.f32 %v175, %v235
    %237 = vmatmul.f32.gmra.mxu0 %v198
    %v238 = vpop.f32.mrf.mxu0
    %v239 = vadd.f32 %v175, %v238
    %240 = vmatmul.f32.gmra.mxu0 %v201
    %v241 = vpop.f32.mrf.mxu0
    %v242 = vadd.f32 %v175, %v241
    %243 = vmatmul.f32.gmra.mxu0 %v204
    %v244 = vpop.f32.mrf.mxu0
    %v245 = vadd.f32 %v175, %v244
    %246 = vdwg.mxu0
    %247 = vmatpush.msra.mxu0 0.0
    %248 = vmatpush.msra.mxu0 0.0
    %249 = vmatpush.msra.mxu0 0.0
    %250 = vmatpush.msra.mxu0 0.0
    %251 = vmatpush.msra.mxu0 0.0
    %252 = vmatpush.msra.mxu0 0.0
    %253 = vmatpush.msra.mxu0 0.0
    %254 = vmatpush.msra.mxu0 0.0
    %255 = vmatpush.msra.mxu0 0.0
    %256 = vmatpush.msra.mxu0 0.0
    %257 = vmatpush.msra.mxu0 0.0
    %258 = vmatpush.msra.mxu0 0.0
    %259 = vmatpush.msra.mxu0 0.0
    %260 = vmatpush.msra.mxu0 0.0
    %261 = vmatpush.msra.mxu0 %v171
    %262 = vmatpush.msra.mxu0 %v168
    %263 = vmatmul.f32.gmra.mxu0 %v183
    %v264 = vpop.f32.mrf.mxu0
    %v265 = vadd.f32 %v176, %v264
    %266 = vmatmul.f32.gmra.mxu0 %v186
    %v267 = vpop.f32.mrf.mxu0
    %v268 = vadd.f32 %v176, %v267
    %269 = vmatmul.f32.gmra.mxu0 %v189
    %v270 = vpop.f32.mrf.mxu0
    %v271 = vadd.f32 %v176, %v270
    %272 = vmatmul.f32.gmra.mxu0 %v192
    %v273 = vpop.f32.mrf.mxu0
    %v274 = vadd.f32 %v176, %v273
    %275 = vmatmul.f32.gmra.mxu0 %v195
    %v276 = vpop.f32.mrf.mxu0
    %v277 = vadd.f32 %v176, %v276
    %278 = vmatmul.f32.gmra.mxu0 %v198
    %v279 = vpop.f32.mrf.mxu0
    %v280 = vadd.f32 %v176, %v279
    %281 = vmatmul.f32.gmra.mxu0 %v201
    %v282 = vpop.f32.mrf.mxu0
    %v283 = vadd.f32 %v176, %v282
    %284 = vmatmul.f32.gmra.mxu0 %v204
    %v285 = vpop.f32.mrf.mxu0
    %v286 = vadd.f32 %v176, %v285
    %287 = vdwg.mxu0
    %288 = vmatpush.msra.mxu0 0.0
    %289 = vmatpush.msra.mxu0 0.0
    %290 = vmatpush.msra.mxu0 0.0
    %291 = vmatpush.msra.mxu0 0.0
    %292 = vmatpush.msra.mxu0 0.0
    %293 = vmatpush.msra.mxu0 0.0
    %294 = vmatpush.msra.mxu0 0.0
    %295 = vmatpush.msra.mxu0 0.0
    %296 = vmatpush.msra.mxu0 0.0
    %297 = vmatpush.msra.mxu0 0.0
    %298 = vmatpush.msra.mxu0 0.0
    %299 = vmatpush.msra.mxu0 0.0
    %300 = vmatpush.msra.mxu0 0.0
    %301 = vmatpush.msra.mxu0 0.0
    %302 = vmatpush.msra.mxu0 %v172
    %303 = vmatpush.msra.mxu0 %v169
    %304 = vmatmul.f32.gmra.mxu0 %v183
    %v305 = vpop.f32.mrf.mxu0
    %v306 = vadd.f32 %v177, %v305
    %307 = vmatmul.f32.gmra.mxu0 %v186
    %v308 = vpop.f32.mrf.mxu0
    %v309 = vadd.f32 %v177, %v308
    %310 = vmatmul.f32.gmra.mxu0 %v189
    %v311 = vpop.f32.mrf.mxu0
    %v312 = vadd.f32 %v177, %v311
    %313 = vmatmul.f32.gmra.mxu0 %v192
    %v314 = vpop.f32.mrf.mxu0
    %v315 = vadd.f32 %v177, %v314
    %316 = vmatmul.f32.gmra.mxu0 %v195
    %v317 = vpop.f32.mrf.mxu0
    %v318 = vadd.f32 %v177, %v317
    %319 = vmatmul.f32.gmra.mxu0 %v198
    %v320 = vpop.f32.mrf.mxu0
    %v321 = vadd.f32 %v177, %v320
    %322 = vmatmul.f32.gmra.mxu0 %v201
    %v323 = vpop.f32.mrf.mxu0
    %v324 = vadd.f32 %v177, %v323
    %325 = vmatmul.f32.gmra.mxu0 %v204
    %v326 = vpop.f32.mrf.mxu0
    %v327 = vadd.f32 %v177, %v326
    %328 = vdwg.mxu0
    %329 = vst [vmem:[#allocation2] sm:$0xff] %v224
    %330 = vst [vmem:[#allocation2 + $0x8] sm:$0xff] %v265
    %331 = vst [vmem:[#allocation2 + $0x10] sm:$0xff] %v306
    %332 = vst [vmem:[#allocation2 + $0x18] sm:$0xff] %v227
    %333 = vst [vmem:[#allocation2 + $0x20] sm:$0xff] %v268
    %334 = vst [vmem:[#allocation2 + $0x28] sm:$0xff] %v309
    %335 = vst [vmem:[#allocation2 + $0x30] sm:$0xff] %v230
    %336 = vst [vmem:[#allocation2 + $0x38] sm:$0xff] %v271
    %337 = vst [vmem:[#allocation2 + $0x40] sm:$0xff] %v312
    %338 = vst [vmem:[#allocation2 + $0x48] sm:$0xff] %v233
    %339 = vst [vmem:[#allocation2 + $0x50] sm:$0xff] %v274
    %340 = vst [vmem:[#allocation2 + $0x58] sm:$0xff] %v315
    %341 = vst [vmem:[#allocation2 + $0x60] sm:$0xff] %v236
    %342 = vst [vmem:[#allocation2 + $0x68] sm:$0xff] %v277
    %343 = vst [vmem:[#allocation2 + $0x70] sm:$0xff] %v318
    %344 = vst [vmem:[#allocation2 + $0x78] sm:$0xff] %v239
    %345 = vst [vmem:[#allocation2 + $0x80] sm:$0xff] %v280
    %346 = vst [vmem:[#allocation2 + $0x88] sm:$0xff] %v321
    %347 = vst [vmem:[#allocation2 + $0x90] sm:$0xff] %v242
    %348 = vst [vmem:[#allocation2 + $0x98] sm:$0xff] %v283
    %349 = vst [vmem:[#allocation2 + $0xa0] sm:$0xff] %v324
    %350 = vst [vmem:[#allocation2 + $0xa8] sm:$0xff] %v245
    %351 = vst [vmem:[#allocation2 + $0xb0] sm:$0xff] %v286
    %352 = vst [vmem:[#allocation2 + $0xb8] sm:$0xff] %v327
    %v353 = vld [vmem:[#allocation3] sm:$0xff]
    %s354 = scalar_lea.vmem [#allocation3], 8
    %v355 = vld [vmem:[%s354] sm:$0xff]
    %s356 = smul.u32 0, 3
    %s357 = smul.addr %s356, 8
    %s358 = scalar_lea.vmem [#allocation2], %s357
    %v359 = vld [vmem:[%s358] sm:$0xff]
    %v360 = vld [vmem:[%s358 + $0x8] sm:$0xff]
    %v361 = vld [vmem:[%s358 + $0x10] sm:$0xff]
    %v362 = vld [vmem:[#allocation7] sm:$0xff]
    %v363 = vld [vmem:[#allocation7 + $0x8] sm:$0xff]
    %v364 = vld [vmem:[#allocation7 + $0x10] sm:$0xff]
    %v365 = vld [vmem:[#allocation7 + $0x18] sm:$0xff]
    %v366 = vld [vmem:[#allocation7 + $0x20] sm:$0xff]
    %v367 = vld [vmem:[#allocation7 + $0x28] sm:$0xff]
    %v368 = vld [vmem:[#allocation7 + $0x30] sm:$0xff]
    %v369 = vld [vmem:[#allocation7 + $0x38] sm:$0xff]
    %v370 = vld [vmem:[#allocation7 + $0x40] sm:$0xff]
    %v371 = vld [vmem:[#allocation7 + $0x48] sm:$0xff]
    %v372 = vld [vmem:[#allocation7 + $0x50] sm:$0xff]
    %v373 = vld [vmem:[#allocation7 + $0x58] sm:$0xff]
    %v374 = vld [vmem:[#allocation7 + $0x60] sm:$0xff]
    %v375 = vld [vmem:[#allocation7 + $0x68] sm:$0xff]
    %v376 = vld [vmem:[#allocation7 + $0x70] sm:$0xff]
    %v377 = vld [vmem:[#allocation7 + $0x78] sm:$0xff]
    %v378 = vld [vmem:[#allocation7 + $0x80] sm:$0xff]
    %v379 = vld [vmem:[#allocation7 + $0x88] sm:$0xff]
    %v380 = vld [vmem:[#allocation7 + $0x90] sm:$0xff]
    %v381 = vld [vmem:[#allocation7 + $0x98] sm:$0xff]
    %v382 = vld [vmem:[#allocation7 + $0xa0] sm:$0xff]
    %v383 = vld [vmem:[#allocation7 + $0xa8] sm:$0xff]
    %v384 = vld [vmem:[#allocation7 + $0xb0] sm:$0xff]
    %v385 = vld [vmem:[#allocation7 + $0xb8] sm:$0xff]
    %v386 = vld [vmem:[#allocation7 + $0xc0] sm:$0xff]
    %v387 = vld [vmem:[#allocation7 + $0xc8] sm:$0xff]
    %v388 = vld [vmem:[#allocation7 + $0xd0] sm:$0xff]
    %v389 = vld [vmem:[#allocation7 + $0xd8] sm:$0xff]
    %v390 = vld [vmem:[#allocation7 + $0xe0] sm:$0xff]
    %v391 = vld [vmem:[#allocation7 + $0xe8] sm:$0xff]
    %v392 = vld [vmem:[#allocation7 + $0xf0] sm:$0xff]
    %v393 = vld [vmem:[#allocation7 + $0xf8] sm:$0xff]
    %v394 = vld [vmem:[#allocation7 + $0x100] sm:$0xff]
    %v395 = vld [vmem:[#allocation7 + $0x108] sm:$0xff]
    %v396 = vld [vmem:[#allocation7 + $0x110] sm:$0xff]
    %v397 = vld [vmem:[#allocation7 + $0x118] sm:$0xff]
    %v398 = vld [vmem:[#allocation7 + $0x120] sm:$0xff]
    %v399 = vld [vmem:[#allocation7 + $0x128] sm:$0xff]
    %v400 = vld [vmem:[#allocation7 + $0x130] sm:$0xff]
    %v401 = vld [vmem:[#allocation7 + $0x138] sm:$0xff]
    %v402 = vld [vmem:[#allocation7 + $0x140] sm:$0xff]
    %v403 = vld [vmem:[#allocation7 + $0x148] sm:$0xff]
    %v404 = vld [vmem:[#allocation7 + $0x150] sm:$0xff]
    %v405 = vld [vmem:[#allocation7 + $0x158] sm:$0xff]
    %v406 = vld [vmem:[#allocation7 + $0x160] sm:$0xff]
    %v407 = vld [vmem:[#allocation7 + $0x168] sm:$0xff]
    %v408 = vld [vmem:[#allocation7 + $0x170] sm:$0xff]
    %v409 = vld [vmem:[#allocation7 + $0x178] sm:$0xff]
    %410 = vmatpush.msra.mxu0 %v407
    %411 = vmatpush.msra.mxu0 %v404
    %412 = vmatpush.msra.mxu0 %v401
    %413 = vmatpush.msra.mxu0 %v398
    %414 = vmatpush.msra.mxu0 %v395
    %415 = vmatpush.msra.mxu0 %v392
    %416 = vmatpush.msra.mxu0 %v389
    %417 = vmatpush.msra.mxu0 %v386
    %418 = vmatpush.msra.mxu0 %v383
    %419 = vmatpush.msra.mxu0 %v380
    %420 = vmatpush.msra.mxu0 %v377
    %421 = vmatpush.msra.mxu0 %v374
    %422 = vmatpush.msra.mxu0 %v371
    %423 = vmatpush.msra.mxu0 %v368
    %424 = vmatpush.msra.mxu0 %v365
    %425 = vmatpush.msra.mxu0 %v362
    %426 = vmatmul.f32.gmra.mxu0 %v353
    %v427 = vpop.f32.mrf.mxu0
    %v428 = vadd.f32 0.0, %v427
    %429 = vdwg.mxu0
    %430 = vmatpush.msra.mxu0 %v408
    %431 = vmatpush.msra.mxu0 %v405
    %432 = vmatpush.msra.mxu0 %v402
    %433 = vmatpush.msra.mxu0 %v399
    %434 = vmatpush.msra.mxu0 %v396
    %435 = vmatpush.msra.mxu0 %v393
    %436 = vmatpush.msra.mxu0 %v390
    %437 = vmatpush.msra.mxu0 %v387
    %438 = vmatpush.msra.mxu0 %v384
    %439 = vmatpush.msra.mxu0 %v381
    %440 = vmatpush.msra.mxu0 %v378
    %441 = vmatpush.msra.mxu0 %v375
    %442 = vmatpush.msra.mxu0 %v372
    %443 = vmatpush.msra.mxu0 %v369
    %444 = vmatpush.msra.mxu0 %v366
    %445 = vmatpush.msra.mxu0 %v363
    %446 = vmatmul.f32.gmra.mxu0 %v353
    %v447 = vpop.f32.mrf.mxu0
    %v448 = vadd.f32 0.0, %v447
    %449 = vdwg.mxu0
    %450 = vmatpush.msra.mxu0 %v409
    %451 = vmatpush.msra.mxu0 %v406
    %452 = vmatpush.msra.mxu0 %v403
    %453 = vmatpush.msra.mxu0 %v400
    %454 = vmatpush.msra.mxu0 %v397
    %455 = vmatpush.msra.mxu0 %v394
    %456 = vmatpush.msra.mxu0 %v391
    %457 = vmatpush.msra.mxu0 %v388
    %458 = vmatpush.msra.mxu0 %v385
    %459 = vmatpush.msra.mxu0 %v382
    %460 = vmatpush.msra.mxu0 %v379
    %461 = vmatpush.msra.mxu0 %v376
    %462 = vmatpush.msra.mxu0 %v373
    %463 = vmatpush.msra.mxu0 %v370
    %464 = vmatpush.msra.mxu0 %v367
    %465 = vmatpush.msra.mxu0 %v364
    %466 = vmatmul.f32.gmra.mxu0 %v353
    %v467 = vpop.f32.mrf.mxu0
    %v468 = vadd.f32 0.0, %v467
    %469 = vdwg.mxu0
    %v470 = vld [vmem:[%s6] sm:$0x1]
    %v471 = vadd.f32 %v359, %v428
    %v472 = vxor.u32 %v471, 2147483648
    %v473 = vmul.f32 %v472, 1.442695
    %v474 = vpow.pop %v473
    %v475 = vadd.f32 %v474, 1.0
    %v476 = vrcp.pop %v475
    %v477 = vmul.f32 %v475, %v476
    %v478 = vsub.f32 1.0, %v477
    %v479 = vmul.f32 %v476, %v478
    %v480 = vadd.f32 %v476, %v479
    %vm481 = vweird.f32 %v475
    %vm482 = vweird.f32 %v476
    %vm483 = vmor %vm481, %vm482
    %v484 = vsel %vm483, %v476, %v480
    %v485 = vand.u32 2147483647, %v475
    %vm486 = vcmp.eq.f32.partialorder %v485, 8.507059e+37
    %v487 = vand.u32 %v475, 2147483648
    %v488 = vor.u32 1.1754944e-38, %v487
    %v489 = vsel %vm486, %v488, %v484
    %v490 = vmul.f32 1.0, %v489
    %v491 = vadd.f32 %v360, %v448
    %v492 = vxor.u32 %v491, 2147483648
    %v493 = vmul.f32 %v492, 1.442695
    %v494 = vpow.pop %v493
    %v495 = vadd.f32 %v494, 1.0
    %v496 = vrcp.pop %v495
    %v497 = vmul.f32 %v495, %v496
    %v498 = vsub.f32 1.0, %v497
    %v499 = vmul.f32 %v496, %v498
    %v500 = vadd.f32 %v496, %v499
    %vm501 = vweird.f32 %v495
    %vm502 = vweird.f32 %v496
    %vm503 = vmor %vm501, %vm502
    %v504 = vsel %vm503, %v496, %v500
    %v505 = vand.u32 2147483647, %v495
    %vm506 = vcmp.eq.f32.partialorder %v505, 8.507059e+37
    %v507 = vand.u32 %v495, 2147483648
    %v508 = vor.u32 1.1754944e-38, %v507
    %v509 = vsel %vm506, %v508, %v504
    %v510 = vmul.f32 1.0, %v509
    %v512 = vperm.slane %v470, 0
    %v514 = vadd.f32 %v468, %v512
    %v515 = vmul.f32 %v490, %v514
    %v516 = vadd.f32 %v361, %v515
    %v517 = vtanh.pop %v516
    %v518 = vsub.f32 1.0, %v510
    %v519 = vmul.f32 %v518, %v517
    %v520 = vmul.f32 %v510, %v353
    %v521 = vadd.f32 %v519, %v520
    %v522 = vld [vmem:[#allocation9] sm:$0xff]
    %v523 = vld [vmem:[#allocation9 + $0x8] sm:$0xff]
    %v524 = vld [vmem:[#allocation9 + $0x10] sm:$0xff]
    %v525 = vld [vmem:[#allocation9 + $0x18] sm:$0xff]
    %v526 = vld [vmem:[#allocation9 + $0x20] sm:$0xff]
    %v527 = vld [vmem:[#allocation9 + $0x28] sm:$0xff]
    %v528 = vld [vmem:[#allocation9 + $0x30] sm:$0xff]
    %v529 = vld [vmem:[#allocation9 + $0x38] sm:$0xff]
    %v530 = vld [vmem:[#allocation9 + $0x40] sm:$0xff]
    %v531 = vld [vmem:[#allocation9 + $0x48] sm:$0xff]
    %v532 = vld [vmem:[#allocation9 + $0x50] sm:$0xff]
    %v533 = vld [vmem:[#allocation9 + $0x58] sm:$0xff]
    %v534 = vld [vmem:[#allocation9 + $0x60] sm:$0xff]
    %v535 = vld [vmem:[#allocation9 + $0x68] sm:$0xff]
    %v536 = vld [vmem:[#allocation9 + $0x70] sm:$0xff]
    %v537 = vld [vmem:[#allocation9 + $0x78] sm:$0xff]
    %v538 = vld [vmem:[#allocation9 + $0x80] sm:$0xff]
    %v539 = vld [vmem:[#allocation9 + $0x88] sm:$0xff]
    %v540 = vld [vmem:[#allocation9 + $0x90] sm:$0xff]
    %v541 = vld [vmem:[#allocation9 + $0x98] sm:$0xff]
    %v542 = vld [vmem:[#allocation9 + $0xa0] sm:$0xff]
    %v543 = vld [vmem:[#allocation9 + $0xa8] sm:$0xff]
    %v544 = vld [vmem:[#allocation9 + $0xb0] sm:$0xff]
    %v545 = vld [vmem:[#allocation9 + $0xb8] sm:$0xff]
    %v546 = vld [vmem:[#allocation9 + $0xc0] sm:$0xff]
    %v547 = vld [vmem:[#allocation9 + $0xc8] sm:$0xff]
    %v548 = vld [vmem:[#allocation9 + $0xd0] sm:$0xff]
    %v549 = vld [vmem:[#allocation9 + $0xd8] sm:$0xff]
    %v550 = vld [vmem:[#allocation9 + $0xe0] sm:$0xff]
    %v551 = vld [vmem:[#allocation9 + $0xe8] sm:$0xff]
    %v552 = vld [vmem:[#allocation9 + $0xf0] sm:$0xff]
    %v553 = vld [vmem:[#allocation9 + $0xf8] sm:$0xff]
    %v554 = vld [vmem:[#allocation9 + $0x100] sm:$0xff]
    %v555 = vld [vmem:[#allocation9 + $0x108] sm:$0xff]
    %v556 = vld [vmem:[#allocation9 + $0x110] sm:$0xff]
    %v557 = vld [vmem:[#allocation9 + $0x118] sm:$0xff]
    %v558 = vld [vmem:[#allocation9 + $0x120] sm:$0xff]
    %v559 = vld [vmem:[#allocation9 + $0x128] sm:$0xff]
    %v560 = vld [vmem:[#allocation9 + $0x130] sm:$0xff]
    %v561 = vld [vmem:[#allocation9 + $0x138] sm:$0xff]
    %v562 = vld [vmem:[#allocation9 + $0x140] sm:$0xff]
    %v563 = vld [vmem:[#allocation9 + $0x148] sm:$0xff]
    %v564 = vld [vmem:[#allocation9 + $0x150] sm:$0xff]
    %v565 = vld [vmem:[#allocation9 + $0x158] sm:$0xff]
    %v566 = vld [vmem:[#allocation9 + $0x160] sm:$0xff]
    %v567 = vld [vmem:[#allocation9 + $0x168] sm:$0xff]
    %v568 = vld [vmem:[#allocation9 + $0x170] sm:$0xff]
    %v569 = vld [vmem:[#allocation9 + $0x178] sm:$0xff]
    %v570 = vld [vmem:[%s9] sm:$0x7]
    %v572 = vperm.slane %v570, 0
    %v573 = vperm.slane %v570, 1
    %v574 = vperm.slane %v570, 2
    %578 = vmatpush.msra.mxu0 %v567
    %579 = vmatpush.msra.mxu0 %v564
    %580 = vmatpush.msra.mxu0 %v561
    %581 = vmatpush.msra.mxu0 %v558
    %582 = vmatpush.msra.mxu0 %v555
    %583 = vmatpush.msra.mxu0 %v552
    %584 = vmatpush.msra.mxu0 %v549
    %585 = vmatpush.msra.mxu0 %v546
    %586 = vmatpush.msra.mxu0 %v543
    %587 = vmatpush.msra.mxu0 %v540
    %588 = vmatpush.msra.mxu0 %v537
    %589 = vmatpush.msra.mxu0 %v534
    %590 = vmatpush.msra.mxu0 %v531
    %591 = vmatpush.msra.mxu0 %v528
    %592 = vmatpush.msra.mxu0 %v525
    %593 = vmatpush.msra.mxu0 %v522
    %594 = vmatmul.f32.gmra.mxu0 %v521
    %v595 = vpop.f32.mrf.mxu0
    %v596 = vadd.f32 %v572, %v595
    %597 = vdwg.mxu0
    %598 = vmatpush.msra.mxu0 %v568
    %599 = vmatpush.msra.mxu0 %v565
    %600 = vmatpush.msra.mxu0 %v562
    %601 = vmatpush.msra.mxu0 %v559
    %602 = vmatpush.msra.mxu0 %v556
    %603 = vmatpush.msra.mxu0 %v553
    %604 = vmatpush.msra.mxu0 %v550
    %605 = vmatpush.msra.mxu0 %v547
    %606 = vmatpush.msra.mxu0 %v544
    %607 = vmatpush.msra.mxu0 %v541
    %608 = vmatpush.msra.mxu0 %v538
    %609 = vmatpush.msra.mxu0 %v535
    %610 = vmatpush.msra.mxu0 %v532
    %611 = vmatpush.msra.mxu0 %v529
    %612 = vmatpush.msra.mxu0 %v526
    %613 = vmatpush.msra.mxu0 %v523
    %614 = vmatmul.f32.gmra.mxu0 %v521
    %v615 = vpop.f32.mrf.mxu0
    %v616 = vadd.f32 %v573, %v615
    %617 = vdwg.mxu0
    %618 = vmatpush.msra.mxu0 %v569
    %619 = vmatpush.msra.mxu0 %v566
    %620 = vmatpush.msra.mxu0 %v563
    %621 = vmatpush.msra.mxu0 %v560
    %622 = vmatpush.msra.mxu0 %v557
    %623 = vmatpush.msra.mxu0 %v554
    %624 = vmatpush.msra.mxu0 %v551
    %625 = vmatpush.msra.mxu0 %v548
    %626 = vmatpush.msra.mxu0 %v545
    %627 = vmatpush.msra.mxu0 %v542
    %628 = vmatpush.msra.mxu0 %v539
    %629 = vmatpush.msra.mxu0 %v536
    %630 = vmatpush.msra.mxu0 %v533
    %631 = vmatpush.msra.mxu0 %v530
    %632 = vmatpush.msra.mxu0 %v527
    %633 = vmatpush.msra.mxu0 %v524
    %634 = vmatmul.f32.gmra.mxu0 %v521
    %v635 = vpop.f32.mrf.mxu0
    %v636 = vadd.f32 %v574, %v635
    %637 = vdwg.mxu0
    %v638 = vld [vmem:[#allocation10] sm:$0xff]
    %v639 = vld [vmem:[#allocation10 + $0x8] sm:$0xff]
    %v640 = vld [vmem:[#allocation10 + $0x10] sm:$0xff]
    %v641 = vld [vmem:[#allocation10 + $0x18] sm:$0xff]
    %v642 = vld [vmem:[#allocation10 + $0x20] sm:$0xff]
    %v643 = vld [vmem:[#allocation10 + $0x28] sm:$0xff]
    %v644 = vld [vmem:[#allocation10 + $0x30] sm:$0xff]
    %v645 = vld [vmem:[#allocation10 + $0x38] sm:$0xff]
    %v646 = vld [vmem:[#allocation10 + $0x40] sm:$0xff]
    %v647 = vld [vmem:[#allocation10 + $0x48] sm:$0xff]
    %v648 = vld [vmem:[#allocation10 + $0x50] sm:$0xff]
    %v649 = vld [vmem:[#allocation10 + $0x58] sm:$0xff]
    %v650 = vld [vmem:[#allocation10 + $0x60] sm:$0xff]
    %v651 = vld [vmem:[#allocation10 + $0x68] sm:$0xff]
    %v652 = vld [vmem:[#allocation10 + $0x70] sm:$0xff]
    %v653 = vld [vmem:[#allocation10 + $0x78] sm:$0xff]
    %v654 = vld [vmem:[#allocation10 + $0x80] sm:$0xff]
    %v655 = vld [vmem:[#allocation10 + $0x88] sm:$0xff]
    %v656 = vld [vmem:[#allocation10 + $0x90] sm:$0xff]
    %v657 = vld [vmem:[#allocation10 + $0x98] sm:$0xff]
    %v658 = vld [vmem:[#allocation10 + $0xa0] sm:$0xff]
    %v659 = vld [vmem:[#allocation10 + $0xa8] sm:$0xff]
    %v660 = vld [vmem:[#allocation10 + $0xb0] sm:$0xff]
    %v661 = vld [vmem:[#allocation10 + $0xb8] sm:$0xff]
    %v662 = vld [vmem:[#allocation10 + $0xc0] sm:$0xff]
    %v663 = vld [vmem:[#allocation10 + $0xc8] sm:$0xff]
    %v664 = vld [vmem:[#allocation10 + $0xd0] sm:$0xff]
    %v665 = vld [vmem:[#allocation10 + $0xd8] sm:$0xff]
    %v666 = vld [vmem:[#allocation10 + $0xe0] sm:$0xff]
    %v667 = vld [vmem:[#allocation10 + $0xe8] sm:$0xff]
    %v668 = vld [vmem:[#allocation10 + $0xf0] sm:$0xff]
    %v669 = vld [vmem:[#allocation10 + $0xf8] sm:$0xff]
    %v670 = vld [vmem:[#allocation10 + $0x100] sm:$0xff]
    %v671 = vld [vmem:[#allocation10 + $0x108] sm:$0xff]
    %v672 = vld [vmem:[#allocation10 + $0x110] sm:$0xff]
    %v673 = vld [vmem:[#allocation10 + $0x118] sm:$0xff]
    %v674 = vld [vmem:[#allocation10 + $0x120] sm:$0xff]
    %v675 = vld [vmem:[#allocation10 + $0x128] sm:$0xff]
    %v676 = vld [vmem:[#allocation10 + $0x130] sm:$0xff]
    %v677 = vld [vmem:[#allocation10 + $0x138] sm:$0xff]
    %v678 = vld [vmem:[#allocation10 + $0x140] sm:$0xff]
    %v679 = vld [vmem:[#allocation10 + $0x148] sm:$0xff]
    %v680 = vld [vmem:[#allocation10 + $0x150] sm:$0xff]
    %v681 = vld [vmem:[#allocation10 + $0x158] sm:$0xff]
    %v682 = vld [vmem:[#allocation10 + $0x160] sm:$0xff]
    %v683 = vld [vmem:[#allocation10 + $0x168] sm:$0xff]
    %v684 = vld [vmem:[#allocation10 + $0x170] sm:$0xff]
    %v685 = vld [vmem:[#allocation10 + $0x178] sm:$0xff]
    %686 = vmatpush.msra.mxu0 %v683
    %687 = vmatpush.msra.mxu0 %v680
    %688 = vmatpush.msra.mxu0 %v677
    %689 = vmatpush.msra.mxu0 %v674
    %690 = vmatpush.msra.mxu0 %v671
    %691 = vmatpush.msra.mxu0 %v668
    %692 = vmatpush.msra.mxu0 %v665
    %693 = vmatpush.msra.mxu0 %v662
    %694 = vmatpush.msra.mxu0 %v659
    %695 = vmatpush.msra.mxu0 %v656
    %696 = vmatpush.msra.mxu0 %v653
    %697 = vmatpush.msra.mxu0 %v650
    %698 = vmatpush.msra.mxu0 %v647
    %699 = vmatpush.msra.mxu0 %v644
    %700 = vmatpush.msra.mxu0 %v641
    %701 = vmatpush.msra.mxu0 %v638
    %702 = vmatmul.f32.gmra.mxu0 %v355
    %v703 = vpop.f32.mrf.mxu0
    %v704 = vadd.f32 0.0, %v703
    %705 = vdwg.mxu0
    %706 = vmatpush.msra.mxu0 %v684
    %707 = vmatpush.msra.mxu0 %v681
    %708 = vmatpush.msra.mxu0 %v678
    %709 = vmatpush.msra.mxu0 %v675
    %710 = vmatpush.msra.mxu0 %v672
    %711 = vmatpush.msra.mxu0 %v669
    %712 = vmatpush.msra.mxu0 %v666
    %713 = vmatpush.msra.mxu0 %v663
    %714 = vmatpush.msra.mxu0 %v660
    %715 = vmatpush.msra.mxu0 %v657
    %716 = vmatpush.msra.mxu0 %v654
    %717 = vmatpush.msra.mxu0 %v651
    %718 = vmatpush.msra.mxu0 %v648
    %719 = vmatpush.msra.mxu0 %v645
    %720 = vmatpush.msra.mxu0 %v642
    %721 = vmatpush.msra.mxu0 %v639
    %722 = vmatmul.f32.gmra.mxu0 %v355
    %v723 = vpop.f32.mrf.mxu0
    %v724 = vadd.f32 0.0, %v723
    %725 = vdwg.mxu0
    %726 = vmatpush.msra.mxu0 %v685
    %727 = vmatpush.msra.mxu0 %v682
    %728 = vmatpush.msra.mxu0 %v679
    %729 = vmatpush.msra.mxu0 %v676
    %730 = vmatpush.msra.mxu0 %v673
    %731 = vmatpush.msra.mxu0 %v670
    %732 = vmatpush.msra.mxu0 %v667
    %733 = vmatpush.msra.mxu0 %v664
    %734 = vmatpush.msra.mxu0 %v661
    %735 = vmatpush.msra.mxu0 %v658
    %736 = vmatpush.msra.mxu0 %v655
    %737 = vmatpush.msra.mxu0 %v652
    %738 = vmatpush.msra.mxu0 %v649
    %739 = vmatpush.msra.mxu0 %v646
    %740 = vmatpush.msra.mxu0 %v643
    %741 = vmatpush.msra.mxu0 %v640
    %742 = vmatmul.f32.gmra.mxu0 %v355
    %v743 = vpop.f32.mrf.mxu0
    %v744 = vadd.f32 0.0, %v743
    %745 = vdwg.mxu0
    %v746 = vld [vmem:[%s10] sm:$0x1]
    %v747 = vadd.f32 %v596, %v704
    %v748 = vxor.u32 %v747, 2147483648
    %v749 = vmul.f32 %v748, 1.442695
    %v750 = vpow.pop %v749
    %v751 = vadd.f32 %v750, 1.0
    %v752 = vrcp.pop %v751
    %v753 = vmul.f32 %v751, %v752
    %v754 = vsub.f32 1.0, %v753
    %v755 = vmul.f32 %v752, %v754
    %v756 = vadd.f32 %v752, %v755
    %vm757 = vweird.f32 %v751
    %vm758 = vweird.f32 %v752
    %vm759 = vmor %vm757, %vm758
    %v760 = vsel %vm759, %v752, %v756
    %v761 = vand.u32 2147483647, %v751
    %vm762 = vcmp.eq.f32.partialorder %v761, 8.507059e+37
    %v763 = vand.u32 %v751, 2147483648
    %v764 = vor.u32 1.1754944e-38, %v763
    %v765 = vsel %vm762, %v764, %v760
    %v766 = vmul.f32 1.0, %v765
    %v767 = vadd.f32 %v616, %v724
    %v768 = vxor.u32 %v767, 2147483648
    %v769 = vmul.f32 %v768, 1.442695
    %v770 = vpow.pop %v769
    %v771 = vadd.f32 %v770, 1.0
    %v772 = vrcp.pop %v771
    %v773 = vmul.f32 %v771, %v772
    %v774 = vsub.f32 1.0, %v773
    %v775 = vmul.f32 %v772, %v774
    %v776 = vadd.f32 %v772, %v775
    %vm777 = vweird.f32 %v771
    %vm778 = vweird.f32 %v772
    %vm779 = vmor %vm777, %vm778
    %v780 = vsel %vm779, %v772, %v776
    %v781 = vand.u32 2147483647, %v771
    %vm782 = vcmp.eq.f32.partialorder %v781, 8.507059e+37
    %v783 = vand.u32 %v771, 2147483648
    %v784 = vor.u32 1.1754944e-38, %v783
    %v785 = vsel %vm782, %v784, %v780
    %v786 = vmul.f32 1.0, %v785
    %v788 = vperm.slane %v746, 0
    %v790 = vadd.f32 %v744, %v788
    %v791 = vmul.f32 %v766, %v790
    %v792 = vadd.f32 %v636, %v791
    %v793 = vtanh.pop %v792
    %v794 = vsub.f32 1.0, %v786
    %v795 = vmul.f32 %v794, %v793
    %v796 = vmul.f32 %v786, %v355
    %v797 = vadd.f32 %v795, %v796
    %s798 = smul.u32 1, 3
    %s799 = smul.addr %s798, 8
    %s800 = scalar_lea.vmem [#allocation2], %s799
    %v801 = vld [vmem:[%s800] sm:$0xff]
    %v802 = vld [vmem:[%s800 + $0x8] sm:$0xff]
    %v803 = vld [vmem:[%s800 + $0x10] sm:$0xff]
    %804 = vmatpush.msra.mxu0 %v407
    %805 = vmatpush.msra.mxu0 %v404
    %806 = vmatpush.msra.mxu0 %v401
    %807 = vmatpush.msra.mxu0 %v398
    %808 = vmatpush.msra.mxu0 %v395
    %809 = vmatpush.msra.mxu0 %v392
    %810 = vmatpush.msra.mxu0 %v389
    %811 = vmatpush.msra.mxu0 %v386
    %812 = vmatpush.msra.mxu0 %v383
    %813 = vmatpush.msra.mxu0 %v380
    %814 = vmatpush.msra.mxu0 %v377
    %815 = vmatpush.msra.mxu0 %v374
    %816 = vmatpush.msra.mxu0 %v371
    %817 = vmatpush.msra.mxu0 %v368
    %818 = vmatpush.msra.mxu0 %v365
    %819 = vmatpush.msra.mxu0 %v362
    %820 = vmatmul.f32.gmra.mxu0 %v521
    %v821 = vpop.f32.mrf.mxu0
    %v822 = vadd.f32 0.0, %v821
    %823 = vdwg.mxu0
    %824 = vmatpush.msra.mxu0 %v408
    %825 = vmatpush.msra.mxu0 %v405
    %826 = vmatpush.msra.mxu0 %v402
    %827 = vmatpush.msra.mxu0 %v399
    %828 = vmatpush.msra.mxu0 %v396
    %829 = vmatpush.msra.mxu0 %v393
    %830 = vmatpush.msra.mxu0 %v390
    %831 = vmatpush.msra.mxu0 %v387
    %832 = vmatpush.msra.mxu0 %v384
    %833 = vmatpush.msra.mxu0 %v381
    %834 = vmatpush.msra.mxu0 %v378
    %835 = vmatpush.msra.mxu0 %v375
    %836 = vmatpush.msra.mxu0 %v372
    %837 = vmatpush.msra.mxu0 %v369
    %838 = vmatpush.msra.mxu0 %v366
    %839 = vmatpush.msra.mxu0 %v363
    %840 = vmatmul.f32.gmra.mxu0 %v521
    %v841 = vpop.f32.mrf.mxu0
    %v842 = vadd.f32 0.0, %v841
    %843 = vdwg.mxu0
    %844 = vmatpush.msra.mxu0 %v409
    %845 = vmatpush.msra.mxu0 %v406
    %846 = vmatpush.msra.mxu0 %v403
    %847 = vmatpush.msra.mxu0 %v400
    %848 = vmatpush.msra.mxu0 %v397
    %849 = vmatpush.msra.mxu0 %v394
    %850 = vmatpush.msra.mxu0 %v391
    %851 = vmatpush.msra.mxu0 %v388
    %852 = vmatpush.msra.mxu0 %v385
    %853 = vmatpush.msra.mxu0 %v382
    %854 = vmatpush.msra.mxu0 %v379
    %855 = vmatpush.msra.mxu0 %v376
    %856 = vmatpush.msra.mxu0 %v373
    %857 = vmatpush.msra.mxu0 %v370
    %858 = vmatpush.msra.mxu0 %v367
    %859 = vmatpush.msra.mxu0 %v364
    %860 = vmatmul.f32.gmra.mxu0 %v521
    %v861 = vpop.f32.mrf.mxu0
    %v862 = vadd.f32 0.0, %v861
    %863 = vdwg.mxu0
    %v864 = vadd.f32 %v801, %v822
    %v865 = vxor.u32 %v864, 2147483648
    %v866 = vmul.f32 %v865, 1.442695
    %v867 = vpow.pop %v866
    %v868 = vadd.f32 %v867, 1.0
    %v869 = vrcp.pop %v868
    %v870 = vmul.f32 %v868, %v869
    %v871 = vsub.f32 1.0, %v870
    %v872 = vmul.f32 %v869, %v871
    %v873 = vadd.f32 %v869, %v872
    %vm874 = vweird.f32 %v868
    %vm875 = vweird.f32 %v869
    %vm876 = vmor %vm874, %vm875
    %v877 = vsel %vm876, %v869, %v873
    %v878 = vand.u32 2147483647, %v868
    %vm879 = vcmp.eq.f32.partialorder %v878, 8.507059e+37
    %v880 = vand.u32 %v868, 2147483648
    %v881 = vor.u32 1.1754944e-38, %v880
    %v882 = vsel %vm879, %v881, %v877
    %v883 = vmul.f32 1.0, %v882
    %v884 = vadd.f32 %v802, %v842
    %v885 = vxor.u32 %v884, 2147483648
    %v886 = vmul.f32 %v885, 1.442695
    %v887 = vpow.pop %v886
    %v888 = vadd.f32 %v887, 1.0
    %v889 = vrcp.pop %v888
    %v890 = vmul.f32 %v888, %v889
    %v891 = vsub.f32 1.0, %v890
    %v892 = vmul.f32 %v889, %v891
    %v893 = vadd.f32 %v889, %v892
    %vm894 = vweird.f32 %v888
    %vm895 = vweird.f32 %v889
    %vm896 = vmor %vm894, %vm895
    %v897 = vsel %vm896, %v889, %v893
    %v898 = vand.u32 2147483647, %v888
    %vm899 = vcmp.eq.f32.partialorder %v898, 8.507059e+37
    %v900 = vand.u32 %v888, 2147483648
    %v901 = vor.u32 1.1754944e-38, %v900
    %v902 = vsel %vm899, %v901, %v897
    %v903 = vmul.f32 1.0, %v902
    %v904 = vadd.f32 %v862, %v512
    %v905 = vmul.f32 %v883, %v904
    %v906 = vadd.f32 %v803, %v905
    %v907 = vtanh.pop %v906
    %v908 = vsub.f32 1.0, %v903
    %v909 = vmul.f32 %v908, %v907
    %v910 = vmul.f32 %v903, %v521
    %v911 = vadd.f32 %v909, %v910
    %912 = vmatpush.msra.mxu0 %v567
    %913 = vmatpush.msra.mxu0 %v564
    %914 = vmatpush.msra.mxu0 %v561
    %915 = vmatpush.msra.mxu0 %v558
    %916 = vmatpush.msra.mxu0 %v555
    %917 = vmatpush.msra.mxu0 %v552
    %918 = vmatpush.msra.mxu0 %v549
    %919 = vmatpush.msra.mxu0 %v546
    %920 = vmatpush.msra.mxu0 %v543
    %921 = vmatpush.msra.mxu0 %v540
    %922 = vmatpush.msra.mxu0 %v537
    %923 = vmatpush.msra.mxu0 %v534
    %924 = vmatpush.msra.mxu0 %v531
    %925 = vmatpush.msra.mxu0 %v528
    %926 = vmatpush.msra.mxu0 %v525
    %927 = vmatpush.msra.mxu0 %v522
    %928 = vmatmul.f32.gmra.mxu0 %v911
    %v929 = vpop.f32.mrf.mxu0
    %v930 = vadd.f32 %v572, %v929
    %931 = vdwg.mxu0
    %932 = vmatpush.msra.mxu0 %v568
    %933 = vmatpush.msra.mxu0 %v565
    %934 = vmatpush.msra.mxu0 %v562
    %935 = vmatpush.msra.mxu0 %v559
    %936 = vmatpush.msra.mxu0 %v556
    %937 = vmatpush.msra.mxu0 %v553
    %938 = vmatpush.msra.mxu0 %v550
    %939 = vmatpush.msra.mxu0 %v547
    %940 = vmatpush.msra.mxu0 %v544
    %941 = vmatpush.msra.mxu0 %v541
    %942 = vmatpush.msra.mxu0 %v538
    %943 = vmatpush.msra.mxu0 %v535
    %944 = vmatpush.msra.mxu0 %v532
    %945 = vmatpush.msra.mxu0 %v529
    %946 = vmatpush.msra.mxu0 %v526
    %947 = vmatpush.msra.mxu0 %v523
    %948 = vmatmul.f32.gmra.mxu0 %v911
    %v949 = vpop.f32.mrf.mxu0
    %v950 = vadd.f32 %v573, %v949
    %951 = vdwg.mxu0
    %952 = vmatpush.msra.mxu0 %v569
    %953 = vmatpush.msra.mxu0 %v566
    %954 = vmatpush.msra.mxu0 %v563
    %955 = vmatpush.msra.mxu0 %v560
    %956 = vmatpush.msra.mxu0 %v557
    %957 = vmatpush.msra.mxu0 %v554
    %958 = vmatpush.msra.mxu0 %v551
    %959 = vmatpush.msra.mxu0 %v548
    %960 = vmatpush.msra.mxu0 %v545
    %961 = vmatpush.msra.mxu0 %v542
    %962 = vmatpush.msra.mxu0 %v539
    %963 = vmatpush.msra.mxu0 %v536
    %964 = vmatpush.msra.mxu0 %v533
    %965 = vmatpush.msra.mxu0 %v530
    %966 = vmatpush.msra.mxu0 %v527
    %967 = vmatpush.msra.mxu0 %v524
    %968 = vmatmul.f32.gmra.mxu0 %v911
    %v969 = vpop.f32.mrf.mxu0
    %v970 = vadd.f32 %v574, %v969
    %971 = vdwg.mxu0
    %972 = vmatpush.msra.mxu0 %v683
    %973 = vmatpush.msra.mxu0 %v680
    %974 = vmatpush.msra.mxu0 %v677
    %975 = vmatpush.msra.mxu0 %v674
    %976 = vmatpush.msra.mxu0 %v671
    %977 = vmatpush.msra.mxu0 %v668
    %978 = vmatpush.msra.mxu0 %v665
    %979 = vmatpush.msra.mxu0 %v662
    %980 = vmatpush.msra.mxu0 %v659
    %981 = vmatpush.msra.mxu0 %v656
    %982 = vmatpush.msra.mxu0 %v653
    %983 = vmatpush.msra.mxu0 %v650
    %984 = vmatpush.msra.mxu0 %v647
    %985 = vmatpush.msra.mxu0 %v644
    %986 = vmatpush.msra.mxu0 %v641
    %987 = vmatpush.msra.mxu0 %v638
    %988 = vmatmul.f32.gmra.mxu0 %v797
    %v989 = vpop.f32.mrf.mxu0
    %v990 = vadd.f32 0.0, %v989
    %991 = vdwg.mxu0
    %992 = vmatpush.msra.mxu0 %v684
    %993 = vmatpush.msra.mxu0 %v681
    %994 = vmatpush.msra.mxu0 %v678
    %995 = vmatpush.msra.mxu0 %v675
    %996 = vmatpush.msra.mxu0 %v672
    %997 = vmatpush.msra.mxu0 %v669
    %998 = vmatpush.msra.mxu0 %v666
    %999 = vmatpush.msra.mxu0 %v663
    %1000 = vmatpush.msra.mxu0 %v660
    %1001 = vmatpush.msra.mxu0 %v657
    %1002 = vmatpush.msra.mxu0 %v654
    %1003 = vmatpush.msra.mxu0 %v651
    %1004 = vmatpush.msra.mxu0 %v648
    %1005 = vmatpush.msra.mxu0 %v645
    %1006 = vmatpush.msra.mxu0 %v642
    %1007 = vmatpush.msra.mxu0 %v639
    %1008 = vmatmul.f32.gmra.mxu0 %v797
    %v1009 = vpop.f32.mrf.mxu0
    %v1010 = vadd.f32 0.0, %v1009
    %1011 = vdwg.mxu0
    %1012 = vmatpush.msra.mxu0 %v685
    %1013 = vmatpush.msra.mxu0 %v682
    %1014 = vmatpush.msra.mxu0 %v679
    %1015 = vmatpush.msra.mxu0 %v676
    %1016 = vmatpush.msra.mxu0 %v673
    %1017 = vmatpush.msra.mxu0 %v670
    %1018 = vmatpush.msra.mxu0 %v667
    %1019 = vmatpush.msra.mxu0 %v664
    %1020 = vmatpush.msra.mxu0 %v661
    %1021 = vmatpush.msra.mxu0 %v658
    %1022 = vmatpush.msra.mxu0 %v655
    %1023 = vmatpush.msra.mxu0 %v652
    %1024 = vmatpush.msra.mxu0 %v649
    %1025 = vmatpush.msra.mxu0 %v646
    %1026 = vmatpush.msra.mxu0 %v643
    %1027 = vmatpush.msra.mxu0 %v640
    %1028 = vmatmul.f32.gmra.mxu0 %v797
    %v1029 = vpop.f32.mrf.mxu0
    %v1030 = vadd.f32 0.0, %v1029
    %1031 = vdwg.mxu0
    %v1032 = vadd.f32 %v930, %v990
    %v1033 = vxor.u32 %v1032, 2147483648
    %v1034 = vmul.f32 %v1033, 1.442695
    %v1035 = vpow.pop %v1034
    %v1036 = vadd.f32 %v1035, 1.0
    %v1037 = vrcp.pop %v1036
    %v1038 = vmul.f32 %v1036, %v1037
    %v1039 = vsub.f32 1.0, %v1038
    %v1040 = vmul.f32 %v1037, %v1039
    %v1041 = vadd.f32 %v1037, %v1040
    %vm1042 = vweird.f32 %v1036
    %vm1043 = vweird.f32 %v1037
    %vm1044 = vmor %vm1042, %vm1043
    %v1045 = vsel %vm1044, %v1037, %v1041
    %v1046 = vand.u32 2147483647, %v1036
    %vm1047 = vcmp.eq.f32.partialorder %v1046, 8.507059e+37
    %v1048 = vand.u32 %v1036, 2147483648
    %v1049 = vor.u32 1.1754944e-38, %v1048
    %v1050 = vsel %vm1047, %v1049, %v1045
    %v1051 = vmul.f32 1.0, %v1050
    %v1052 = vadd.f32 %v950, %v1010
    %v1053 = vxor.u32 %v1052, 2147483648
    %v1054 = vmul.f32 %v1053, 1.442695
    %v1055 = vpow.pop %v1054
    %v1056 = vadd.f32 %v1055, 1.0
    %v1057 = vrcp.pop %v1056
    %v1058 = vmul.f32 %v1056, %v1057
    %v1059 = vsub.f32 1.0, %v1058
    %v1060 = vmul.f32 %v1057, %v1059
    %v1061 = vadd.f32 %v1057, %v1060
    %vm1062 = vweird.f32 %v1056
    %vm1063 = vweird.f32 %v1057
    %vm1064 = vmor %vm1062, %vm1063
    %v1065 = vsel %vm1064, %v1057, %v1061
    %v1066 = vand.u32 2147483647, %v1056
    %vm1067 = vcmp.eq.f32.partialorder %v1066, 8.507059e+37
    %v1068 = vand.u32 %v1056, 2147483648
    %v1069 = vor.u32 1.1754944e-38, %v1068
    %v1070 = vsel %vm1067, %v1069, %v1065
    %v1071 = vmul.f32 1.0, %v1070
    %v1072 = vadd.f32 %v1030, %v788
    %v1073 = vmul.f32 %v1051, %v1072
    %v1074 = vadd.f32 %v970, %v1073
    %v1075 = vtanh.pop %v1074
    %v1076 = vsub.f32 1.0, %v1071
    %v1077 = vmul.f32 %v1076, %v1075
    %v1078 = vmul.f32 %v1071, %v797
    %v1079 = vadd.f32 %v1077, %v1078
    %s1080 = smul.u32 2, 3
    %s1081 = smul.addr %s1080, 8
    %s1082 = scalar_lea.vmem [#allocation2], %s1081
    %v1083 = vld [vmem:[%s1082] sm:$0xff]
    %v1084 = vld [vmem:[%s1082 + $0x8] sm:$0xff]
    %v1085 = vld [vmem:[%s1082 + $0x10] sm:$0xff]
    %1086 = vmatpush.msra.mxu0 %v407
    %1087 = vmatpush.msra.mxu0 %v404
    %1088 = vmatpush.msra.mxu0 %v401
    %1089 = vmatpush.msra.mxu0 %v398
    %1090 = vmatpush.msra.mxu0 %v395
    %1091 = vmatpush.msra.mxu0 %v392
    %1092 = vmatpush.msra.mxu0 %v389
    %1093 = vmatpush.msra.mxu0 %v386
    %1094 = vmatpush.msra.mxu0 %v383
    %1095 = vmatpush.msra.mxu0 %v380
    %1096 = vmatpush.msra.mxu0 %v377
    %1097 = vmatpush.msra.mxu0 %v374
    %1098 = vmatpush.msra.mxu0 %v371
    %1099 = vmatpush.msra.mxu0 %v368
    %1100 = vmatpush.msra.mxu0 %v365
    %1101 = vmatpush.msra.mxu0 %v362
    %1102 = vmatmul.f32.gmra.mxu0 %v911
    %v1103 = vpop.f32.mrf.mxu0
    %v1104 = vadd.f32 0.0, %v1103
    %1105 = vdwg.mxu0
    %1106 = vmatpush.msra.mxu0 %v408
    %1107 = vmatpush.msra.mxu0 %v405
    %1108 = vmatpush.msra.mxu0 %v402
    %1109 = vmatpush.msra.mxu0 %v399
    %1110 = vmatpush.msra.mxu0 %v396
    %1111 = vmatpush.msra.mxu0 %v393
    %1112 = vmatpush.msra.mxu0 %v390
    %1113 = vmatpush.msra.mxu0 %v387
    %1114 = vmatpush.msra.mxu0 %v384
    %1115 = vmatpush.msra.mxu0 %v381
    %1116 = vmatpush.msra.mxu0 %v378
    %1117 = vmatpush.msra.mxu0 %v375
    %1118 = vmatpush.msra.mxu0 %v372
    %1119 = vmatpush.msra.mxu0 %v369
    %1120 = vmatpush.msra.mxu0 %v366
    %1121 = vmatpush.msra.mxu0 %v363
    %1122 = vmatmul.f32.gmra.mxu0 %v911
    %v1123 = vpop.f32.mrf.mxu0
    %v1124 = vadd.f32 0.0, %v1123
    %1125 = vdwg.mxu0
    %1126 = vmatpush.msra.mxu0 %v409
    %1127 = vmatpush.msra.mxu0 %v406
    %1128 = vmatpush.msra.mxu0 %v403
    %1129 = vmatpush.msra.mxu0 %v400
    %1130 = vmatpush.msra.mxu0 %v397
    %1131 = vmatpush.msra.mxu0 %v394
    %1132 = vmatpush.msra.mxu0 %v391
    %1133 = vmatpush.msra.mxu0 %v388
    %1134 = vmatpush.msra.mxu0 %v385
    %1135 = vmatpush.msra.mxu0 %v382
    %1136 = vmatpush.msra.mxu0 %v379
    %1137 = vmatpush.msra.mxu0 %v376
    %1138 = vmatpush.msra.mxu0 %v373
    %1139 = vmatpush.msra.mxu0 %v370
    %1140 = vmatpush.msra.mxu0 %v367
    %1141 = vmatpush.msra.mxu0 %v364
    %1142 = vmatmul.f32.gmra.mxu0 %v911
    %v1143 = vpop.f32.mrf.mxu0
    %v1144 = vadd.f32 0.0, %v1143
    %1145 = vdwg.mxu0
    %v1146 = vadd.f32 %v1083, %v1104
    %v1147 = vxor.u32 %v1146, 2147483648
    %v1148 = vmul.f32 %v1147, 1.442695
    %v1149 = vpow.pop %v1148
    %v1150 = vadd.f32 %v1149, 1.0
    %v1151 = vrcp.pop %v1150
    %v1152 = vmul.f32 %v1150, %v1151
    %v1153 = vsub.f32 1.0, %v1152
    %v1154 = vmul.f32 %v1151, %v1153
    %v1155 = vadd.f32 %v1151, %v1154
    %vm1156 = vweird.f32 %v1150
    %vm1157 = vweird.f32 %v1151
    %vm1158 = vmor %vm1156, %vm1157
    %v1159 = vsel %vm1158, %v1151, %v1155
    %v1160 = vand.u32 2147483647, %v1150
    %vm1161 = vcmp.eq.f32.partialorder %v1160, 8.507059e+37
    %v1162 = vand.u32 %v1150, 2147483648
    %v1163 = vor.u32 1.1754944e-38, %v1162
    %v1164 = vsel %vm1161, %v1163, %v1159
    %v1165 = vmul.f32 1.0, %v1164
    %v1166 = vadd.f32 %v1084, %v1124
    %v1167 = vxor.u32 %v1166, 2147483648
    %v1168 = vmul.f32 %v1167, 1.442695
    %v1169 = vpow.pop %v1168
    %v1170 = vadd.f32 %v1169, 1.0
    %v1171 = vrcp.pop %v1170
    %v1172 = vmul.f32 %v1170, %v1171
    %v1173 = vsub.f32 1.0, %v1172
    %v1174 = vmul.f32 %v1171, %v1173
    %v1175 = vadd.f32 %v1171, %v1174
    %vm1176 = vweird.f32 %v1170
    %vm1177 = vweird.f32 %v1171
    %vm1178 = vmor %vm1176, %vm1177
    %v1179 = vsel %vm1178, %v1171, %v1175
    %v1180 = vand.u32 2147483647, %v1170
    %vm1181 = vcmp.eq.f32.partialorder %v1180, 8.507059e+37
    %v1182 = vand.u32 %v1170, 2147483648
    %v1183 = vor.u32 1.1754944e-38, %v1182
    %v1184 = vsel %vm1181, %v1183, %v1179
    %v1185 = vmul.f32 1.0, %v1184
    %v1186 = vadd.f32 %v1144, %v512
    %v1187 = vmul.f32 %v1165, %v1186
    %v1188 = vadd.f32 %v1085, %v1187
    %v1189 = vtanh.pop %v1188
    %v1190 = vsub.f32 1.0, %v1185
    %v1191 = vmul.f32 %v1190, %v1189
    %v1192 = vmul.f32 %v1185, %v911
    %v1193 = vadd.f32 %v1191, %v1192
    %1194 = vmatpush.msra.mxu0 %v567
    %1195 = vmatpush.msra.mxu0 %v564
    %1196 = vmatpush.msra.mxu0 %v561
    %1197 = vmatpush.msra.mxu0 %v558
    %1198 = vmatpush.msra.mxu0 %v555
    %1199 = vmatpush.msra.mxu0 %v552
    %1200 = vmatpush.msra.mxu0 %v549
    %1201 = vmatpush.msra.mxu0 %v546
    %1202 = vmatpush.msra.mxu0 %v543
    %1203 = vmatpush.msra.mxu0 %v540
    %1204 = vmatpush.msra.mxu0 %v537
    %1205 = vmatpush.msra.mxu0 %v534
    %1206 = vmatpush.msra.mxu0 %v531
    %1207 = vmatpush.msra.mxu0 %v528
    %1208 = vmatpush.msra.mxu0 %v525
    %1209 = vmatpush.msra.mxu0 %v522
    %1210 = vmatmul.f32.gmra.mxu0 %v1193
    %v1211 = vpop.f32.mrf.mxu0
    %v1212 = vadd.f32 %v572, %v1211
    %1213 = vdwg.mxu0
    %1214 = vmatpush.msra.mxu0 %v568
    %1215 = vmatpush.msra.mxu0 %v565
    %1216 = vmatpush.msra.mxu0 %v562
    %1217 = vmatpush.msra.mxu0 %v559
    %1218 = vmatpush.msra.mxu0 %v556
    %1219 = vmatpush.msra.mxu0 %v553
    %1220 = vmatpush.msra.mxu0 %v550
    %1221 = vmatpush.msra.mxu0 %v547
    %1222 = vmatpush.msra.mxu0 %v544
    %1223 = vmatpush.msra.mxu0 %v541
    %1224 = vmatpush.msra.mxu0 %v538
    %1225 = vmatpush.msra.mxu0 %v535
    %1226 = vmatpush.msra.mxu0 %v532
    %1227 = vmatpush.msra.mxu0 %v529
    %1228 = vmatpush.msra.mxu0 %v526
    %1229 = vmatpush.msra.mxu0 %v523
    %1230 = vmatmul.f32.gmra.mxu0 %v1193
    %v1231 = vpop.f32.mrf.mxu0
    %v1232 = vadd.f32 %v573, %v1231
    %1233 = vdwg.mxu0
    %1234 = vmatpush.msra.mxu0 %v569
    %1235 = vmatpush.msra.mxu0 %v566
    %1236 = vmatpush.msra.mxu0 %v563
    %1237 = vmatpush.msra.mxu0 %v560
    %1238 = vmatpush.msra.mxu0 %v557
    %1239 = vmatpush.msra.mxu0 %v554
    %1240 = vmatpush.msra.mxu0 %v551
    %1241 = vmatpush.msra.mxu0 %v548
    %1242 = vmatpush.msra.mxu0 %v545
    %1243 = vmatpush.msra.mxu0 %v542
    %1244 = vmatpush.msra.mxu0 %v539
    %1245 = vmatpush.msra.mxu0 %v536
    %1246 = vmatpush.msra.mxu0 %v533
    %1247 = vmatpush.msra.mxu0 %v530
    %1248 = vmatpush.msra.mxu0 %v527
    %1249 = vmatpush.msra.mxu0 %v524
    %1250 = vmatmul.f32.gmra.mxu0 %v1193
    %v1251 = vpop.f32.mrf.mxu0
    %v1252 = vadd.f32 %v574, %v1251
    %1253 = vdwg.mxu0
    %1254 = vmatpush.msra.mxu0 %v683
    %1255 = vmatpush.msra.mxu0 %v680
    %1256 = vmatpush.msra.mxu0 %v677
    %1257 = vmatpush.msra.mxu0 %v674
    %1258 = vmatpush.msra.mxu0 %v671
    %1259 = vmatpush.msra.mxu0 %v668
    %1260 = vmatpush.msra.mxu0 %v665
    %1261 = vmatpush.msra.mxu0 %v662
    %1262 = vmatpush.msra.mxu0 %v659
    %1263 = vmatpush.msra.mxu0 %v656
    %1264 = vmatpush.msra.mxu0 %v653
    %1265 = vmatpush.msra.mxu0 %v650
    %1266 = vmatpush.msra.mxu0 %v647
    %1267 = vmatpush.msra.mxu0 %v644
    %1268 = vmatpush.msra.mxu0 %v641
    %1269 = vmatpush.msra.mxu0 %v638
    %1270 = vmatmul.f32.gmra.mxu0 %v1079
    %v1271 = vpop.f32.mrf.mxu0
    %v1272 = vadd.f32 0.0, %v1271
    %1273 = vdwg.mxu0
    %1274 = vmatpush.msra.mxu0 %v684
    %1275 = vmatpush.msra.mxu0 %v681
    %1276 = vmatpush.msra.mxu0 %v678
    %1277 = vmatpush.msra.mxu0 %v675
    %1278 = vmatpush.msra.mxu0 %v672
    %1279 = vmatpush.msra.mxu0 %v669
    %1280 = vmatpush.msra.mxu0 %v666
    %1281 = vmatpush.msra.mxu0 %v663
    %1282 = vmatpush.msra.mxu0 %v660
    %1283 = vmatpush.msra.mxu0 %v657
    %1284 = vmatpush.msra.mxu0 %v654
    %1285 = vmatpush.msra.mxu0 %v651
    %1286 = vmatpush.msra.mxu0 %v648
    %1287 = vmatpush.msra.mxu0 %v645
    %1288 = vmatpush.msra.mxu0 %v642
    %1289 = vmatpush.msra.mxu0 %v639
    %1290 = vmatmul.f32.gmra.mxu0 %v1079
    %v1291 = vpop.f32.mrf.mxu0
    %v1292 = vadd.f32 0.0, %v1291
    %1293 = vdwg.mxu0
    %1294 = vmatpush.msra.mxu0 %v685
    %1295 = vmatpush.msra.mxu0 %v682
    %1296 = vmatpush.msra.mxu0 %v679
    %1297 = vmatpush.msra.mxu0 %v676
    %1298 = vmatpush.msra.mxu0 %v673
    %1299 = vmatpush.msra.mxu0 %v670
    %1300 = vmatpush.msra.mxu0 %v667
    %1301 = vmatpush.msra.mxu0 %v664
    %1302 = vmatpush.msra.mxu0 %v661
    %1303 = vmatpush.msra.mxu0 %v658
    %1304 = vmatpush.msra.mxu0 %v655
    %1305 = vmatpush.msra.mxu0 %v652
    %1306 = vmatpush.msra.mxu0 %v649
    %1307 = vmatpush.msra.mxu0 %v646
    %1308 = vmatpush.msra.mxu0 %v643
    %1309 = vmatpush.msra.mxu0 %v640
    %1310 = vmatmul.f32.gmra.mxu0 %v1079
    %v1311 = vpop.f32.mrf.mxu0
    %v1312 = vadd.f32 0.0, %v1311
    %1313 = vdwg.mxu0
    %v1314 = vadd.f32 %v1212, %v1272
    %v1315 = vxor.u32 %v1314, 2147483648
    %v1316 = vmul.f32 %v1315, 1.442695
    %v1317 = vpow.pop %v1316
    %v1318 = vadd.f32 %v1317, 1.0
    %v1319 = vrcp.pop %v1318
    %v1320 = vmul.f32 %v1318, %v1319
    %v1321 = vsub.f32 1.0, %v1320
    %v1322 = vmul.f32 %v1319, %v1321
    %v1323 = vadd.f32 %v1319, %v1322
    %vm1324 = vweird.f32 %v1318
    %vm1325 = vweird.f32 %v1319
    %vm1326 = vmor %vm1324, %vm1325
    %v1327 = vsel %vm1326, %v1319, %v1323
    %v1328 = vand.u32 2147483647, %v1318
    %vm1329 = vcmp.eq.f32.partialorder %v1328, 8.507059e+37
    %v1330 = vand.u32 %v1318, 2147483648
    %v1331 = vor.u32 1.1754944e-38, %v1330
    %v1332 = vsel %vm1329, %v1331, %v1327
    %v1333 = vmul.f32 1.0, %v1332
    %v1334 = vadd.f32 %v1232, %v1292
    %v1335 = vxor.u32 %v1334, 2147483648
    %v1336 = vmul.f32 %v1335, 1.442695
    %v1337 = vpow.pop %v1336
    %v1338 = vadd.f32 %v1337, 1.0
    %v1339 = vrcp.pop %v1338
    %v1340 = vmul.f32 %v1338, %v1339
    %v1341 = vsub.f32 1.0, %v1340
    %v1342 = vmul.f32 %v1339, %v1341
    %v1343 = vadd.f32 %v1339, %v1342
    %vm1344 = vweird.f32 %v1338
    %vm1345 = vweird.f32 %v1339
    %vm1346 = vmor %vm1344, %vm1345
    %v1347 = vsel %vm1346, %v1339, %v1343
    %v1348 = vand.u32 2147483647, %v1338
    %vm1349 = vcmp.eq.f32.partialorder %v1348, 8.507059e+37
    %v1350 = vand.u32 %v1338, 2147483648
    %v1351 = vor.u32 1.1754944e-38, %v1350
    %v1352 = vsel %vm1349, %v1351, %v1347
    %v1353 = vmul.f32 1.0, %v1352
    %v1354 = vadd.f32 %v1312, %v788
    %v1355 = vmul.f32 %v1333, %v1354
    %v1356 = vadd.f32 %v1252, %v1355
    %v1357 = vtanh.pop %v1356
    %v1358 = vsub.f32 1.0, %v1353
    %v1359 = vmul.f32 %v1358, %v1357
    %v1360 = vmul.f32 %v1353, %v1079
    %v1361 = vadd.f32 %v1359, %v1360
    %s1362 = smul.u32 3, 3
    %s1363 = smul.addr %s1362, 8
    %s1364 = scalar_lea.vmem [#allocation2], %s1363
    %v1365 = vld [vmem:[%s1364] sm:$0xff]
    %v1366 = vld [vmem:[%s1364 + $0x8] sm:$0xff]
    %v1367 = vld [vmem:[%s1364 + $0x10] sm:$0xff]
    %1368 = vmatpush.msra.mxu0 %v407
    %1369 = vmatpush.msra.mxu0 %v404
    %1370 = vmatpush.msra.mxu0 %v401
    %1371 = vmatpush.msra.mxu0 %v398
    %1372 = vmatpush.msra.mxu0 %v395
    %1373 = vmatpush.msra.mxu0 %v392
    %1374 = vmatpush.msra.mxu0 %v389
    %1375 = vmatpush.msra.mxu0 %v386
    %1376 = vmatpush.msra.mxu0 %v383
    %1377 = vmatpush.msra.mxu0 %v380
    %1378 = vmatpush.msra.mxu0 %v377
    %1379 = vmatpush.msra.mxu0 %v374
    %1380 = vmatpush.msra.mxu0 %v371
    %1381 = vmatpush.msra.mxu0 %v368
    %1382 = vmatpush.msra.mxu0 %v365
    %1383 = vmatpush.msra.mxu0 %v362
    %1384 = vmatmul.f32.gmra.mxu0 %v1193
    %v1385 = vpop.f32.mrf.mxu0
    %v1386 = vadd.f32 0.0, %v1385
    %1387 = vdwg.mxu0
    %1388 = vmatpush.msra.mxu0 %v408
    %1389 = vmatpush.msra.mxu0 %v405
    %1390 = vmatpush.msra.mxu0 %v402
    %1391 = vmatpush.msra.mxu0 %v399
    %1392 = vmatpush.msra.mxu0 %v396
    %1393 = vmatpush.msra.mxu0 %v393
    %1394 = vmatpush.msra.mxu0 %v390
    %1395 = vmatpush.msra.mxu0 %v387
    %1396 = vmatpush.msra.mxu0 %v384
    %1397 = vmatpush.msra.mxu0 %v381
    %1398 = vmatpush.msra.mxu0 %v378
    %1399 = vmatpush.msra.mxu0 %v375
    %1400 = vmatpush.msra.mxu0 %v372
    %1401 = vmatpush.msra.mxu0 %v369
    %1402 = vmatpush.msra.mxu0 %v366
    %1403 = vmatpush.msra.mxu0 %v363
    %1404 = vmatmul.f32.gmra.mxu0 %v1193
    %v1405 = vpop.f32.mrf.mxu0
    %v1406 = vadd.f32 0.0, %v1405
    %1407 = vdwg.mxu0
    %1408 = vmatpush.msra.mxu0 %v409
    %1409 = vmatpush.msra.mxu0 %v406
    %1410 = vmatpush.msra.mxu0 %v403
    %1411 = vmatpush.msra.mxu0 %v400
    %1412 = vmatpush.msra.mxu0 %v397
    %1413 = vmatpush.msra.mxu0 %v394
    %1414 = vmatpush.msra.mxu0 %v391
    %1415 = vmatpush.msra.mxu0 %v388
    %1416 = vmatpush.msra.mxu0 %v385
    %1417 = vmatpush.msra.mxu0 %v382
    %1418 = vmatpush.msra.mxu0 %v379
    %1419 = vmatpush.msra.mxu0 %v376
    %1420 = vmatpush.msra.mxu0 %v373
    %1421 = vmatpush.msra.mxu0 %v370
    %1422 = vmatpush.msra.mxu0 %v367
    %1423 = vmatpush.msra.mxu0 %v364
    %1424 = vmatmul.f32.gmra.mxu0 %v1193
    %v1425 = vpop.f32.mrf.mxu0
    %v1426 = vadd.f32 0.0, %v1425
    %1427 = vdwg.mxu0
    %v1428 = vadd.f32 %v1365, %v1386
    %v1429 = vxor.u32 %v1428, 2147483648
    %v1430 = vmul.f32 %v1429, 1.442695
    %v1431 = vpow.pop %v1430
    %v1432 = vadd.f32 %v1431, 1.0
    %v1433 = vrcp.pop %v1432
    %v1434 = vmul.f32 %v1432, %v1433
    %v1435 = vsub.f32 1.0, %v1434
    %v1436 = vmul.f32 %v1433, %v1435
    %v1437 = vadd.f32 %v1433, %v1436
    %vm1438 = vweird.f32 %v1432
    %vm1439 = vweird.f32 %v1433
    %vm1440 = vmor %vm1438, %vm1439
    %v1441 = vsel %vm1440, %v1433, %v1437
    %v1442 = vand.u32 2147483647, %v1432
    %vm1443 = vcmp.eq.f32.partialorder %v1442, 8.507059e+37
    %v1444 = vand.u32 %v1432, 2147483648
    %v1445 = vor.u32 1.1754944e-38, %v1444
    %v1446 = vsel %vm1443, %v1445, %v1441
    %v1447 = vmul.f32 1.0, %v1446
    %v1448 = vadd.f32 %v1366, %v1406
    %v1449 = vxor.u32 %v1448, 2147483648
    %v1450 = vmul.f32 %v1449, 1.442695
    %v1451 = vpow.pop %v1450
    %v1452 = vadd.f32 %v1451, 1.0
    %v1453 = vrcp.pop %v1452
    %v1454 = vmul.f32 %v1452, %v1453
    %v1455 = vsub.f32 1.0, %v1454
    %v1456 = vmul.f32 %v1453, %v1455
    %v1457 = vadd.f32 %v1453, %v1456
    %vm1458 = vweird.f32 %v1452
    %vm1459 = vweird.f32 %v1453
    %vm1460 = vmor %vm1458, %vm1459
    %v1461 = vsel %vm1460, %v1453, %v1457
    %v1462 = vand.u32 2147483647, %v1452
    %vm1463 = vcmp.eq.f32.partialorder %v1462, 8.507059e+37
    %v1464 = vand.u32 %v1452, 2147483648
    %v1465 = vor.u32 1.1754944e-38, %v1464
    %v1466 = vsel %vm1463, %v1465, %v1461
    %v1467 = vmul.f32 1.0, %v1466
    %v1468 = vadd.f32 %v1426, %v512
    %v1469 = vmul.f32 %v1447, %v1468
    %v1470 = vadd.f32 %v1367, %v1469
    %v1471 = vtanh.pop %v1470
    %v1472 = vsub.f32 1.0, %v1467
    %v1473 = vmul.f32 %v1472, %v1471
    %v1474 = vmul.f32 %v1467, %v1193
    %v1475 = vadd.f32 %v1473, %v1474
    %1476 = vmatpush.msra.mxu0 %v567
    %1477 = vmatpush.msra.mxu0 %v564
    %1478 = vmatpush.msra.mxu0 %v561
    %1479 = vmatpush.msra.mxu0 %v558
    %1480 = vmatpush.msra.mxu0 %v555
    %1481 = vmatpush.msra.mxu0 %v552
    %1482 = vmatpush.msra.mxu0 %v549
    %1483 = vmatpush.msra.mxu0 %v546
    %1484 = vmatpush.msra.mxu0 %v543
    %1485 = vmatpush.msra.mxu0 %v540
    %1486 = vmatpush.msra.mxu0 %v537
    %1487 = vmatpush.msra.mxu0 %v534
    %1488 = vmatpush.msra.mxu0 %v531
    %1489 = vmatpush.msra.mxu0 %v528
    %1490 = vmatpush.msra.mxu0 %v525
    %1491 = vmatpush.msra.mxu0 %v522
    %1492 = vmatmul.f32.gmra.mxu0 %v1475
    %v1493 = vpop.f32.mrf.mxu0
    %v1494 = vadd.f32 %v572, %v1493
    %1495 = vdwg.mxu0
    %1496 = vmatpush.msra.mxu0 %v568
    %1497 = vmatpush.msra.mxu0 %v565
    %1498 = vmatpush.msra.mxu0 %v562
    %1499 = vmatpush.msra.mxu0 %v559
    %1500 = vmatpush.msra.mxu0 %v556
    %1501 = vmatpush.msra.mxu0 %v553
    %1502 = vmatpush.msra.mxu0 %v550
    %1503 = vmatpush.msra.mxu0 %v547
    %1504 = vmatpush.msra.mxu0 %v544
    %1505 = vmatpush.msra.mxu0 %v541
    %1506 = vmatpush.msra.mxu0 %v538
    %1507 = vmatpush.msra.mxu0 %v535
    %1508 = vmatpush.msra.mxu0 %v532
    %1509 = vmatpush.msra.mxu0 %v529
    %1510 = vmatpush.msra.mxu0 %v526
    %1511 = vmatpush.msra.mxu0 %v523
    %1512 = vmatmul.f32.gmra.mxu0 %v1475
    %v1513 = vpop.f32.mrf.mxu0
    %v1514 = vadd.f32 %v573, %v1513
    %1515 = vdwg.mxu0
    %1516 = vmatpush.msra.mxu0 %v569
    %1517 = vmatpush.msra.mxu0 %v566
    %1518 = vmatpush.msra.mxu0 %v563
    %1519 = vmatpush.msra.mxu0 %v560
    %1520 = vmatpush.msra.mxu0 %v557
    %1521 = vmatpush.msra.mxu0 %v554
    %1522 = vmatpush.msra.mxu0 %v551
    %1523 = vmatpush.msra.mxu0 %v548
    %1524 = vmatpush.msra.mxu0 %v545
    %1525 = vmatpush.msra.mxu0 %v542
    %1526 = vmatpush.msra.mxu0 %v539
    %1527 = vmatpush.msra.mxu0 %v536
    %1528 = vmatpush.msra.mxu0 %v533
    %1529 = vmatpush.msra.mxu0 %v530
    %1530 = vmatpush.msra.mxu0 %v527
    %1531 = vmatpush.msra.mxu0 %v524
    %1532 = vmatmul.f32.gmra.mxu0 %v1475
    %v1533 = vpop.f32.mrf.mxu0
    %v1534 = vadd.f32 %v574, %v1533
    %1535 = vdwg.mxu0
    %1536 = vmatpush.msra.mxu0 %v683
    %1537 = vmatpush.msra.mxu0 %v680
    %1538 = vmatpush.msra.mxu0 %v677
    %1539 = vmatpush.msra.mxu0 %v674
    %1540 = vmatpush.msra.mxu0 %v671
    %1541 = vmatpush.msra.mxu0 %v668
    %1542 = vmatpush.msra.mxu0 %v665
    %1543 = vmatpush.msra.mxu0 %v662
    %1544 = vmatpush.msra.mxu0 %v659
    %1545 = vmatpush.msra.mxu0 %v656
    %1546 = vmatpush.msra.mxu0 %v653
    %1547 = vmatpush.msra.mxu0 %v650
    %1548 = vmatpush.msra.mxu0 %v647
    %1549 = vmatpush.msra.mxu0 %v644
    %1550 = vmatpush.msra.mxu0 %v641
    %1551 = vmatpush.msra.mxu0 %v638
    %1552 = vmatmul.f32.gmra.mxu0 %v1361
    %v1553 = vpop.f32.mrf.mxu0
    %v1554 = vadd.f32 0.0, %v1553
    %1555 = vdwg.mxu0
    %1556 = vmatpush.msra.mxu0 %v684
    %1557 = vmatpush.msra.mxu0 %v681
    %1558 = vmatpush.msra.mxu0 %v678
    %1559 = vmatpush.msra.mxu0 %v675
    %1560 = vmatpush.msra.mxu0 %v672
    %1561 = vmatpush.msra.mxu0 %v669
    %1562 = vmatpush.msra.mxu0 %v666
    %1563 = vmatpush.msra.mxu0 %v663
    %1564 = vmatpush.msra.mxu0 %v660
    %1565 = vmatpush.msra.mxu0 %v657
    %1566 = vmatpush.msra.mxu0 %v654
    %1567 = vmatpush.msra.mxu0 %v651
    %1568 = vmatpush.msra.mxu0 %v648
    %1569 = vmatpush.msra.mxu0 %v645
    %1570 = vmatpush.msra.mxu0 %v642
    %1571 = vmatpush.msra.mxu0 %v639
    %1572 = vmatmul.f32.gmra.mxu0 %v1361
    %v1573 = vpop.f32.mrf.mxu0
    %v1574 = vadd.f32 0.0, %v1573
    %1575 = vdwg.mxu0
    %1576 = vmatpush.msra.mxu0 %v685
    %1577 = vmatpush.msra.mxu0 %v682
    %1578 = vmatpush.msra.mxu0 %v679
    %1579 = vmatpush.msra.mxu0 %v676
    %1580 = vmatpush.msra.mxu0 %v673
    %1581 = vmatpush.msra.mxu0 %v670
    %1582 = vmatpush.msra.mxu0 %v667
    %1583 = vmatpush.msra.mxu0 %v664
    %1584 = vmatpush.msra.mxu0 %v661
    %1585 = vmatpush.msra.mxu0 %v658
    %1586 = vmatpush.msra.mxu0 %v655
    %1587 = vmatpush.msra.mxu0 %v652
    %1588 = vmatpush.msra.mxu0 %v649
    %1589 = vmatpush.msra.mxu0 %v646
    %1590 = vmatpush.msra.mxu0 %v643
    %1591 = vmatpush.msra.mxu0 %v640
    %1592 = vmatmul.f32.gmra.mxu0 %v1361
    %v1593 = vpop.f32.mrf.mxu0
    %v1594 = vadd.f32 0.0, %v1593
    %1595 = vdwg.mxu0
    %v1596 = vadd.f32 %v1494, %v1554
    %v1597 = vxor.u32 %v1596, 2147483648
    %v1598 = vmul.f32 %v1597, 1.442695
    %v1599 = vpow.pop %v1598
    %v1600 = vadd.f32 %v1599, 1.0
    %v1601 = vrcp.pop %v1600
    %v1602 = vmul.f32 %v1600, %v1601
    %v1603 = vsub.f32 1.0, %v1602
    %v1604 = vmul.f32 %v1601, %v1603
    %v1605 = vadd.f32 %v1601, %v1604
    %vm1606 = vweird.f32 %v1600
    %vm1607 = vweird.f32 %v1601
    %vm1608 = vmor %vm1606, %vm1607
    %v1609 = vsel %vm1608, %v1601, %v1605
    %v1610 = vand.u32 2147483647, %v1600
    %vm1611 = vcmp.eq.f32.partialorder %v1610, 8.507059e+37
    %v1612 = vand.u32 %v1600, 2147483648
    %v1613 = vor.u32 1.1754944e-38, %v1612
    %v1614 = vsel %vm1611, %v1613, %v1609
    %v1615 = vmul.f32 1.0, %v1614
    %v1616 = vadd.f32 %v1514, %v1574
    %v1617 = vxor.u32 %v1616, 2147483648
    %v1618 = vmul.f32 %v1617, 1.442695
    %v1619 = vpow.pop %v1618
    %v1620 = vadd.f32 %v1619, 1.0
    %v1621 = vrcp.pop %v1620
    %v1622 = vmul.f32 %v1620, %v1621
    %v1623 = vsub.f32 1.0, %v1622
    %v1624 = vmul.f32 %v1621, %v1623
    %v1625 = vadd.f32 %v1621, %v1624
    %vm1626 = vweird.f32 %v1620
    %vm1627 = vweird.f32 %v1621
    %vm1628 = vmor %vm1626, %vm1627
    %v1629 = vsel %vm1628, %v1621, %v1625
    %v1630 = vand.u32 2147483647, %v1620
    %vm1631 = vcmp.eq.f32.partialorder %v1630, 8.507059e+37
    %v1632 = vand.u32 %v1620, 2147483648
    %v1633 = vor.u32 1.1754944e-38, %v1632
    %v1634 = vsel %vm1631, %v1633, %v1629
    %v1635 = vmul.f32 1.0, %v1634
    %v1636 = vadd.f32 %v1594, %v788
    %v1637 = vmul.f32 %v1615, %v1636
    %v1638 = vadd.f32 %v1534, %v1637
    %v1639 = vtanh.pop %v1638
    %v1640 = vsub.f32 1.0, %v1635
    %v1641 = vmul.f32 %v1640, %v1639
    %v1642 = vmul.f32 %v1635, %v1361
    %v1643 = vadd.f32 %v1641, %v1642
    %s1644 = smul.u32 4, 3
    %s1645 = smul.addr %s1644, 8
    %s1646 = scalar_lea.vmem [#allocation2], %s1645
    %v1647 = vld [vmem:[%s1646] sm:$0xff]
    %v1648 = vld [vmem:[%s1646 + $0x8] sm:$0xff]
    %v1649 = vld [vmem:[%s1646 + $0x10] sm:$0xff]
    %1650 = vmatpush.msra.mxu0 %v407
    %1651 = vmatpush.msra.mxu0 %v404
    %1652 = vmatpush.msra.mxu0 %v401
    %1653 = vmatpush.msra.mxu0 %v398
    %1654 = vmatpush.msra.mxu0 %v395
    %1655 = vmatpush.msra.mxu0 %v392
    %1656 = vmatpush.msra.mxu0 %v389
    %1657 = vmatpush.msra.mxu0 %v386
    %1658 = vmatpush.msra.mxu0 %v383
    %1659 = vmatpush.msra.mxu0 %v380
    %1660 = vmatpush.msra.mxu0 %v377
    %1661 = vmatpush.msra.mxu0 %v374
    %1662 = vmatpush.msra.mxu0 %v371
    %1663 = vmatpush.msra.mxu0 %v368
    %1664 = vmatpush.msra.mxu0 %v365
    %1665 = vmatpush.msra.mxu0 %v362
    %1666 = vmatmul.f32.gmra.mxu0 %v1475
    %v1667 = vpop.f32.mrf.mxu0
    %v1668 = vadd.f32 0.0, %v1667
    %1669 = vdwg.mxu0
    %1670 = vmatpush.msra.mxu0 %v408
    %1671 = vmatpush.msra.mxu0 %v405
    %1672 = vmatpush.msra.mxu0 %v402
    %1673 = vmatpush.msra.mxu0 %v399
    %1674 = vmatpush.msra.mxu0 %v396
    %1675 = vmatpush.msra.mxu0 %v393
    %1676 = vmatpush.msra.mxu0 %v390
    %1677 = vmatpush.msra.mxu0 %v387
    %1678 = vmatpush.msra.mxu0 %v384
    %1679 = vmatpush.msra.mxu0 %v381
    %1680 = vmatpush.msra.mxu0 %v378
    %1681 = vmatpush.msra.mxu0 %v375
    %1682 = vmatpush.msra.mxu0 %v372
    %1683 = vmatpush.msra.mxu0 %v369
    %1684 = vmatpush.msra.mxu0 %v366
    %1685 = vmatpush.msra.mxu0 %v363
    %1686 = vmatmul.f32.gmra.mxu0 %v1475
    %v1687 = vpop.f32.mrf.mxu0
    %v1688 = vadd.f32 0.0, %v1687
    %1689 = vdwg.mxu0
    %1690 = vmatpush.msra.mxu0 %v409
    %1691 = vmatpush.msra.mxu0 %v406
    %1692 = vmatpush.msra.mxu0 %v403
    %1693 = vmatpush.msra.mxu0 %v400
    %1694 = vmatpush.msra.mxu0 %v397
    %1695 = vmatpush.msra.mxu0 %v394
    %1696 = vmatpush.msra.mxu0 %v391
    %1697 = vmatpush.msra.mxu0 %v388
    %1698 = vmatpush.msra.mxu0 %v385
    %1699 = vmatpush.msra.mxu0 %v382
    %1700 = vmatpush.msra.mxu0 %v379
    %1701 = vmatpush.msra.mxu0 %v376
    %1702 = vmatpush.msra.mxu0 %v373
    %1703 = vmatpush.msra.mxu0 %v370
    %1704 = vmatpush.msra.mxu0 %v367
    %1705 = vmatpush.msra.mxu0 %v364
    %1706 = vmatmul.f32.gmra.mxu0 %v1475
    %v1707 = vpop.f32.mrf.mxu0
    %v1708 = vadd.f32 0.0, %v1707
    %1709 = vdwg.mxu0
    %v1710 = vadd.f32 %v1647, %v1668
    %v1711 = vxor.u32 %v1710, 2147483648
    %v1712 = vmul.f32 %v1711, 1.442695
    %v1713 = vpow.pop %v1712
    %v1714 = vadd.f32 %v1713, 1.0
    %v1715 = vrcp.pop %v1714
    %v1716 = vmul.f32 %v1714, %v1715
    %v1717 = vsub.f32 1.0, %v1716
    %v1718 = vmul.f32 %v1715, %v1717
    %v1719 = vadd.f32 %v1715, %v1718
    %vm1720 = vweird.f32 %v1714
    %vm1721 = vweird.f32 %v1715
    %vm1722 = vmor %vm1720, %vm1721
    %v1723 = vsel %vm1722, %v1715, %v1719
    %v1724 = vand.u32 2147483647, %v1714
    %vm1725 = vcmp.eq.f32.partialorder %v1724, 8.507059e+37
    %v1726 = vand.u32 %v1714, 2147483648
    %v1727 = vor.u32 1.1754944e-38, %v1726
    %v1728 = vsel %vm1725, %v1727, %v1723
    %v1729 = vmul.f32 1.0, %v1728
    %v1730 = vadd.f32 %v1648, %v1688
    %v1731 = vxor.u32 %v1730, 2147483648
    %v1732 = vmul.f32 %v1731, 1.442695
    %v1733 = vpow.pop %v1732
    %v1734 = vadd.f32 %v1733, 1.0
    %v1735 = vrcp.pop %v1734
    %v1736 = vmul.f32 %v1734, %v1735
    %v1737 = vsub.f32 1.0, %v1736
    %v1738 = vmul.f32 %v1735, %v1737
    %v1739 = vadd.f32 %v1735, %v1738
    %vm1740 = vweird.f32 %v1734
    %vm1741 = vweird.f32 %v1735
    %vm1742 = vmor %vm1740, %vm1741
    %v1743 = vsel %vm1742, %v1735, %v1739
    %v1744 = vand.u32 2147483647, %v1734
    %vm1745 = vcmp.eq.f32.partialorder %v1744, 8.507059e+37
    %v1746 = vand.u32 %v1734, 2147483648
    %v1747 = vor.u32 1.1754944e-38, %v1746
    %v1748 = vsel %vm1745, %v1747, %v1743
    %v1749 = vmul.f32 1.0, %v1748
    %v1750 = vadd.f32 %v1708, %v512
    %v1751 = vmul.f32 %v1729, %v1750
    %v1752 = vadd.f32 %v1649, %v1751
    %v1753 = vtanh.pop %v1752
    %v1754 = vsub.f32 1.0, %v1749
    %v1755 = vmul.f32 %v1754, %v1753
    %v1756 = vmul.f32 %v1749, %v1475
    %v1757 = vadd.f32 %v1755, %v1756
    %1758 = vmatpush.msra.mxu0 %v567
    %1759 = vmatpush.msra.mxu0 %v564
    %1760 = vmatpush.msra.mxu0 %v561
    %1761 = vmatpush.msra.mxu0 %v558
    %1762 = vmatpush.msra.mxu0 %v555
    %1763 = vmatpush.msra.mxu0 %v552
    %1764 = vmatpush.msra.mxu0 %v549
    %1765 = vmatpush.msra.mxu0 %v546
    %1766 = vmatpush.msra.mxu0 %v543
    %1767 = vmatpush.msra.mxu0 %v540
    %1768 = vmatpush.msra.mxu0 %v537
    %1769 = vmatpush.msra.mxu0 %v534
    %1770 = vmatpush.msra.mxu0 %v531
    %1771 = vmatpush.msra.mxu0 %v528
    %1772 = vmatpush.msra.mxu0 %v525
    %1773 = vmatpush.msra.mxu0 %v522
    %1774 = vmatmul.f32.gmra.mxu0 %v1757
    %v1775 = vpop.f32.mrf.mxu0
    %v1776 = vadd.f32 %v572, %v1775
    %1777 = vdwg.mxu0
    %1778 = vmatpush.msra.mxu0 %v568
    %1779 = vmatpush.msra.mxu0 %v565
    %1780 = vmatpush.msra.mxu0 %v562
    %1781 = vmatpush.msra.mxu0 %v559
    %1782 = vmatpush.msra.mxu0 %v556
    %1783 = vmatpush.msra.mxu0 %v553
    %1784 = vmatpush.msra.mxu0 %v550
    %1785 = vmatpush.msra.mxu0 %v547
    %1786 = vmatpush.msra.mxu0 %v544
    %1787 = vmatpush.msra.mxu0 %v541
    %1788 = vmatpush.msra.mxu0 %v538
    %1789 = vmatpush.msra.mxu0 %v535
    %1790 = vmatpush.msra.mxu0 %v532
    %1791 = vmatpush.msra.mxu0 %v529
    %1792 = vmatpush.msra.mxu0 %v526
    %1793 = vmatpush.msra.mxu0 %v523
    %1794 = vmatmul.f32.gmra.mxu0 %v1757
    %v1795 = vpop.f32.mrf.mxu0
    %v1796 = vadd.f32 %v573, %v1795
    %1797 = vdwg.mxu0
    %1798 = vmatpush.msra.mxu0 %v569
    %1799 = vmatpush.msra.mxu0 %v566
    %1800 = vmatpush.msra.mxu0 %v563
    %1801 = vmatpush.msra.mxu0 %v560
    %1802 = vmatpush.msra.mxu0 %v557
    %1803 = vmatpush.msra.mxu0 %v554
    %1804 = vmatpush.msra.mxu0 %v551
    %1805 = vmatpush.msra.mxu0 %v548
    %1806 = vmatpush.msra.mxu0 %v545
    %1807 = vmatpush.msra.mxu0 %v542
    %1808 = vmatpush.msra.mxu0 %v539
    %1809 = vmatpush.msra.mxu0 %v536
    %1810 = vmatpush.msra.mxu0 %v533
    %1811 = vmatpush.msra.mxu0 %v530
    %1812 = vmatpush.msra.mxu0 %v527
    %1813 = vmatpush.msra.mxu0 %v524
    %1814 = vmatmul.f32.gmra.mxu0 %v1757
    %v1815 = vpop.f32.mrf.mxu0
    %v1816 = vadd.f32 %v574, %v1815
    %1817 = vdwg.mxu0
    %1818 = vmatpush.msra.mxu0 %v683
    %1819 = vmatpush.msra.mxu0 %v680
    %1820 = vmatpush.msra.mxu0 %v677
    %1821 = vmatpush.msra.mxu0 %v674
    %1822 = vmatpush.msra.mxu0 %v671
    %1823 = vmatpush.msra.mxu0 %v668
    %1824 = vmatpush.msra.mxu0 %v665
    %1825 = vmatpush.msra.mxu0 %v662
    %1826 = vmatpush.msra.mxu0 %v659
    %1827 = vmatpush.msra.mxu0 %v656
    %1828 = vmatpush.msra.mxu0 %v653
    %1829 = vmatpush.msra.mxu0 %v650
    %1830 = vmatpush.msra.mxu0 %v647
    %1831 = vmatpush.msra.mxu0 %v644
    %1832 = vmatpush.msra.mxu0 %v641
    %1833 = vmatpush.msra.mxu0 %v638
    %1834 = vmatmul.f32.gmra.mxu0 %v1643
    %v1835 = vpop.f32.mrf.mxu0
    %v1836 = vadd.f32 0.0, %v1835
    %1837 = vdwg.mxu0
    %1838 = vmatpush.msra.mxu0 %v684
    %1839 = vmatpush.msra.mxu0 %v681
    %1840 = vmatpush.msra.mxu0 %v678
    %1841 = vmatpush.msra.mxu0 %v675
    %1842 = vmatpush.msra.mxu0 %v672
    %1843 = vmatpush.msra.mxu0 %v669
    %1844 = vmatpush.msra.mxu0 %v666
    %1845 = vmatpush.msra.mxu0 %v663
    %1846 = vmatpush.msra.mxu0 %v660
    %1847 = vmatpush.msra.mxu0 %v657
    %1848 = vmatpush.msra.mxu0 %v654
    %1849 = vmatpush.msra.mxu0 %v651
    %1850 = vmatpush.msra.mxu0 %v648
    %1851 = vmatpush.msra.mxu0 %v645
    %1852 = vmatpush.msra.mxu0 %v642
    %1853 = vmatpush.msra.mxu0 %v639
    %1854 = vmatmul.f32.gmra.mxu0 %v1643
    %v1855 = vpop.f32.mrf.mxu0
    %v1856 = vadd.f32 0.0, %v1855
    %1857 = vdwg.mxu0
    %1858 = vmatpush.msra.mxu0 %v685
    %1859 = vmatpush.msra.mxu0 %v682
    %1860 = vmatpush.msra.mxu0 %v679
    %1861 = vmatpush.msra.mxu0 %v676
    %1862 = vmatpush.msra.mxu0 %v673
    %1863 = vmatpush.msra.mxu0 %v670
    %1864 = vmatpush.msra.mxu0 %v667
    %1865 = vmatpush.msra.mxu0 %v664
    %1866 = vmatpush.msra.mxu0 %v661
    %1867 = vmatpush.msra.mxu0 %v658
    %1868 = vmatpush.msra.mxu0 %v655
    %1869 = vmatpush.msra.mxu0 %v652
    %1870 = vmatpush.msra.mxu0 %v649
    %1871 = vmatpush.msra.mxu0 %v646
    %1872 = vmatpush.msra.mxu0 %v643
    %1873 = vmatpush.msra.mxu0 %v640
    %1874 = vmatmul.f32.gmra.mxu0 %v1643
    %v1875 = vpop.f32.mrf.mxu0
    %v1876 = vadd.f32 0.0, %v1875
    %1877 = vdwg.mxu0
    %v1878 = vadd.f32 %v1776, %v1836
    %v1879 = vxor.u32 %v1878, 2147483648
    %v1880 = vmul.f32 %v1879, 1.442695
    %v1881 = vpow.pop %v1880
    %v1882 = vadd.f32 %v1881, 1.0
    %v1883 = vrcp.pop %v1882
    %v1884 = vmul.f32 %v1882, %v1883
    %v1885 = vsub.f32 1.0, %v1884
    %v1886 = vmul.f32 %v1883, %v1885
    %v1887 = vadd.f32 %v1883, %v1886
    %vm1888 = vweird.f32 %v1882
    %vm1889 = vweird.f32 %v1883
    %vm1890 = vmor %vm1888, %vm1889
    %v1891 = vsel %vm1890, %v1883, %v1887
    %v1892 = vand.u32 2147483647, %v1882
    %vm1893 = vcmp.eq.f32.partialorder %v1892, 8.507059e+37
    %v1894 = vand.u32 %v1882, 2147483648
    %v1895 = vor.u32 1.1754944e-38, %v1894
    %v1896 = vsel %vm1893, %v1895, %v1891
    %v1897 = vmul.f32 1.0, %v1896
    %v1898 = vadd.f32 %v1796, %v1856
    %v1899 = vxor.u32 %v1898, 2147483648
    %v1900 = vmul.f32 %v1899, 1.442695
    %v1901 = vpow.pop %v1900
    %v1902 = vadd.f32 %v1901, 1.0
    %v1903 = vrcp.pop %v1902
    %v1904 = vmul.f32 %v1902, %v1903
    %v1905 = vsub.f32 1.0, %v1904
    %v1906 = vmul.f32 %v1903, %v1905
    %v1907 = vadd.f32 %v1903, %v1906
    %vm1908 = vweird.f32 %v1902
    %vm1909 = vweird.f32 %v1903
    %vm1910 = vmor %vm1908, %vm1909
    %v1911 = vsel %vm1910, %v1903, %v1907
    %v1912 = vand.u32 2147483647, %v1902
    %vm1913 = vcmp.eq.f32.partialorder %v1912, 8.507059e+37
    %v1914 = vand.u32 %v1902, 2147483648
    %v1915 = vor.u32 1.1754944e-38, %v1914
    %v1916 = vsel %vm1913, %v1915, %v1911
    %v1917 = vmul.f32 1.0, %v1916
    %v1918 = vadd.f32 %v1876, %v788
    %v1919 = vmul.f32 %v1897, %v1918
    %v1920 = vadd.f32 %v1816, %v1919
    %v1921 = vtanh.pop %v1920
    %v1922 = vsub.f32 1.0, %v1917
    %v1923 = vmul.f32 %v1922, %v1921
    %v1924 = vmul.f32 %v1917, %v1643
    %v1925 = vadd.f32 %v1923, %v1924
    %s1926 = smul.u32 5, 3
    %s1927 = smul.addr %s1926, 8
    %s1928 = scalar_lea.vmem [#allocation2], %s1927
    %v1929 = vld [vmem:[%s1928] sm:$0xff]
    %v1930 = vld [vmem:[%s1928 + $0x8] sm:$0xff]
    %v1931 = vld [vmem:[%s1928 + $0x10] sm:$0xff]
    %1932 = vmatpush.msra.mxu0 %v407
    %1933 = vmatpush.msra.mxu0 %v404
    %1934 = vmatpush.msra.mxu0 %v401
    %1935 = vmatpush.msra.mxu0 %v398
    %1936 = vmatpush.msra.mxu0 %v395
    %1937 = vmatpush.msra.mxu0 %v392
    %1938 = vmatpush.msra.mxu0 %v389
    %1939 = vmatpush.msra.mxu0 %v386
    %1940 = vmatpush.msra.mxu0 %v383
    %1941 = vmatpush.msra.mxu0 %v380
    %1942 = vmatpush.msra.mxu0 %v377
    %1943 = vmatpush.msra.mxu0 %v374
    %1944 = vmatpush.msra.mxu0 %v371
    %1945 = vmatpush.msra.mxu0 %v368
    %1946 = vmatpush.msra.mxu0 %v365
    %1947 = vmatpush.msra.mxu0 %v362
    %1948 = vmatmul.f32.gmra.mxu0 %v1757
    %v1949 = vpop.f32.mrf.mxu0
    %v1950 = vadd.f32 0.0, %v1949
    %1951 = vdwg.mxu0
    %1952 = vmatpush.msra.mxu0 %v408
    %1953 = vmatpush.msra.mxu0 %v405
    %1954 = vmatpush.msra.mxu0 %v402
    %1955 = vmatpush.msra.mxu0 %v399
    %1956 = vmatpush.msra.mxu0 %v396
    %1957 = vmatpush.msra.mxu0 %v393
    %1958 = vmatpush.msra.mxu0 %v390
    %1959 = vmatpush.msra.mxu0 %v387
    %1960 = vmatpush.msra.mxu0 %v384
    %1961 = vmatpush.msra.mxu0 %v381
    %1962 = vmatpush.msra.mxu0 %v378
    %1963 = vmatpush.msra.mxu0 %v375
    %1964 = vmatpush.msra.mxu0 %v372
    %1965 = vmatpush.msra.mxu0 %v369
    %1966 = vmatpush.msra.mxu0 %v366
    %1967 = vmatpush.msra.mxu0 %v363
    %1968 = vmatmul.f32.gmra.mxu0 %v1757
    %v1969 = vpop.f32.mrf.mxu0
    %v1970 = vadd.f32 0.0, %v1969
    %1971 = vdwg.mxu0
    %1972 = vmatpush.msra.mxu0 %v409
    %1973 = vmatpush.msra.mxu0 %v406
    %1974 = vmatpush.msra.mxu0 %v403
    %1975 = vmatpush.msra.mxu0 %v400
    %1976 = vmatpush.msra.mxu0 %v397
    %1977 = vmatpush.msra.mxu0 %v394
    %1978 = vmatpush.msra.mxu0 %v391
    %1979 = vmatpush.msra.mxu0 %v388
    %1980 = vmatpush.msra.mxu0 %v385
    %1981 = vmatpush.msra.mxu0 %v382
    %1982 = vmatpush.msra.mxu0 %v379
    %1983 = vmatpush.msra.mxu0 %v376
    %1984 = vmatpush.msra.mxu0 %v373
    %1985 = vmatpush.msra.mxu0 %v370
    %1986 = vmatpush.msra.mxu0 %v367
    %1987 = vmatpush.msra.mxu0 %v364
    %1988 = vmatmul.f32.gmra.mxu0 %v1757
    %v1989 = vpop.f32.mrf.mxu0
    %v1990 = vadd.f32 0.0, %v1989
    %1991 = vdwg.mxu0
    %v1992 = vadd.f32 %v1929, %v1950
    %v1993 = vxor.u32 %v1992, 2147483648
    %v1994 = vmul.f32 %v1993, 1.442695
    %v1995 = vpow.pop %v1994
    %v1996 = vadd.f32 %v1995, 1.0
    %v1997 = vrcp.pop %v1996
    %v1998 = vmul.f32 %v1996, %v1997
    %v1999 = vsub.f32 1.0, %v1998
    %v2000 = vmul.f32 %v1997, %v1999
    %v2001 = vadd.f32 %v1997, %v2000
    %vm2002 = vweird.f32 %v1996
    %vm2003 = vweird.f32 %v1997
    %vm2004 = vmor %vm2002, %vm2003
    %v2005 = vsel %vm2004, %v1997, %v2001
    %v2006 = vand.u32 2147483647, %v1996
    %vm2007 = vcmp.eq.f32.partialorder %v2006, 8.507059e+37
    %v2008 = vand.u32 %v1996, 2147483648
    %v2009 = vor.u32 1.1754944e-38, %v2008
    %v2010 = vsel %vm2007, %v2009, %v2005
    %v2011 = vmul.f32 1.0, %v2010
    %v2012 = vadd.f32 %v1930, %v1970
    %v2013 = vxor.u32 %v2012, 2147483648
    %v2014 = vmul.f32 %v2013, 1.442695
    %v2015 = vpow.pop %v2014
    %v2016 = vadd.f32 %v2015, 1.0
    %v2017 = vrcp.pop %v2016
    %v2018 = vmul.f32 %v2016, %v2017
    %v2019 = vsub.f32 1.0, %v2018
    %v2020 = vmul.f32 %v2017, %v2019
    %v2021 = vadd.f32 %v2017, %v2020
    %vm2022 = vweird.f32 %v2016
    %vm2023 = vweird.f32 %v2017
    %vm2024 = vmor %vm2022, %vm2023
    %v2025 = vsel %vm2024, %v2017, %v2021
    %v2026 = vand.u32 2147483647, %v2016
    %vm2027 = vcmp.eq.f32.partialorder %v2026, 8.507059e+37
    %v2028 = vand.u32 %v2016, 2147483648
    %v2029 = vor.u32 1.1754944e-38, %v2028
    %v2030 = vsel %vm2027, %v2029, %v2025
    %v2031 = vmul.f32 1.0, %v2030
    %v2032 = vadd.f32 %v1990, %v512
    %v2033 = vmul.f32 %v2011, %v2032
    %v2034 = vadd.f32 %v1931, %v2033
    %v2035 = vtanh.pop %v2034
    %v2036 = vsub.f32 1.0, %v2031
    %v2037 = vmul.f32 %v2036, %v2035
    %v2038 = vmul.f32 %v2031, %v1757
    %v2039 = vadd.f32 %v2037, %v2038
    %2040 = vmatpush.msra.mxu0 %v567
    %2041 = vmatpush.msra.mxu0 %v564
    %2042 = vmatpush.msra.mxu0 %v561
    %2043 = vmatpush.msra.mxu0 %v558
    %2044 = vmatpush.msra.mxu0 %v555
    %2045 = vmatpush.msra.mxu0 %v552
    %2046 = vmatpush.msra.mxu0 %v549
    %2047 = vmatpush.msra.mxu0 %v546
    %2048 = vmatpush.msra.mxu0 %v543
    %2049 = vmatpush.msra.mxu0 %v540
    %2050 = vmatpush.msra.mxu0 %v537
    %2051 = vmatpush.msra.mxu0 %v534
    %2052 = vmatpush.msra.mxu0 %v531
    %2053 = vmatpush.msra.mxu0 %v528
    %2054 = vmatpush.msra.mxu0 %v525
    %2055 = vmatpush.msra.mxu0 %v522
    %2056 = vmatmul.f32.gmra.mxu0 %v2039
    %v2057 = vpop.f32.mrf.mxu0
    %v2058 = vadd.f32 %v572, %v2057
    %2059 = vdwg.mxu0
    %2060 = vmatpush.msra.mxu0 %v568
    %2061 = vmatpush.msra.mxu0 %v565
    %2062 = vmatpush.msra.mxu0 %v562
    %2063 = vmatpush.msra.mxu0 %v559
    %2064 = vmatpush.msra.mxu0 %v556
    %2065 = vmatpush.msra.mxu0 %v553
    %2066 = vmatpush.msra.mxu0 %v550
    %2067 = vmatpush.msra.mxu0 %v547
    %2068 = vmatpush.msra.mxu0 %v544
    %2069 = vmatpush.msra.mxu0 %v541
    %2070 = vmatpush.msra.mxu0 %v538
    %2071 = vmatpush.msra.mxu0 %v535
    %2072 = vmatpush.msra.mxu0 %v532
    %2073 = vmatpush.msra.mxu0 %v529
    %2074 = vmatpush.msra.mxu0 %v526
    %2075 = vmatpush.msra.mxu0 %v523
    %2076 = vmatmul.f32.gmra.mxu0 %v2039
    %v2077 = vpop.f32.mrf.mxu0
    %v2078 = vadd.f32 %v573, %v2077
    %2079 = vdwg.mxu0
    %2080 = vmatpush.msra.mxu0 %v569
    %2081 = vmatpush.msra.mxu0 %v566
    %2082 = vmatpush.msra.mxu0 %v563
    %2083 = vmatpush.msra.mxu0 %v560
    %2084 = vmatpush.msra.mxu0 %v557
    %2085 = vmatpush.msra.mxu0 %v554
    %2086 = vmatpush.msra.mxu0 %v551
    %2087 = vmatpush.msra.mxu0 %v548
    %2088 = vmatpush.msra.mxu0 %v545
    %2089 = vmatpush.msra.mxu0 %v542
    %2090 = vmatpush.msra.mxu0 %v539
    %2091 = vmatpush.msra.mxu0 %v536
    %2092 = vmatpush.msra.mxu0 %v533
    %2093 = vmatpush.msra.mxu0 %v530
    %2094 = vmatpush.msra.mxu0 %v527
    %2095 = vmatpush.msra.mxu0 %v524
    %2096 = vmatmul.f32.gmra.mxu0 %v2039
    %v2097 = vpop.f32.mrf.mxu0
    %v2098 = vadd.f32 %v574, %v2097
    %2099 = vdwg.mxu0
    %2100 = vmatpush.msra.mxu0 %v683
    %2101 = vmatpush.msra.mxu0 %v680
    %2102 = vmatpush.msra.mxu0 %v677
    %2103 = vmatpush.msra.mxu0 %v674
    %2104 = vmatpush.msra.mxu0 %v671
    %2105 = vmatpush.msra.mxu0 %v668
    %2106 = vmatpush.msra.mxu0 %v665
    %2107 = vmatpush.msra.mxu0 %v662
    %2108 = vmatpush.msra.mxu0 %v659
    %2109 = vmatpush.msra.mxu0 %v656
    %2110 = vmatpush.msra.mxu0 %v653
    %2111 = vmatpush.msra.mxu0 %v650
    %2112 = vmatpush.msra.mxu0 %v647
    %2113 = vmatpush.msra.mxu0 %v644
    %2114 = vmatpush.msra.mxu0 %v641
    %2115 = vmatpush.msra.mxu0 %v638
    %2116 = vmatmul.f32.gmra.mxu0 %v1925
    %v2117 = vpop.f32.mrf.mxu0
    %v2118 = vadd.f32 0.0, %v2117
    %2119 = vdwg.mxu0
    %2120 = vmatpush.msra.mxu0 %v684
    %2121 = vmatpush.msra.mxu0 %v681
    %2122 = vmatpush.msra.mxu0 %v678
    %2123 = vmatpush.msra.mxu0 %v675
    %2124 = vmatpush.msra.mxu0 %v672
    %2125 = vmatpush.msra.mxu0 %v669
    %2126 = vmatpush.msra.mxu0 %v666
    %2127 = vmatpush.msra.mxu0 %v663
    %2128 = vmatpush.msra.mxu0 %v660
    %2129 = vmatpush.msra.mxu0 %v657
    %2130 = vmatpush.msra.mxu0 %v654
    %2131 = vmatpush.msra.mxu0 %v651
    %2132 = vmatpush.msra.mxu0 %v648
    %2133 = vmatpush.msra.mxu0 %v645
    %2134 = vmatpush.msra.mxu0 %v642
    %2135 = vmatpush.msra.mxu0 %v639
    %2136 = vmatmul.f32.gmra.mxu0 %v1925
    %v2137 = vpop.f32.mrf.mxu0
    %v2138 = vadd.f32 0.0, %v2137
    %2139 = vdwg.mxu0
    %2140 = vmatpush.msra.mxu0 %v685
    %2141 = vmatpush.msra.mxu0 %v682
    %2142 = vmatpush.msra.mxu0 %v679
    %2143 = vmatpush.msra.mxu0 %v676
    %2144 = vmatpush.msra.mxu0 %v673
    %2145 = vmatpush.msra.mxu0 %v670
    %2146 = vmatpush.msra.mxu0 %v667
    %2147 = vmatpush.msra.mxu0 %v664
    %2148 = vmatpush.msra.mxu0 %v661
    %2149 = vmatpush.msra.mxu0 %v658
    %2150 = vmatpush.msra.mxu0 %v655
    %2151 = vmatpush.msra.mxu0 %v652
    %2152 = vmatpush.msra.mxu0 %v649
    %2153 = vmatpush.msra.mxu0 %v646
    %2154 = vmatpush.msra.mxu0 %v643
    %2155 = vmatpush.msra.mxu0 %v640
    %2156 = vmatmul.f32.gmra.mxu0 %v1925
    %v2157 = vpop.f32.mrf.mxu0
    %v2158 = vadd.f32 0.0, %v2157
    %2159 = vdwg.mxu0
    %v2160 = vadd.f32 %v2058, %v2118
    %v2161 = vxor.u32 %v2160, 2147483648
    %v2162 = vmul.f32 %v2161, 1.442695
    %v2163 = vpow.pop %v2162
    %v2164 = vadd.f32 %v2163, 1.0
    %v2165 = vrcp.pop %v2164
    %v2166 = vmul.f32 %v2164, %v2165
    %v2167 = vsub.f32 1.0, %v2166
    %v2168 = vmul.f32 %v2165, %v2167
    %v2169 = vadd.f32 %v2165, %v2168
    %vm2170 = vweird.f32 %v2164
    %vm2171 = vweird.f32 %v2165
    %vm2172 = vmor %vm2170, %vm2171
    %v2173 = vsel %vm2172, %v2165, %v2169
    %v2174 = vand.u32 2147483647, %v2164
    %vm2175 = vcmp.eq.f32.partialorder %v2174, 8.507059e+37
    %v2176 = vand.u32 %v2164, 2147483648
    %v2177 = vor.u32 1.1754944e-38, %v2176
    %v2178 = vsel %vm2175, %v2177, %v2173
    %v2179 = vmul.f32 1.0, %v2178
    %v2180 = vadd.f32 %v2078, %v2138
    %v2181 = vxor.u32 %v2180, 2147483648
    %v2182 = vmul.f32 %v2181, 1.442695
    %v2183 = vpow.pop %v2182
    %v2184 = vadd.f32 %v2183, 1.0
    %v2185 = vrcp.pop %v2184
    %v2186 = vmul.f32 %v2184, %v2185
    %v2187 = vsub.f32 1.0, %v2186
    %v2188 = vmul.f32 %v2185, %v2187
    %v2189 = vadd.f32 %v2185, %v2188
    %vm2190 = vweird.f32 %v2184
    %vm2191 = vweird.f32 %v2185
    %vm2192 = vmor %vm2190, %vm2191
    %v2193 = vsel %vm2192, %v2185, %v2189
    %v2194 = vand.u32 2147483647, %v2184
    %vm2195 = vcmp.eq.f32.partialorder %v2194, 8.507059e+37
    %v2196 = vand.u32 %v2184, 2147483648
    %v2197 = vor.u32 1.1754944e-38, %v2196
    %v2198 = vsel %vm2195, %v2197, %v2193
    %v2199 = vmul.f32 1.0, %v2198
    %v2200 = vadd.f32 %v2158, %v788
    %v2201 = vmul.f32 %v2179, %v2200
    %v2202 = vadd.f32 %v2098, %v2201
    %v2203 = vtanh.pop %v2202
    %v2204 = vsub.f32 1.0, %v2199
    %v2205 = vmul.f32 %v2204, %v2203
    %v2206 = vmul.f32 %v2199, %v1925
    %v2207 = vadd.f32 %v2205, %v2206
    %s2208 = smul.u32 6, 3
    %s2209 = smul.addr %s2208, 8
    %s2210 = scalar_lea.vmem [#allocation2], %s2209
    %v2211 = vld [vmem:[%s2210] sm:$0xff]
    %v2212 = vld [vmem:[%s2210 + $0x8] sm:$0xff]
    %v2213 = vld [vmem:[%s2210 + $0x10] sm:$0xff]
    %2214 = vmatpush.msra.mxu0 %v407
    %2215 = vmatpush.msra.mxu0 %v404
    %2216 = vmatpush.msra.mxu0 %v401
    %2217 = vmatpush.msra.mxu0 %v398
    %2218 = vmatpush.msra.mxu0 %v395
    %2219 = vmatpush.msra.mxu0 %v392
    %2220 = vmatpush.msra.mxu0 %v389
    %2221 = vmatpush.msra.mxu0 %v386
    %2222 = vmatpush.msra.mxu0 %v383
    %2223 = vmatpush.msra.mxu0 %v380
    %2224 = vmatpush.msra.mxu0 %v377
    %2225 = vmatpush.msra.mxu0 %v374
    %2226 = vmatpush.msra.mxu0 %v371
    %2227 = vmatpush.msra.mxu0 %v368
    %2228 = vmatpush.msra.mxu0 %v365
    %2229 = vmatpush.msra.mxu0 %v362
    %2230 = vmatmul.f32.gmra.mxu0 %v2039
    %v2231 = vpop.f32.mrf.mxu0
    %v2232 = vadd.f32 0.0, %v2231
    %2233 = vdwg.mxu0
    %2234 = vmatpush.msra.mxu0 %v408
    %2235 = vmatpush.msra.mxu0 %v405
    %2236 = vmatpush.msra.mxu0 %v402
    %2237 = vmatpush.msra.mxu0 %v399
    %2238 = vmatpush.msra.mxu0 %v396
    %2239 = vmatpush.msra.mxu0 %v393
    %2240 = vmatpush.msra.mxu0 %v390
    %2241 = vmatpush.msra.mxu0 %v387
    %2242 = vmatpush.msra.mxu0 %v384
    %2243 = vmatpush.msra.mxu0 %v381
    %2244 = vmatpush.msra.mxu0 %v378
    %2245 = vmatpush.msra.mxu0 %v375
    %2246 = vmatpush.msra.mxu0 %v372
    %2247 = vmatpush.msra.mxu0 %v369
    %2248 = vmatpush.msra.mxu0 %v366
    %2249 = vmatpush.msra.mxu0 %v363
    %2250 = vmatmul.f32.gmra.mxu0 %v2039
    %v2251 = vpop.f32.mrf.mxu0
    %v2252 = vadd.f32 0.0, %v2251
    %2253 = vdwg.mxu0
    %2254 = vmatpush.msra.mxu0 %v409
    %2255 = vmatpush.msra.mxu0 %v406
    %2256 = vmatpush.msra.mxu0 %v403
    %2257 = vmatpush.msra.mxu0 %v400
    %2258 = vmatpush.msra.mxu0 %v397
    %2259 = vmatpush.msra.mxu0 %v394
    %2260 = vmatpush.msra.mxu0 %v391
    %2261 = vmatpush.msra.mxu0 %v388
    %2262 = vmatpush.msra.mxu0 %v385
    %2263 = vmatpush.msra.mxu0 %v382
    %2264 = vmatpush.msra.mxu0 %v379
    %2265 = vmatpush.msra.mxu0 %v376
    %2266 = vmatpush.msra.mxu0 %v373
    %2267 = vmatpush.msra.mxu0 %v370
    %2268 = vmatpush.msra.mxu0 %v367
    %2269 = vmatpush.msra.mxu0 %v364
    %2270 = vmatmul.f32.gmra.mxu0 %v2039
    %v2271 = vpop.f32.mrf.mxu0
    %v2272 = vadd.f32 0.0, %v2271
    %2273 = vdwg.mxu0
    %v2274 = vadd.f32 %v2211, %v2232
    %v2275 = vxor.u32 %v2274, 2147483648
    %v2276 = vmul.f32 %v2275, 1.442695
    %v2277 = vpow.pop %v2276
    %v2278 = vadd.f32 %v2277, 1.0
    %v2279 = vrcp.pop %v2278
    %v2280 = vmul.f32 %v2278, %v2279
    %v2281 = vsub.f32 1.0, %v2280
    %v2282 = vmul.f32 %v2279, %v2281
    %v2283 = vadd.f32 %v2279, %v2282
    %vm2284 = vweird.f32 %v2278
    %vm2285 = vweird.f32 %v2279
    %vm2286 = vmor %vm2284, %vm2285
    %v2287 = vsel %vm2286, %v2279, %v2283
    %v2288 = vand.u32 2147483647, %v2278
    %vm2289 = vcmp.eq.f32.partialorder %v2288, 8.507059e+37
    %v2290 = vand.u32 %v2278, 2147483648
    %v2291 = vor.u32 1.1754944e-38, %v2290
    %v2292 = vsel %vm2289, %v2291, %v2287
    %v2293 = vmul.f32 1.0, %v2292
    %v2294 = vadd.f32 %v2212, %v2252
    %v2295 = vxor.u32 %v2294, 2147483648
    %v2296 = vmul.f32 %v2295, 1.442695
    %v2297 = vpow.pop %v2296
    %v2298 = vadd.f32 %v2297, 1.0
    %v2299 = vrcp.pop %v2298
    %v2300 = vmul.f32 %v2298, %v2299
    %v2301 = vsub.f32 1.0, %v2300
    %v2302 = vmul.f32 %v2299, %v2301
    %v2303 = vadd.f32 %v2299, %v2302
    %vm2304 = vweird.f32 %v2298
    %vm2305 = vweird.f32 %v2299
    %vm2306 = vmor %vm2304, %vm2305
    %v2307 = vsel %vm2306, %v2299, %v2303
    %v2308 = vand.u32 2147483647, %v2298
    %vm2309 = vcmp.eq.f32.partialorder %v2308, 8.507059e+37
    %v2310 = vand.u32 %v2298, 2147483648
    %v2311 = vor.u32 1.1754944e-38, %v2310
    %v2312 = vsel %vm2309, %v2311, %v2307
    %v2313 = vmul.f32 1.0, %v2312
    %v2314 = vadd.f32 %v2272, %v512
    %v2315 = vmul.f32 %v2293, %v2314
    %v2316 = vadd.f32 %v2213, %v2315
    %v2317 = vtanh.pop %v2316
    %v2318 = vsub.f32 1.0, %v2313
    %v2319 = vmul.f32 %v2318, %v2317
    %v2320 = vmul.f32 %v2313, %v2039
    %v2321 = vadd.f32 %v2319, %v2320
    %2322 = vmatpush.msra.mxu0 %v567
    %2323 = vmatpush.msra.mxu0 %v564
    %2324 = vmatpush.msra.mxu0 %v561
    %2325 = vmatpush.msra.mxu0 %v558
    %2326 = vmatpush.msra.mxu0 %v555
    %2327 = vmatpush.msra.mxu0 %v552
    %2328 = vmatpush.msra.mxu0 %v549
    %2329 = vmatpush.msra.mxu0 %v546
    %2330 = vmatpush.msra.mxu0 %v543
    %2331 = vmatpush.msra.mxu0 %v540
    %2332 = vmatpush.msra.mxu0 %v537
    %2333 = vmatpush.msra.mxu0 %v534
    %2334 = vmatpush.msra.mxu0 %v531
    %2335 = vmatpush.msra.mxu0 %v528
    %2336 = vmatpush.msra.mxu0 %v525
    %2337 = vmatpush.msra.mxu0 %v522
    %2338 = vmatmul.f32.gmra.mxu0 %v2321
    %v2339 = vpop.f32.mrf.mxu0
    %v2340 = vadd.f32 %v572, %v2339
    %2341 = vdwg.mxu0
    %2342 = vmatpush.msra.mxu0 %v568
    %2343 = vmatpush.msra.mxu0 %v565
    %2344 = vmatpush.msra.mxu0 %v562
    %2345 = vmatpush.msra.mxu0 %v559
    %2346 = vmatpush.msra.mxu0 %v556
    %2347 = vmatpush.msra.mxu0 %v553
    %2348 = vmatpush.msra.mxu0 %v550
    %2349 = vmatpush.msra.mxu0 %v547
    %2350 = vmatpush.msra.mxu0 %v544
    %2351 = vmatpush.msra.mxu0 %v541
    %2352 = vmatpush.msra.mxu0 %v538
    %2353 = vmatpush.msra.mxu0 %v535
    %2354 = vmatpush.msra.mxu0 %v532
    %2355 = vmatpush.msra.mxu0 %v529
    %2356 = vmatpush.msra.mxu0 %v526
    %2357 = vmatpush.msra.mxu0 %v523
    %2358 = vmatmul.f32.gmra.mxu0 %v2321
    %v2359 = vpop.f32.mrf.mxu0
    %v2360 = vadd.f32 %v573, %v2359
    %2361 = vdwg.mxu0
    %2362 = vmatpush.msra.mxu0 %v569
    %2363 = vmatpush.msra.mxu0 %v566
    %2364 = vmatpush.msra.mxu0 %v563
    %2365 = vmatpush.msra.mxu0 %v560
    %2366 = vmatpush.msra.mxu0 %v557
    %2367 = vmatpush.msra.mxu0 %v554
    %2368 = vmatpush.msra.mxu0 %v551
    %2369 = vmatpush.msra.mxu0 %v548
    %2370 = vmatpush.msra.mxu0 %v545
    %2371 = vmatpush.msra.mxu0 %v542
    %2372 = vmatpush.msra.mxu0 %v539
    %2373 = vmatpush.msra.mxu0 %v536
    %2374 = vmatpush.msra.mxu0 %v533
    %2375 = vmatpush.msra.mxu0 %v530
    %2376 = vmatpush.msra.mxu0 %v527
    %2377 = vmatpush.msra.mxu0 %v524
    %2378 = vmatmul.f32.gmra.mxu0 %v2321
    %v2379 = vpop.f32.mrf.mxu0
    %v2380 = vadd.f32 %v574, %v2379
    %2381 = vdwg.mxu0
    %2382 = vmatpush.msra.mxu0 %v683
    %2383 = vmatpush.msra.mxu0 %v680
    %2384 = vmatpush.msra.mxu0 %v677
    %2385 = vmatpush.msra.mxu0 %v674
    %2386 = vmatpush.msra.mxu0 %v671
    %2387 = vmatpush.msra.mxu0 %v668
    %2388 = vmatpush.msra.mxu0 %v665
    %2389 = vmatpush.msra.mxu0 %v662
    %2390 = vmatpush.msra.mxu0 %v659
    %2391 = vmatpush.msra.mxu0 %v656
    %2392 = vmatpush.msra.mxu0 %v653
    %2393 = vmatpush.msra.mxu0 %v650
    %2394 = vmatpush.msra.mxu0 %v647
    %2395 = vmatpush.msra.mxu0 %v644
    %2396 = vmatpush.msra.mxu0 %v641
    %2397 = vmatpush.msra.mxu0 %v638
    %2398 = vmatmul.f32.gmra.mxu0 %v2207
    %v2399 = vpop.f32.mrf.mxu0
    %v2400 = vadd.f32 0.0, %v2399
    %2401 = vdwg.mxu0
    %2402 = vmatpush.msra.mxu0 %v684
    %2403 = vmatpush.msra.mxu0 %v681
    %2404 = vmatpush.msra.mxu0 %v678
    %2405 = vmatpush.msra.mxu0 %v675
    %2406 = vmatpush.msra.mxu0 %v672
    %2407 = vmatpush.msra.mxu0 %v669
    %2408 = vmatpush.msra.mxu0 %v666
    %2409 = vmatpush.msra.mxu0 %v663
    %2410 = vmatpush.msra.mxu0 %v660
    %2411 = vmatpush.msra.mxu0 %v657
    %2412 = vmatpush.msra.mxu0 %v654
    %2413 = vmatpush.msra.mxu0 %v651
    %2414 = vmatpush.msra.mxu0 %v648
    %2415 = vmatpush.msra.mxu0 %v645
    %2416 = vmatpush.msra.mxu0 %v642
    %2417 = vmatpush.msra.mxu0 %v639
    %2418 = vmatmul.f32.gmra.mxu0 %v2207
    %v2419 = vpop.f32.mrf.mxu0
    %v2420 = vadd.f32 0.0, %v2419
    %2421 = vdwg.mxu0
    %2422 = vmatpush.msra.mxu0 %v685
    %2423 = vmatpush.msra.mxu0 %v682
    %2424 = vmatpush.msra.mxu0 %v679
    %2425 = vmatpush.msra.mxu0 %v676
    %2426 = vmatpush.msra.mxu0 %v673
    %2427 = vmatpush.msra.mxu0 %v670
    %2428 = vmatpush.msra.mxu0 %v667
    %2429 = vmatpush.msra.mxu0 %v664
    %2430 = vmatpush.msra.mxu0 %v661
    %2431 = vmatpush.msra.mxu0 %v658
    %2432 = vmatpush.msra.mxu0 %v655
    %2433 = vmatpush.msra.mxu0 %v652
    %2434 = vmatpush.msra.mxu0 %v649
    %2435 = vmatpush.msra.mxu0 %v646
    %2436 = vmatpush.msra.mxu0 %v643
    %2437 = vmatpush.msra.mxu0 %v640
    %2438 = vmatmul.f32.gmra.mxu0 %v2207
    %v2439 = vpop.f32.mrf.mxu0
    %v2440 = vadd.f32 0.0, %v2439
    %2441 = vdwg.mxu0
    %v2442 = vadd.f32 %v2340, %v2400
    %v2443 = vxor.u32 %v2442, 2147483648
    %v2444 = vmul.f32 %v2443, 1.442695
    %v2445 = vpow.pop %v2444
    %v2446 = vadd.f32 %v2445, 1.0
    %v2447 = vrcp.pop %v2446
    %v2448 = vmul.f32 %v2446, %v2447
    %v2449 = vsub.f32 1.0, %v2448
    %v2450 = vmul.f32 %v2447, %v2449
    %v2451 = vadd.f32 %v2447, %v2450
    %vm2452 = vweird.f32 %v2446
    %vm2453 = vweird.f32 %v2447
    %vm2454 = vmor %vm2452, %vm2453
    %v2455 = vsel %vm2454, %v2447, %v2451
    %v2456 = vand.u32 2147483647, %v2446
    %vm2457 = vcmp.eq.f32.partialorder %v2456, 8.507059e+37
    %v2458 = vand.u32 %v2446, 2147483648
    %v2459 = vor.u32 1.1754944e-38, %v2458
    %v2460 = vsel %vm2457, %v2459, %v2455
    %v2461 = vmul.f32 1.0, %v2460
    %v2462 = vadd.f32 %v2360, %v2420
    %v2463 = vxor.u32 %v2462, 2147483648
    %v2464 = vmul.f32 %v2463, 1.442695
    %v2465 = vpow.pop %v2464
    %v2466 = vadd.f32 %v2465, 1.0
    %v2467 = vrcp.pop %v2466
    %v2468 = vmul.f32 %v2466, %v2467
    %v2469 = vsub.f32 1.0, %v2468
    %v2470 = vmul.f32 %v2467, %v2469
    %v2471 = vadd.f32 %v2467, %v2470
    %vm2472 = vweird.f32 %v2466
    %vm2473 = vweird.f32 %v2467
    %vm2474 = vmor %vm2472, %vm2473
    %v2475 = vsel %vm2474, %v2467, %v2471
    %v2476 = vand.u32 2147483647, %v2466
    %vm2477 = vcmp.eq.f32.partialorder %v2476, 8.507059e+37
    %v2478 = vand.u32 %v2466, 2147483648
    %v2479 = vor.u32 1.1754944e-38, %v2478
    %v2480 = vsel %vm2477, %v2479, %v2475
    %v2481 = vmul.f32 1.0, %v2480
    %v2482 = vadd.f32 %v2440, %v788
    %v2483 = vmul.f32 %v2461, %v2482
    %v2484 = vadd.f32 %v2380, %v2483
    %v2485 = vtanh.pop %v2484
    %v2486 = vsub.f32 1.0, %v2481
    %v2487 = vmul.f32 %v2486, %v2485
    %v2488 = vmul.f32 %v2481, %v2207
    %v2489 = vadd.f32 %v2487, %v2488
    %s2490 = smul.u32 7, 3
    %s2491 = smul.addr %s2490, 8
    %s2492 = scalar_lea.vmem [#allocation2], %s2491
    %v2493 = vld [vmem:[%s2492] sm:$0xff]
    %v2494 = vld [vmem:[%s2492 + $0x8] sm:$0xff]
    %v2495 = vld [vmem:[%s2492 + $0x10] sm:$0xff]
    %2496 = vmatpush.msra.mxu0 %v407
    %2497 = vmatpush.msra.mxu0 %v404
    %2498 = vmatpush.msra.mxu0 %v401
    %2499 = vmatpush.msra.mxu0 %v398
    %2500 = vmatpush.msra.mxu0 %v395
    %2501 = vmatpush.msra.mxu0 %v392
    %2502 = vmatpush.msra.mxu0 %v389
    %2503 = vmatpush.msra.mxu0 %v386
    %2504 = vmatpush.msra.mxu0 %v383
    %2505 = vmatpush.msra.mxu0 %v380
    %2506 = vmatpush.msra.mxu0 %v377
    %2507 = vmatpush.msra.mxu0 %v374
    %2508 = vmatpush.msra.mxu0 %v371
    %2509 = vmatpush.msra.mxu0 %v368
    %2510 = vmatpush.msra.mxu0 %v365
    %2511 = vmatpush.msra.mxu0 %v362
    %2512 = vmatmul.f32.gmra.mxu0 %v2321
    %v2513 = vpop.f32.mrf.mxu0
    %v2514 = vadd.f32 0.0, %v2513
    %2515 = vdwg.mxu0
    %2516 = vmatpush.msra.mxu0 %v408
    %2517 = vmatpush.msra.mxu0 %v405
    %2518 = vmatpush.msra.mxu0 %v402
    %2519 = vmatpush.msra.mxu0 %v399
    %2520 = vmatpush.msra.mxu0 %v396
    %2521 = vmatpush.msra.mxu0 %v393
    %2522 = vmatpush.msra.mxu0 %v390
    %2523 = vmatpush.msra.mxu0 %v387
    %2524 = vmatpush.msra.mxu0 %v384
    %2525 = vmatpush.msra.mxu0 %v381
    %2526 = vmatpush.msra.mxu0 %v378
    %2527 = vmatpush.msra.mxu0 %v375
    %2528 = vmatpush.msra.mxu0 %v372
    %2529 = vmatpush.msra.mxu0 %v369
    %2530 = vmatpush.msra.mxu0 %v366
    %2531 = vmatpush.msra.mxu0 %v363
    %2532 = vmatmul.f32.gmra.mxu0 %v2321
    %v2533 = vpop.f32.mrf.mxu0
    %v2534 = vadd.f32 0.0, %v2533
    %2535 = vdwg.mxu0
    %2536 = vmatpush.msra.mxu0 %v409
    %2537 = vmatpush.msra.mxu0 %v406
    %2538 = vmatpush.msra.mxu0 %v403
    %2539 = vmatpush.msra.mxu0 %v400
    %2540 = vmatpush.msra.mxu0 %v397
    %2541 = vmatpush.msra.mxu0 %v394
    %2542 = vmatpush.msra.mxu0 %v391
    %2543 = vmatpush.msra.mxu0 %v388
    %2544 = vmatpush.msra.mxu0 %v385
    %2545 = vmatpush.msra.mxu0 %v382
    %2546 = vmatpush.msra.mxu0 %v379
    %2547 = vmatpush.msra.mxu0 %v376
    %2548 = vmatpush.msra.mxu0 %v373
    %2549 = vmatpush.msra.mxu0 %v370
    %2550 = vmatpush.msra.mxu0 %v367
    %2551 = vmatpush.msra.mxu0 %v364
    %2552 = vmatmul.f32.gmra.mxu0 %v2321
    %v2553 = vpop.f32.mrf.mxu0
    %v2554 = vadd.f32 0.0, %v2553
    %2555 = vdwg.mxu0
    %v2556 = vadd.f32 %v2493, %v2514
    %v2557 = vxor.u32 %v2556, 2147483648
    %v2558 = vmul.f32 %v2557, 1.442695
    %v2559 = vpow.pop %v2558
    %v2560 = vadd.f32 %v2559, 1.0
    %v2561 = vrcp.pop %v2560
    %v2562 = vmul.f32 %v2560, %v2561
    %v2563 = vsub.f32 1.0, %v2562
    %v2564 = vmul.f32 %v2561, %v2563
    %v2565 = vadd.f32 %v2561, %v2564
    %vm2566 = vweird.f32 %v2560
    %vm2567 = vweird.f32 %v2561
    %vm2568 = vmor %vm2566, %vm2567
    %v2569 = vsel %vm2568, %v2561, %v2565
    %v2570 = vand.u32 2147483647, %v2560
    %vm2571 = vcmp.eq.f32.partialorder %v2570, 8.507059e+37
    %v2572 = vand.u32 %v2560, 2147483648
    %v2573 = vor.u32 1.1754944e-38, %v2572
    %v2574 = vsel %vm2571, %v2573, %v2569
    %v2575 = vmul.f32 1.0, %v2574
    %v2576 = vadd.f32 %v2494, %v2534
    %v2577 = vxor.u32 %v2576, 2147483648
    %v2578 = vmul.f32 %v2577, 1.442695
    %v2579 = vpow.pop %v2578
    %v2580 = vadd.f32 %v2579, 1.0
    %v2581 = vrcp.pop %v2580
    %v2582 = vmul.f32 %v2580, %v2581
    %v2583 = vsub.f32 1.0, %v2582
    %v2584 = vmul.f32 %v2581, %v2583
    %v2585 = vadd.f32 %v2581, %v2584
    %vm2586 = vweird.f32 %v2580
    %vm2587 = vweird.f32 %v2581
    %vm2588 = vmor %vm2586, %vm2587
    %v2589 = vsel %vm2588, %v2581, %v2585
    %v2590 = vand.u32 2147483647, %v2580
    %vm2591 = vcmp.eq.f32.partialorder %v2590, 8.507059e+37
    %v2592 = vand.u32 %v2580, 2147483648
    %v2593 = vor.u32 1.1754944e-38, %v2592
    %v2594 = vsel %vm2591, %v2593, %v2589
    %v2595 = vmul.f32 1.0, %v2594
    %v2596 = vadd.f32 %v2554, %v512
    %v2597 = vmul.f32 %v2575, %v2596
    %v2598 = vadd.f32 %v2495, %v2597
    %v2599 = vtanh.pop %v2598
    %v2600 = vsub.f32 1.0, %v2595
    %v2601 = vmul.f32 %v2600, %v2599
    %v2602 = vmul.f32 %v2595, %v2321
    %v2603 = vadd.f32 %v2601, %v2602
    %2604 = vmatpush.msra.mxu0 %v567
    %2605 = vmatpush.msra.mxu0 %v564
    %2606 = vmatpush.msra.mxu0 %v561
    %2607 = vmatpush.msra.mxu0 %v558
    %2608 = vmatpush.msra.mxu0 %v555
    %2609 = vmatpush.msra.mxu0 %v552
    %2610 = vmatpush.msra.mxu0 %v549
    %2611 = vmatpush.msra.mxu0 %v546
    %2612 = vmatpush.msra.mxu0 %v543
    %2613 = vmatpush.msra.mxu0 %v540
    %2614 = vmatpush.msra.mxu0 %v537
    %2615 = vmatpush.msra.mxu0 %v534
    %2616 = vmatpush.msra.mxu0 %v531
    %2617 = vmatpush.msra.mxu0 %v528
    %2618 = vmatpush.msra.mxu0 %v525
    %2619 = vmatpush.msra.mxu0 %v522
    %2620 = vmatmul.f32.gmra.mxu0 %v2603
    %v2621 = vpop.f32.mrf.mxu0
    %v2622 = vadd.f32 %v572, %v2621
    %2623 = vdwg.mxu0
    %2624 = vmatpush.msra.mxu0 %v568
    %2625 = vmatpush.msra.mxu0 %v565
    %2626 = vmatpush.msra.mxu0 %v562
    %2627 = vmatpush.msra.mxu0 %v559
    %2628 = vmatpush.msra.mxu0 %v556
    %2629 = vmatpush.msra.mxu0 %v553
    %2630 = vmatpush.msra.mxu0 %v550
    %2631 = vmatpush.msra.mxu0 %v547
    %2632 = vmatpush.msra.mxu0 %v544
    %2633 = vmatpush.msra.mxu0 %v541
    %2634 = vmatpush.msra.mxu0 %v538
    %2635 = vmatpush.msra.mxu0 %v535
    %2636 = vmatpush.msra.mxu0 %v532
    %2637 = vmatpush.msra.mxu0 %v529
    %2638 = vmatpush.msra.mxu0 %v526
    %2639 = vmatpush.msra.mxu0 %v523
    %2640 = vmatmul.f32.gmra.mxu0 %v2603
    %v2641 = vpop.f32.mrf.mxu0
    %v2642 = vadd.f32 %v573, %v2641
    %2643 = vdwg.mxu0
    %2644 = vmatpush.msra.mxu0 %v569
    %2645 = vmatpush.msra.mxu0 %v566
    %2646 = vmatpush.msra.mxu0 %v563
    %2647 = vmatpush.msra.mxu0 %v560
    %2648 = vmatpush.msra.mxu0 %v557
    %2649 = vmatpush.msra.mxu0 %v554
    %2650 = vmatpush.msra.mxu0 %v551
    %2651 = vmatpush.msra.mxu0 %v548
    %2652 = vmatpush.msra.mxu0 %v545
    %2653 = vmatpush.msra.mxu0 %v542
    %2654 = vmatpush.msra.mxu0 %v539
    %2655 = vmatpush.msra.mxu0 %v536
    %2656 = vmatpush.msra.mxu0 %v533
    %2657 = vmatpush.msra.mxu0 %v530
    %2658 = vmatpush.msra.mxu0 %v527
    %2659 = vmatpush.msra.mxu0 %v524
    %2660 = vmatmul.f32.gmra.mxu0 %v2603
    %v2661 = vpop.f32.mrf.mxu0
    %v2662 = vadd.f32 %v574, %v2661
    %2663 = vdwg.mxu0
    %2664 = vmatpush.msra.mxu0 %v683
    %2665 = vmatpush.msra.mxu0 %v680
    %2666 = vmatpush.msra.mxu0 %v677
    %2667 = vmatpush.msra.mxu0 %v674
    %2668 = vmatpush.msra.mxu0 %v671
    %2669 = vmatpush.msra.mxu0 %v668
    %2670 = vmatpush.msra.mxu0 %v665
    %2671 = vmatpush.msra.mxu0 %v662
    %2672 = vmatpush.msra.mxu0 %v659
    %2673 = vmatpush.msra.mxu0 %v656
    %2674 = vmatpush.msra.mxu0 %v653
    %2675 = vmatpush.msra.mxu0 %v650
    %2676 = vmatpush.msra.mxu0 %v647
    %2677 = vmatpush.msra.mxu0 %v644
    %2678 = vmatpush.msra.mxu0 %v641
    %2679 = vmatpush.msra.mxu0 %v638
    %2680 = vmatmul.f32.gmra.mxu0 %v2489
    %v2681 = vpop.f32.mrf.mxu0
    %v2682 = vadd.f32 0.0, %v2681
    %2683 = vdwg.mxu0
    %2684 = vmatpush.msra.mxu0 %v684
    %2685 = vmatpush.msra.mxu0 %v681
    %2686 = vmatpush.msra.mxu0 %v678
    %2687 = vmatpush.msra.mxu0 %v675
    %2688 = vmatpush.msra.mxu0 %v672
    %2689 = vmatpush.msra.mxu0 %v669
    %2690 = vmatpush.msra.mxu0 %v666
    %2691 = vmatpush.msra.mxu0 %v663
    %2692 = vmatpush.msra.mxu0 %v660
    %2693 = vmatpush.msra.mxu0 %v657
    %2694 = vmatpush.msra.mxu0 %v654
    %2695 = vmatpush.msra.mxu0 %v651
    %2696 = vmatpush.msra.mxu0 %v648
    %2697 = vmatpush.msra.mxu0 %v645
    %2698 = vmatpush.msra.mxu0 %v642
    %2699 = vmatpush.msra.mxu0 %v639
    %2700 = vmatmul.f32.gmra.mxu0 %v2489
    %v2701 = vpop.f32.mrf.mxu0
    %v2702 = vadd.f32 0.0, %v2701
    %2703 = vdwg.mxu0
    %2704 = vmatpush.msra.mxu0 %v685
    %2705 = vmatpush.msra.mxu0 %v682
    %2706 = vmatpush.msra.mxu0 %v679
    %2707 = vmatpush.msra.mxu0 %v676
    %2708 = vmatpush.msra.mxu0 %v673
    %2709 = vmatpush.msra.mxu0 %v670
    %2710 = vmatpush.msra.mxu0 %v667
    %2711 = vmatpush.msra.mxu0 %v664
    %2712 = vmatpush.msra.mxu0 %v661
    %2713 = vmatpush.msra.mxu0 %v658
    %2714 = vmatpush.msra.mxu0 %v655
    %2715 = vmatpush.msra.mxu0 %v652
    %2716 = vmatpush.msra.mxu0 %v649
    %2717 = vmatpush.msra.mxu0 %v646
    %2718 = vmatpush.msra.mxu0 %v643
    %2719 = vmatpush.msra.mxu0 %v640
    %2720 = vmatmul.f32.gmra.mxu0 %v2489
    %v2721 = vpop.f32.mrf.mxu0
    %v2722 = vadd.f32 0.0, %v2721
    %2723 = vdwg.mxu0
    %v2724 = vadd.f32 %v2622, %v2682
    %v2725 = vxor.u32 %v2724, 2147483648
    %v2726 = vmul.f32 %v2725, 1.442695
    %v2727 = vpow.pop %v2726
    %v2728 = vadd.f32 %v2727, 1.0
    %v2729 = vrcp.pop %v2728
    %v2730 = vmul.f32 %v2728, %v2729
    %v2731 = vsub.f32 1.0, %v2730
    %v2732 = vmul.f32 %v2729, %v2731
    %v2733 = vadd.f32 %v2729, %v2732
    %vm2734 = vweird.f32 %v2728
    %vm2735 = vweird.f32 %v2729
    %vm2736 = vmor %vm2734, %vm2735
    %v2737 = vsel %vm2736, %v2729, %v2733
    %v2738 = vand.u32 2147483647, %v2728
    %vm2739 = vcmp.eq.f32.partialorder %v2738, 8.507059e+37
    %v2740 = vand.u32 %v2728, 2147483648
    %v2741 = vor.u32 1.1754944e-38, %v2740
    %v2742 = vsel %vm2739, %v2741, %v2737
    %v2743 = vmul.f32 1.0, %v2742
    %v2744 = vadd.f32 %v2642, %v2702
    %v2745 = vxor.u32 %v2744, 2147483648
    %v2746 = vmul.f32 %v2745, 1.442695
    %v2747 = vpow.pop %v2746
    %v2748 = vadd.f32 %v2747, 1.0
    %v2749 = vrcp.pop %v2748
    %v2750 = vmul.f32 %v2748, %v2749
    %v2751 = vsub.f32 1.0, %v2750
    %v2752 = vmul.f32 %v2749, %v2751
    %v2753 = vadd.f32 %v2749, %v2752
    %vm2754 = vweird.f32 %v2748
    %vm2755 = vweird.f32 %v2749
    %vm2756 = vmor %vm2754, %vm2755
    %v2757 = vsel %vm2756, %v2749, %v2753
    %v2758 = vand.u32 2147483647, %v2748
    %vm2759 = vcmp.eq.f32.partialorder %v2758, 8.507059e+37
    %v2760 = vand.u32 %v2748, 2147483648
    %v2761 = vor.u32 1.1754944e-38, %v2760
    %v2762 = vsel %vm2759, %v2761, %v2757
    %v2763 = vmul.f32 1.0, %v2762
    %v2764 = vadd.f32 %v2722, %v788
    %v2765 = vmul.f32 %v2743, %v2764
    %v2766 = vadd.f32 %v2662, %v2765
    %v2767 = vtanh.pop %v2766
    %v2768 = vsub.f32 1.0, %v2763
    %v2769 = vmul.f32 %v2768, %v2767
    %v2770 = vmul.f32 %v2763, %v2489
    %v2771 = vadd.f32 %v2769, %v2770
    %2772 = vst [vmem:[#allocation3] sm:$0xff] %v2603
    %2773 = vst [vmem:[%s354] sm:$0xff] %v2771
    // Predicated region
    $region94: #{tpu_custom_call.1} parent=1 // pred_check
      %p2774 = pneg %p151
    $region95: #{tpu_custom_call.1} parent=1 // pred_check_branch
      %2776 = sbr.rel (%p2774) target = $region97
    $region96: #{tpu_custom_call.1} parent=1 // pred_region
      %v2777 = vld [vmem:[#allocation3] sm:$0xff]
      %v2778 = vld [vmem:[#allocation3 + $0x8] sm:$0xff]
      %2779 = vst [vmem:[#allocation16] sm:$0xff] %v2777
      %2780 = vst [vmem:[#allocation16 + $0x8] sm:$0xff] %v2778
      %v2781 = vld [vmem:[%s1] sm:$0xff]
      %v2782 = vld [vmem:[%s11] sm:$0xff]
      %v2783 = vld [vmem:[%s354] sm:$0xff]
      %v2784 = vld [vmem:[#allocation12] sm:$0xff]
      %v2785 = vld [vmem:[#allocation12 + $0x8] sm:$0xff]
      %v2786 = vld [vmem:[#allocation12 + $0x10] sm:$0xff]
      %v2787 = vld [vmem:[#allocation12 + $0x18] sm:$0xff]
      %v2788 = vld [vmem:[#allocation12 + $0x20] sm:$0xff]
      %v2789 = vld [vmem:[#allocation12 + $0x28] sm:$0xff]
      %v2790 = vld [vmem:[#allocation12 + $0x30] sm:$0xff]
      %v2791 = vld [vmem:[#allocation12 + $0x38] sm:$0xff]
      %v2792 = vld [vmem:[#allocation12 + $0x40] sm:$0xff]
      %v2793 = vld [vmem:[#allocation12 + $0x48] sm:$0xff]
      %v2794 = vld [vmem:[#allocation12 + $0x50] sm:$0xff]
      %v2795 = vld [vmem:[#allocation12 + $0x58] sm:$0xff]
      %v2796 = vld [vmem:[#allocation12 + $0x60] sm:$0xff]
      %v2797 = vld [vmem:[#allocation12 + $0x68] sm:$0xff]
      %v2798 = vld [vmem:[#allocation12 + $0x70] sm:$0xff]
      %v2799 = vld [vmem:[#allocation12 + $0x78] sm:$0xff]
      %2800 = vmatpush.msra.mxu0 %v2799
      %2801 = vmatpush.msra.mxu0 %v2798
      %2802 = vmatpush.msra.mxu0 %v2797
      %2803 = vmatpush.msra.mxu0 %v2796
      %2804 = vmatpush.msra.mxu0 %v2795
      %2805 = vmatpush.msra.mxu0 %v2794
      %2806 = vmatpush.msra.mxu0 %v2793
      %2807 = vmatpush.msra.mxu0 %v2792
      %2808 = vmatpush.msra.mxu0 %v2791
      %2809 = vmatpush.msra.mxu0 %v2790
      %2810 = vmatpush.msra.mxu0 %v2789
      %2811 = vmatpush.msra.mxu0 %v2788
      %2812 = vmatpush.msra.mxu0 %v2787
      %2813 = vmatpush.msra.mxu0 %v2786
      %2814 = vmatpush.msra.mxu0 %v2785
      %2815 = vmatpush.msra.mxu0 %v2784
      %2816 = vmatmul.f32.gmra.mxu0 %v2783
      %v2817 = vpop.f32.mrf.mxu0
      %v2818 = vadd.f32 0.0, %v2817
      %2819 = vdwg.mxu0
      %vm2820 = vcmask 64512
      %v2822 = vsel %vm2820, %v2781, 0
      %2824 = vmatpush.msra.mxu0 0.0
      %2825 = vmatpush.msra.mxu0 0.0
      %2826 = vmatpush.msra.mxu0 0.0
      %2827 = vmatpush.msra.mxu0 0.0
      %2828 = vmatpush.msra.mxu0 0.0
      %2829 = vmatpush.msra.mxu0 0.0
      %2830 = vmatpush.msra.mxu0 0.0
      %2831 = vmatpush.msra.mxu0 0.0
      %2832 = vmatpush.msra.mxu0 0.0
      %2833 = vmatpush.msra.mxu0 0.0
      %2834 = vmatpush.msra.mxu0 0.0
      %2835 = vmatpush.msra.mxu0 0.0
      %2836 = vmatpush.msra.mxu0 0.0
      %2837 = vmatpush.msra.mxu0 0.0
      %2838 = vmatpush.msra.mxu0 0.0
      %2839 = vmatpush.msra.mxu0 %v2782
      %2840 = vmatmul.f32.gmra.mxu0 %v2822
      %v2841 = vpop.f32.mrf.mxu0
      %v2842 = vadd.f32 %v2818, %v2841
      %2843 = vdwg.mxu0
      %v2844 = vld [vmem:[%s13] sm:$0x1]
      %v2846 = vperm.slane %v2844, 0
      %v2848 = vadd.f32 %v2842, %v2846
      %v2849 = vmul.f32 %v2848, 0.5
      %v2850 = vmul.f32 %v2848, 0.70710677
      %v2851 = vmul.f32 %v2850, %v2850
      %v2852 = vmin.f32 16.0, %v2851
      %v2853 = vmul.f32 %v2852, 2.1237322e-06
      %v2854 = vadd.f32 %v2853, 0.00028619796
      %v2855 = vmul.f32 %v2852, %v2854
      %v2856 = vadd.f32 %v2855, 0.0036580483
      %v2857 = vmul.f32 %v2852, %v2856
      %v2858 = vadd.f32 %v2857, 0.05243302
      %v2859 = vmul.f32 %v2852, %v2858
      %v2860 = vadd.f32 %v2859, 0.18741608
      %v2861 = vmul.f32 %v2852, %v2860
      %v2862 = vadd.f32 %v2861, 1.1283791
      %v2863 = vmul.f32 %v2850, %v2862
      %v2864 = vmul.f32 %v2852, 3.8918573e-05
      %v2865 = vadd.f32 %v2864, 0.001143296
      %v2866 = vmul.f32 %v2852, %v2865
      %v2867 = vadd.f32 %v2866, 0.014752088
      %v2868 = vmul.f32 %v2852, %v2867
      %v2869 = vadd.f32 %v2868, 0.112945676
      %v2870 = vmul.f32 %v2852, %v2869
      %v2871 = vadd.f32 %v2870, 0.4994258
      %v2872 = vmul.f32 %v2852, %v2871
      %v2873 = vadd.f32 %v2872, 1.0
      %v2874 = vrcp.pop %v2873
      %v2875 = vmul.f32 %v2873, %v2874
      %v2876 = vsub.f32 1.0, %v2875
      %v2877 = vmul.f32 %v2874, %v2876
      %v2878 = vadd.f32 %v2874, %v2877
      %vm2879 = vweird.f32 %v2873
      %vm2880 = vweird.f32 %v2874
      %vm2881 = vmor %vm2879, %vm2880
      %v2882 = vsel %vm2881, %v2874, %v2878
      %v2883 = vand.u32 2147483647, %v2873
      %vm2884 = vcmp.eq.f32.partialorder %v2883, 8.507059e+37
      %v2885 = vand.u32 %v2873, 2147483648
      %v2886 = vor.u32 1.1754944e-38, %v2885
      %v2887 = vsel %vm2884, %v2886, %v2882
      %v2888 = vmul.f32 %v2863, %v2887
      %v2889 = vmin.f32 %v2888, 1.0
      %v2890 = vmax.f32 %v2889, -1.0
      %v2891 = vadd.f32 %v2890, 1.0
      %v2892 = vmul.f32 %v2849, %v2891
      %v2893 = vld [vmem:[#allocation13] sm:$0xff]
      %v2894 = vld [vmem:[#allocation13 + $0x8] sm:$0xff]
      %v2895 = vld [vmem:[#allocation13 + $0x10] sm:$0xff]
      %v2896 = vld [vmem:[#allocation13 + $0x18] sm:$0xff]
      %v2897 = vld [vmem:[#allocation13 + $0x20] sm:$0xff]
      %v2898 = vld [vmem:[#allocation13 + $0x28] sm:$0xff]
      %v2899 = vld [vmem:[#allocation13 + $0x30] sm:$0xff]
      %v2900 = vld [vmem:[#allocation13 + $0x38] sm:$0xff]
      %v2901 = vld [vmem:[#allocation13 + $0x40] sm:$0xff]
      %v2902 = vld [vmem:[#allocation13 + $0x48] sm:$0xff]
      %v2903 = vld [vmem:[#allocation13 + $0x50] sm:$0xff]
      %v2904 = vld [vmem:[#allocation13 + $0x58] sm:$0xff]
      %v2905 = vld [vmem:[#allocation13 + $0x60] sm:$0xff]
      %v2906 = vld [vmem:[#allocation13 + $0x68] sm:$0xff]
      %v2907 = vld [vmem:[#allocation13 + $0x70] sm:$0xff]
      %v2908 = vld [vmem:[#allocation13 + $0x78] sm:$0xff]
      %v2909 = vld [vmem:[%s15] sm:$0x1]
      %v2911 = vperm.slane %v2909, 0
      %2913 = vmatpush.msra.mxu0 %v2908
      %2914 = vmatpush.msra.mxu0 %v2907
      %2915 = vmatpush.msra.mxu0 %v2906
      %2916 = vmatpush.msra.mxu0 %v2905
      %2917 = vmatpush.msra.mxu0 %v2904
      %2918 = vmatpush.msra.mxu0 %v2903
      %2919 = vmatpush.msra.mxu0 %v2902
      %2920 = vmatpush.msra.mxu0 %v2901
      %2921 = vmatpush.msra.mxu0 %v2900
      %2922 = vmatpush.msra.mxu0 %v2899
      %2923 = vmatpush.msra.mxu0 %v2898
      %2924 = vmatpush.msra.mxu0 %v2897
      %2925 = vmatpush.msra.mxu0 %v2896
      %2926 = vmatpush.msra.mxu0 %v2895
      %2927 = vmatpush.msra.mxu0 %v2894
      %2928 = vmatpush.msra.mxu0 %v2893
      %2929 = vmatmul.f32.gmra.mxu0 %v2892
      %v2930 = vpop.f32.mrf.mxu0
      %v2931 = vadd.f32 %v2911, %v2930
      %2932 = vdwg.mxu0
      %v2933 = vmul.f32 %v2931, 0.5
      %v2934 = vmul.f32 %v2931, 0.70710677
      %v2935 = vmul.f32 %v2934, %v2934
      %v2936 = vmin.f32 16.0, %v2935
      %v2937 = vmul.f32 %v2936, 2.1237322e-06
      %v2938 = vadd.f32 %v2937, 0.00028619796
      %v2939 = vmul.f32 %v2936, %v2938
      %v2940 = vadd.f32 %v2939, 0.0036580483
      %v2941 = vmul.f32 %v2936, %v2940
      %v2942 = vadd.f32 %v2941, 0.05243302
      %v2943 = vmul.f32 %v2936, %v2942
      %v2944 = vadd.f32 %v2943, 0.18741608
      %v2945 = vmul.f32 %v2936, %v2944
      %v2946 = vadd.f32 %v2945, 1.1283791
      %v2947 = vmul.f32 %v2934, %v2946
      %v2948 = vmul.f32 %v2936, 3.8918573e-05
      %v2949 = vadd.f32 %v2948, 0.001143296
      %v2950 = vmul.f32 %v2936, %v2949
      %v2951 = vadd.f32 %v2950, 0.014752088
      %v2952 = vmul.f32 %v2936, %v2951
      %v2953 = vadd.f32 %v2952, 0.112945676
      %v2954 = vmul.f32 %v2936, %v2953
      %v2955 = vadd.f32 %v2954, 0.4994258
      %v2956 = vmul.f32 %v2936, %v2955
      %v2957 = vadd.f32 %v2956, 1.0
      %v2958 = vrcp.pop %v2957
      %v2959 = vmul.f32 %v2957, %v2958
      %v2960 = vsub.f32 1.0, %v2959
      %v2961 = vmul.f32 %v2958, %v2960
      %v2962 = vadd.f32 %v2958, %v2961
      %vm2963 = vweird.f32 %v2957
      %vm2964 = vweird.f32 %v2958
      %vm2965 = vmor %vm2963, %vm2964
      %v2966 = vsel %vm2965, %v2958, %v2962
      %v2967 = vand.u32 2147483647, %v2957
      %vm2968 = vcmp.eq.f32.partialorder %v2967, 8.507059e+37
      %v2969 = vand.u32 %v2957, 2147483648
      %v2970 = vor.u32 1.1754944e-38, %v2969
      %v2971 = vsel %vm2968, %v2970, %v2966
      %v2972 = vmul.f32 %v2947, %v2971
      %v2973 = vmin.f32 %v2972, 1.0
      %v2974 = vmax.f32 %v2973, -1.0
      %v2975 = vadd.f32 %v2974, 1.0
      %v2976 = vmul.f32 %v2933, %v2975
      %2977 = vst [vmem:[#allocation15] sm:$0xff] %v2976
    $region97: #{tpu_custom_call.1} parent=1 // pred_fallthru
      _
    // Predicated region
    $region98: #{tpu_custom_call.1} parent=1 // pred_check
      _
    $region99: #{tpu_custom_call.1} parent=1 // pred_check_branch
      %2979 = sbr.rel (0) target = $region101
    $region100: #{tpu_custom_call.1} parent=1 // pred_region
      %2981 = vsyncadd [#allocation6], 0
      %s2983 = sshll.u32 [#allocation15], 4
      %s2984 = int_to_ptr.vmem [resolvable:$true] %s2983
      %s2985 = sshll.u32 %s16, 4
      %s2986 = int_to_ptr.hbm [resolvable:$true] %s2985
      %2988 = dma.vmem_to_hbm [thread:$0]  %s2984, 128, %s2986, [#allocation6]
    $region101: #{tpu_custom_call.1} parent=1 // pred_fallthru
      _
    // Predicated region
    $region102: #{tpu_custom_call.1} parent=1 // pred_check
      _
    $region103: #{tpu_custom_call.1} parent=1 // pred_check_branch
      %2990 = sbr.rel (0) target = $region105
    $region104: #{tpu_custom_call.1} parent=1 // pred_region
      %2992 = vsyncadd [#allocation17], 0
      %s2993 = sshll.u32 [#allocation16], 4
      %s2994 = int_to_ptr.vmem [resolvable:$true] %s2993
      %s2995 = sshll.u32 %s17, 4
      %s2996 = int_to_ptr.hbm [resolvable:$true] %s2995
      %3001 = dma.vmem_to_hbm [thread:$0]  %s2994, 256, %s2996, [#allocation17], 128, 128, 8
    $region105: #{tpu_custom_call.1} parent=1 // pred_fallthru
      _
    // Predicated region
    $region106: #{tpu_custom_call.1} parent=1 // pred_check
      _
    $region107: #{tpu_custom_call.1} parent=1 // pred_check_branch
      %3003 = sbr.rel (0) target = $region109
    $region108: #{tpu_custom_call.1} parent=1 // pred_region
      %3005 = dma.done [#allocation6], 128
    $region109: #{tpu_custom_call.1} parent=1 // pred_fallthru
      _
    // Predicated region
    $region110: #{tpu_custom_call.1} parent=1 // pred_check
      _
    $region111: #{tpu_custom_call.1} parent=1 // pred_check_branch
      %3007 = sbr.rel (0) target = $region113
    $region112: #{tpu_custom_call.1} parent=1 // pred_region
      %3009 = dma.done [#allocation17], 256
    $region113: #{tpu_custom_call.1} parent=1 // pred_fallthru
      _
    %3010 = vsyncpa [#allocation5], 1
    %3011 = vsyncpa [#allocation8], 1
    %3012 = vsyncpa [#allocation11], 1
    %3013 = vsyncpa [#allocation14], 1
    %3014 = vsyncpa [#allocation6], 1
    %3015 = vsyncpa [#allocation17], 1

</llo_original>
